<compile_context>
chip_gen: v6e
topology: v6e:2x2x1
jax: 0.10.0
libtpu: 0.0.40
codegen_flags: <defaults>
</compile_context>

<pallas_src>
import functools

import jax
import jax.numpy as jnp
from jax.experimental import pallas as pl
from jax.experimental.pallas import tpu as pltpu

KERNEL_SIZE = 3
BN_EPS = 1e-5
_SQRT_HALF = 0.7071067811865476


def _round_up(x, m):
    return (x + m - 1) // m * m


def _group_channel_sum(row, c, lanes):
    """row: (1, L) per-lane partial sums. Returns (1, L) where every lane holds the
    sum over all lanes sharing its channel index (lane % c). Circular-roll accumulation
    is direction-independent because the whole channel group is summed."""
    g = lanes // c
    if g == 1:
        return row
    if g & (g - 1) == 0:                      # power-of-two group count: log-step
        total = row
        step = c
        while step < lanes:
            total = total + pltpu.roll(total, step, axis=1)
            step *= 2
        return total
    total = row                               # general fallback: linear accumulation
    for j in range(1, g):
        total = total + pltpu.roll(row, j * c, axis=1)
    return total


def _res_dwa_kernel(x_ref, w1_ref, b1_ref, bn1_ref, w2_ref, b2_ref, bn2_ref,
                    o_ref, pad_ref, *, n, c, d, h, w, k):
    dh = d * h
    nc = n * c
    lanes = w * nc
    pad = k // 2
    r0 = _round_up(h * pad, 8)                # zero-halo rows (top/bottom)
    c0 = _round_up(nc * pad, 128)             # zero-halo lanes (left/right)
    rows_t = 2 * r0 + dh
    cols_t = 2 * c0 + lanes
    inv_count = 1.0 / float(n * d * h * w)

    # ---- zero ONLY the halo strips (centre window is fully rewritten by every axial
    # conv, so zeroing it would be a wasted full-tensor store on the vst slot). ----
    pad_ref[pl.ds(0, r0), :] = jnp.zeros((r0, cols_t), jnp.float32)
    pad_ref[pl.ds(r0 + dh, r0), :] = jnp.zeros((r0, cols_t), jnp.float32)
    pad_ref[pl.ds(r0, dh), pl.ds(0, c0)] = jnp.zeros((dh, c0), jnp.float32)
    pad_ref[pl.ds(r0, dh), pl.ds(c0 + lanes, c0)] = jnp.zeros((dh, c0), jnp.float32)

    # ---- per-row validity masks for off-centre H-axis taps, built in-kernel from an
    # iota (no HBM mask input). hi = row % h computed exactly via f32 floor-division,
    # avoiding any dependence on vector integer div/rem lowering. Hoisted once and
    # reused by both stages. ----
    row_f = jax.lax.broadcasted_iota(jnp.int32, (dh, 1), 0).astype(jnp.float32)
    hpos = row_f - jnp.floor((row_f + 0.5) * (1.0 / float(h))) * float(h)
    hmask = {}
    for t in range(k):
        off = t - pad
        if off == 0:
            continue
        valid = (hpos + float(off) >= 0.0) & (hpos + float(off) <= float(h - 1))
        hmask[t] = jnp.where(valid, 1.0, 0.0)            # (dh, 1) f32

    def axial(v, taps, bias, axis):
        # Depthwise 'same'-padded conv along one axis. taps: (k, L); bias: (1, L)|None.
        pad_ref[pl.ds(r0, dh), pl.ds(c0, lanes)] = v      # 1 centre store per axial conv
        acc = v * taps[pad:pad + 1, :]                    # centre tap: reuse v, no reload
        for t in range(k):
            off = t - pad
            if off == 0:
                continue
            if axis == 0:      # D axis: row stride = h; borders from top/bottom halo
                sh = pad_ref[pl.ds(r0 + off * h, dh), pl.ds(c0, lanes)]
            elif axis == 1:    # H axis: row stride = 1; mask rows crossing a D slab
                sh = pad_ref[pl.ds(r0 + off, dh), pl.ds(c0, lanes)] * hmask[t]
            else:              # W axis: lane stride = n*c; borders from left/right halo
                sh = pad_ref[pl.ds(r0, dh), pl.ds(c0 + off * nc, lanes)]
            acc = acc + sh * taps[t:t + 1, :]
        if bias is not None:
            acc = acc + bias
        return acc

    def dwa_conv(v, w_ref, b_ref):
        wt = w_ref[...]                        # (3, k, L), loaded once
        bs = b_ref[...]                        # (2, L): D-conv and H-conv biases
        v = axial(v, wt[0], bs[0:1, :], 0)     # D
        v = axial(v, wt[1], bs[1:2, :], 1)     # H
        # W-axis conv bias is a per-channel constant added right before BatchNorm;
        # the batch-mean subtraction cancels it exactly, so it is skipped entirely.
        v = axial(v, wt[2], None, 2)           # W
        return v

    def bn_gelu(v, bn_ref):
        gb = bn_ref[...]                       # (2, L): [gamma_tiled; beta_tiled]
        s1 = _group_channel_sum(jnp.sum(v, axis=0, keepdims=True), c, lanes)
        s2 = _group_channel_sum(jnp.sum(v * v, axis=0, keepdims=True), c, lanes)
        mean = s1 * inv_count
        var = jnp.maximum(s2 * inv_count - mean * mean, 0.0)   # biased batch variance
        scale = gb[0:1, :] * jax.lax.rsqrt(var + BN_EPS)        # folded BN
        shift = gb[1:2, :] - mean * scale
        y = v * scale + shift
        # exact-erf GELU to match nn.GELU(default).
        return 0.5 * y * (1.0 + jax.lax.erf(y * _SQRT_HALF))

    hidden = bn_gelu(dwa_conv(x_ref[...].astype(jnp.float32), w1_ref, b1_ref), bn1_ref)
    hidden = bn_gelu(dwa_conv(hidden, w2_ref, b2_ref), bn2_ref)
    # Residual = Identity. Re-read x here (instead of keeping an f32 copy live across
    # the whole kernel) to cut peak VMEM / spill pressure.
    o_ref[...] = (hidden + x_ref[...].astype(jnp.float32)).astype(o_ref.dtype)


def res_dwa_conv_block(x_ncdhw, w1, b1, bn1, w2, b2, bn2, *, kernel_size=KERNEL_SIZE):
    """ResDWAConvBlock forward.

    x_ncdhw : (N, C, D, H, W)
    w1, w2  : (3, k, C)   per-axis (D, H, W) per-channel conv taps
    b1, b2  : (3, C)      per-axis per-channel conv biases
    bn1, bn2: (2, C)      rows = [gamma, beta] of the training-mode BatchNorm3d
    Returns (N, C, D, H, W), same dtype as x.
    """
    n, c, d, h, w = x_ncdhw.shape
    k = kernel_size
    dh, nc = d * h, n * c
    lanes = w * nc
    reps = w * n

    # Layout plumbing (outside the kernel): NCDHW -> (D*H, W*N*C), channels fastest.
    x2d = jnp.transpose(x_ncdhw, (2, 3, 4, 0, 1)).reshape(dh, lanes)

    # Per-channel params tiled across the fused (w, n) lane groups (hoisted broadcasts).
    w1l = jnp.tile(w1.astype(jnp.float32), (1, 1, reps))
    w2l = jnp.tile(w2.astype(jnp.float32), (1, 1, reps))
    b1l = jnp.tile(b1[:2].astype(jnp.float32), (1, reps))   # W-conv bias cancelled by BN
    b2l = jnp.tile(b2[:2].astype(jnp.float32), (1, reps))
    bn1l = jnp.tile(bn1.astype(jnp.float32), (1, reps))
    bn2l = jnp.tile(bn2.astype(jnp.float32), (1, reps))

    r0 = _round_up(h * (k // 2), 8)
    c0 = _round_up(nc * (k // 2), 128)
    rows_t = 2 * r0 + dh
    cols_t = 2 * c0 + lanes
    scratch = pltpu.VMEM((rows_t, cols_t), jnp.float32)

    # Gridless call -> whole arrays resident exactly once in VMEM (no pointless double
    # buffering of full-tensor blocks). Set the scoped-VMEM limit explicitly.
    est_bytes = (2 * dh * lanes * jnp.dtype(x_ncdhw.dtype).itemsize   # in + out blocks
                 + rows_t * cols_t * 4                                # halo scratch
                 + 8 * dh * lanes * 4                                 # live f32 temps
                 + (2 << 20))                                         # params + headroom
    vmem_limit = int(min(max(est_bytes, 32 * 1024 * 1024), 64 * 1024 * 1024))

    kernel = functools.partial(_res_dwa_kernel, n=n, c=c, d=d, h=h, w=w, k=k)
    vspec = pl.BlockSpec(memory_space=pltpu.MemorySpace.VMEM)

    out2d = pl.pallas_call(
        kernel,
        out_shape=jax.ShapeDtypeStruct((dh, lanes), x_ncdhw.dtype),
        in_specs=[vspec] * 7,
        out_specs=vspec,
        scratch_shapes=[scratch],
        compiler_params=pltpu.CompilerParams(vmem_limit_bytes=vmem_limit),
    )(x2d, w1l, b1l, bn1l, w2l, b2l, bn2l)

    return jnp.transpose(out2d.reshape(d, h, w, n, c), (3, 4, 0, 1, 2))


# ----------------------------------------------------------------------------
# Pure-JAX reference (NCDHW) used only for the self-check in __main__.
# (Includes ALL conv biases -- also validates the BN-cancellation of the W bias.)
# ----------------------------------------------------------------------------
def _shift_ref(v, off, axis):
    if off == 0:
        return v
    nax = v.shape[axis]
    zshape = list(v.shape)
    zshape[axis] = abs(off)
    z = jnp.zeros(zshape, v.dtype)
    if off > 0:
        return jnp.concatenate([jax.lax.slice_in_dim(v, off, nax, axis=axis), z], axis=axis)
    return jnp.concatenate([z, jax.lax.slice_in_dim(v, 0, nax + off, axis=axis)], axis=axis)


def _reference_block(x, w1, b1, bn1, w2, b2, bn2):
    def axial(v, taps, bias, axis):
        kk = taps.shape[0]
        out = jnp.zeros_like(v)
        for t in range(kk):
            out = out + _shift_ref(v, t - kk // 2, axis) * taps[t][None, :, None, None, None]
        return out + bias[None, :, None, None, None]

    def dwa(v, wt, bs):
        for ax in range(3):
            v = axial(v, wt[ax], bs[ax], axis=2 + ax)
        return v

    def bn_gelu(v, gb):
        mean = jnp.mean(v, axis=(0, 2, 3, 4), keepdims=True)
        var = jnp.mean((v - mean) ** 2, axis=(0, 2, 3, 4), keepdims=True)
        y = (v - mean) * jax.lax.rsqrt(var + BN_EPS)
        y = y * gb[0][None, :, None, None, None] + gb[1][None, :, None, None, None]
        return 0.5 * y * (1.0 + jax.lax.erf(y * _SQRT_HALF))

    hdn = bn_gelu(dwa(x, w1, b1), bn1)
    hdn = bn_gelu(dwa(hdn, w2, b2), bn2)
    return hdn + x


if __name__ == "__main__":
    N, C, D, H, W = 2, 16, 8, 8, 8
    k = KERNEL_SIZE

    key = jax.random.PRNGKey(0)
    ks = jax.random.split(key, 7)

    x = jax.random.normal(ks[0], (N, C, D, H, W), jnp.float32)
    scale = 1.0 / jnp.sqrt(jnp.float32(k))
    w1 = jax.random.normal(ks[1], (3, k, C), jnp.float32) * scale
    b1 = jax.random.normal(ks[2], (3, C), jnp.float32) * 0.05
    w2 = jax.random.normal(ks[3], (3, k, C), jnp.float32) * scale
    b2 = jax.random.normal(ks[4], (3, C), jnp.float32) * 0.05
    # BatchNorm3d affine params (rows: [gamma; beta]); perturbed from default init to
    # exercise the folded-BN path.
    bn1 = jnp.stack([1.0 + 0.1 * jax.random.normal(ks[5], (C,), jnp.float32),
                     0.1 * jax.random.normal(ks[6], (C,), jnp.float32)])
    bn2 = jnp.stack([1.0 - 0.1 * jax.random.normal(ks[6], (C,), jnp.float32),
                     0.1 * jax.random.normal(ks[5], (C,), jnp.float32)])

    out = jax.block_until_ready(res_dwa_conv_block(x, w1, b1, bn1, w2, b2, bn2))
    assert out.shape == x.shape and out.dtype == x.dtype

    ref = jax.block_until_ready(_reference_block(x, w1, b1, bn1, w2, b2, bn2))
    max_err = float(jnp.max(jnp.abs(out - ref)))
    assert max_err < 1e-3, f"kernel/reference mismatch: max abs err = {max_err}"
    assert bool(jnp.all(jnp.isfinite(out)))
    print("KERNEL_OK")
</pallas_src>

<mosaic_0001>
module attributes {stable_mosaic.version = 11 : i64} {
  func.func @_res_dwa_kernel(%arg0: memref<64x256xf32, #tpu.memory_space<vmem>>, %arg1: memref<3x3x256xf32, #tpu.memory_space<vmem>>, %arg2: memref<2x256xf32, #tpu.memory_space<vmem>>, %arg3: memref<2x256xf32, #tpu.memory_space<vmem>>, %arg4: memref<3x3x256xf32, #tpu.memory_space<vmem>>, %arg5: memref<2x256xf32, #tpu.memory_space<vmem>>, %arg6: memref<2x256xf32, #tpu.memory_space<vmem>>, %arg7: memref<64x256xf32, #tpu.memory_space<vmem>>, %arg8: memref<80x512xf32, #tpu.memory_space<vmem>>) attributes {dimension_semantics = [], scalar_prefetch = 0 : i64, scratch_operands = 1 : i64, tpu.core_type = #tpu.core_type<tc>} {
    %cst = arith.constant 0.000000e+00 : f32
    %0 = vector.broadcast %cst : f32 to vector<8x512xf32>
    %c0 = arith.constant 0 : index
    %c0_0 = arith.constant 0 : index
    %1 = vector.load %arg8[%c0, %c0_0] : memref<80x512xf32, #tpu.memory_space<vmem>>, vector<8x512xf32>
    tpu.vector_store %arg8[%c0, %c0_0], %0 {strides = array<i32>} : memref<80x512xf32, #tpu.memory_space<vmem>>, vector<8x512xf32>,
    %cst_1 = arith.constant 0.000000e+00 : f32
    %2 = vector.broadcast %cst_1 : f32 to vector<8x512xf32>
    %c72 = arith.constant 72 : index
    %c0_2 = arith.constant 0 : index
    %3 = vector.load %arg8[%c72, %c0_2] : memref<80x512xf32, #tpu.memory_space<vmem>>, vector<8x512xf32>
    tpu.vector_store %arg8[%c72, %c0_2], %2 {strides = array<i32>} : memref<80x512xf32, #tpu.memory_space<vmem>>, vector<8x512xf32>,
    %cst_3 = arith.constant 0.000000e+00 : f32
    %4 = vector.broadcast %cst_3 : f32 to vector<64x128xf32>
    %c8 = arith.constant 8 : index
    %c0_4 = arith.constant 0 : index
    %5 = vector.load %arg8[%c8, %c0_4] : memref<80x512xf32, #tpu.memory_space<vmem>>, vector<64x128xf32>
    tpu.vector_store %arg8[%c8, %c0_4], %4 {strides = array<i32>} : memref<80x512xf32, #tpu.memory_space<vmem>>, vector<64x128xf32>,
    %cst_5 = arith.constant 0.000000e+00 : f32
    %6 = vector.broadcast %cst_5 : f32 to vector<64x128xf32>
    %c8_6 = arith.constant 8 : index
    %c384 = arith.constant 384 : index
    %7 = vector.load %arg8[%c8_6, %c384] : memref<80x512xf32, #tpu.memory_space<vmem>>, vector<64x128xf32>
    tpu.vector_store %arg8[%c8_6, %c384], %6 {strides = array<i32>} : memref<80x512xf32, #tpu.memory_space<vmem>>, vector<64x128xf32>,
    %8 = tpu.iota {dimensions = array<i32: 0>} : vector<64x1xi32>
    %9 = arith.sitofp %8 : vector<64x1xi32> to vector<64x1xf32>
    %cst_7 = arith.constant 5.000000e-01 : f32
    %10 = vector.broadcast %cst_7 : f32 to vector<64x1xf32>
    %11 = arith.addf %9, %10 : vector<64x1xf32>
    %cst_8 = arith.constant 1.250000e-01 : f32
    %12 = vector.broadcast %cst_8 : f32 to vector<64x1xf32>
    %13 = arith.mulf %11, %12 : vector<64x1xf32>
    %14 = math.floor %13 : vector<64x1xf32>
    %cst_9 = arith.constant 8.000000e+00 : f32
    %15 = vector.broadcast %cst_9 : f32 to vector<64x1xf32>
    %16 = arith.mulf %14, %15 : vector<64x1xf32>
    %17 = arith.subf %9, %16 : vector<64x1xf32>
    %cst_10 = arith.constant -1.000000e+00 : f32
    %18 = vector.broadcast %cst_10 : f32 to vector<64x1xf32>
    %19 = arith.addf %17, %18 : vector<64x1xf32>
    %cst_11 = arith.constant 0.000000e+00 : f32
    %20 = vector.broadcast %cst_11 : f32 to vector<64x1xf32>
    %21 = arith.cmpf oge, %19, %20 : vector<64x1xf32>
    %cst_12 = arith.constant -1.000000e+00 : f32
    %22 = vector.broadcast %cst_12 : f32 to vector<64x1xf32>
    %23 = arith.addf %17, %22 : vector<64x1xf32>
    %cst_13 = arith.constant 7.000000e+00 : f32
    %24 = vector.broadcast %cst_13 : f32 to vector<64x1xf32>
    %25 = arith.cmpf ole, %23, %24 : vector<64x1xf32>
    %26 = arith.andi %21, %25 : vector<64x1xi1>
    %cst_14 = arith.constant 1.000000e+00 : f32
    %cst_15 = arith.constant 0.000000e+00 : f32
    %27 = vector.broadcast %cst_14 : f32 to vector<64x1xf32>
    %28 = vector.broadcast %cst_15 : f32 to vector<64x1xf32>
    %29 = arith.select %26, %27, %28 : vector<64x1xi1>, vector<64x1xf32>
    %cst_16 = arith.constant 1.000000e+00 : f32
    %30 = vector.broadcast %cst_16 : f32 to vector<64x1xf32>
    %31 = arith.addf %17, %30 : vector<64x1xf32>
    %cst_17 = arith.constant 0.000000e+00 : f32
    %32 = vector.broadcast %cst_17 : f32 to vector<64x1xf32>
    %33 = arith.cmpf oge, %31, %32 : vector<64x1xf32>
    %cst_18 = arith.constant 1.000000e+00 : f32
    %34 = vector.broadcast %cst_18 : f32 to vector<64x1xf32>
    %35 = arith.addf %17, %34 : vector<64x1xf32>
    %cst_19 = arith.constant 7.000000e+00 : f32
    %36 = vector.broadcast %cst_19 : f32 to vector<64x1xf32>
    %37 = arith.cmpf ole, %35, %36 : vector<64x1xf32>
    %38 = arith.andi %33, %37 : vector<64x1xi1>
    %cst_20 = arith.constant 1.000000e+00 : f32
    %cst_21 = arith.constant 0.000000e+00 : f32
    %39 = vector.broadcast %cst_20 : f32 to vector<64x1xf32>
    %40 = vector.broadcast %cst_21 : f32 to vector<64x1xf32>
    %41 = arith.select %38, %39, %40 : vector<64x1xi1>, vector<64x1xf32>
    %c0_22 = arith.constant 0 : index
    %c0_23 = arith.constant 0 : index
    %42 = vector.load %arg0[%c0_22, %c0_23] : memref<64x256xf32, #tpu.memory_space<vmem>>, vector<64x256xf32>
    %c0_24 = arith.constant 0 : index
    %c0_25 = arith.constant 0 : index
    %c0_26 = arith.constant 0 : index
    %43 = vector.load %arg1[%c0_24, %c0_25, %c0_26] : memref<3x3x256xf32, #tpu.memory_space<vmem>>, vector<3x3x256xf32>
    %c0_27 = arith.constant 0 : index
    %c0_28 = arith.constant 0 : index
    %44 = vector.load %arg2[%c0_27, %c0_28] : memref<2x256xf32, #tpu.memory_space<vmem>>, vector<2x256xf32>
    %45 = vector.extract_strided_slice %43 {offsets = [0, 0, 0], sizes = [1, 3, 256], strides = [1, 1, 1]} : vector<3x3x256xf32> to vector<1x3x256xf32>
    %46 = vector.shape_cast %45 : vector<1x3x256xf32> to vector<3x256xf32>
    %47 = vector.extract_strided_slice %44 {offsets = [0, 0], sizes = [1, 256], strides = [1, 1]} : vector<2x256xf32> to vector<1x256xf32>
    %c8_29 = arith.constant 8 : index
    %c128 = arith.constant 128 : index
    %48 = vector.load %arg8[%c8_29, %c128] : memref<80x512xf32, #tpu.memory_space<vmem>>, vector<64x256xf32>
    tpu.vector_store %arg8[%c8_29, %c128], %42 {strides = array<i32>} : memref<80x512xf32, #tpu.memory_space<vmem>>, vector<64x256xf32>,
    %49 = vector.extract_strided_slice %46 {offsets = [1, 0], sizes = [1, 256], strides = [1, 1]} : vector<3x256xf32> to vector<1x256xf32>
    %50 = vector.broadcast %49 : vector<1x256xf32> to vector<64x256xf32>
    %51 = arith.mulf %42, %50 : vector<64x256xf32>
    %c0_30 = arith.constant 0 : index
    %c128_31 = arith.constant 128 : index
    %52 = vector.load %arg8[%c0_30, %c128_31] : memref<80x512xf32, #tpu.memory_space<vmem>>, vector<64x256xf32>
    %53 = vector.extract_strided_slice %46 {offsets = [0, 0], sizes = [1, 256], strides = [1, 1]} : vector<3x256xf32> to vector<1x256xf32>
    %54 = vector.broadcast %53 : vector<1x256xf32> to vector<64x256xf32>
    %55 = arith.mulf %52, %54 : vector<64x256xf32>
    %56 = arith.addf %51, %55 : vector<64x256xf32>
    %c16 = arith.constant 16 : index
    %c128_32 = arith.constant 128 : index
    %57 = vector.load %arg8[%c16, %c128_32] : memref<80x512xf32, #tpu.memory_space<vmem>>, vector<64x256xf32>
    %58 = vector.extract_strided_slice %46 {offsets = [2, 0], sizes = [1, 256], strides = [1, 1]} : vector<3x256xf32> to vector<1x256xf32>
    %59 = vector.broadcast %58 : vector<1x256xf32> to vector<64x256xf32>
    %60 = arith.mulf %57, %59 : vector<64x256xf32>
    %61 = arith.addf %56, %60 : vector<64x256xf32>
    %62 = vector.broadcast %47 : vector<1x256xf32> to vector<64x256xf32>
    %63 = arith.addf %61, %62 : vector<64x256xf32>
    %64 = vector.extract_strided_slice %43 {offsets = [1, 0, 0], sizes = [1, 3, 256], strides = [1, 1, 1]} : vector<3x3x256xf32> to vector<1x3x256xf32>
    %65 = vector.shape_cast %64 : vector<1x3x256xf32> to vector<3x256xf32>
    %66 = vector.extract_strided_slice %44 {offsets = [1, 0], sizes = [1, 256], strides = [1, 1]} : vector<2x256xf32> to vector<1x256xf32>
    %c8_33 = arith.constant 8 : index
    %c128_34 = arith.constant 128 : index
    %67 = vector.load %arg8[%c8_33, %c128_34] : memref<80x512xf32, #tpu.memory_space<vmem>>, vector<64x256xf32>
    tpu.vector_store %arg8[%c8_33, %c128_34], %63 {strides = array<i32>} : memref<80x512xf32, #tpu.memory_space<vmem>>, vector<64x256xf32>,
    %68 = vector.extract_strided_slice %65 {offsets = [1, 0], sizes = [1, 256], strides = [1, 1]} : vector<3x256xf32> to vector<1x256xf32>
    %69 = vector.broadcast %68 : vector<1x256xf32> to vector<64x256xf32>
    %70 = arith.mulf %63, %69 : vector<64x256xf32>
    %c7 = arith.constant 7 : index
    %c128_35 = arith.constant 128 : index
    %71 = vector.load %arg8[%c7, %c128_35] : memref<80x512xf32, #tpu.memory_space<vmem>>, vector<64x256xf32>
    %72 = vector.broadcast %29 : vector<64x1xf32> to vector<64x256xf32>
    %73 = arith.mulf %71, %72 : vector<64x256xf32>
    %74 = vector.extract_strided_slice %65 {offsets = [0, 0], sizes = [1, 256], strides = [1, 1]} : vector<3x256xf32> to vector<1x256xf32>
    %75 = vector.broadcast %74 : vector<1x256xf32> to vector<64x256xf32>
    %76 = arith.mulf %73, %75 : vector<64x256xf32>
    %77 = arith.addf %70, %76 : vector<64x256xf32>
    %c9 = arith.constant 9 : index
    %c128_36 = arith.constant 128 : index
    %78 = vector.load %arg8[%c9, %c128_36] : memref<80x512xf32, #tpu.memory_space<vmem>>, vector<64x256xf32>
    %79 = vector.broadcast %41 : vector<64x1xf32> to vector<64x256xf32>
    %80 = arith.mulf %78, %79 : vector<64x256xf32>
    %81 = vector.extract_strided_slice %65 {offsets = [2, 0], sizes = [1, 256], strides = [1, 1]} : vector<3x256xf32> to vector<1x256xf32>
    %82 = vector.broadcast %81 : vector<1x256xf32> to vector<64x256xf32>
    %83 = arith.mulf %80, %82 : vector<64x256xf32>
    %84 = arith.addf %77, %83 : vector<64x256xf32>
    %85 = vector.broadcast %66 : vector<1x256xf32> to vector<64x256xf32>
    %86 = arith.addf %84, %85 : vector<64x256xf32>
    %87 = vector.extract_strided_slice %43 {offsets = [2, 0, 0], sizes = [1, 3, 256], strides = [1, 1, 1]} : vector<3x3x256xf32> to vector<1x3x256xf32>
    %88 = vector.shape_cast %87 : vector<1x3x256xf32> to vector<3x256xf32>
    %c8_37 = arith.constant 8 : index
    %c128_38 = arith.constant 128 : index
    %89 = vector.load %arg8[%c8_37, %c128_38] : memref<80x512xf32, #tpu.memory_space<vmem>>, vector<64x256xf32>
    tpu.vector_store %arg8[%c8_37, %c128_38], %86 {strides = array<i32>} : memref<80x512xf32, #tpu.memory_space<vmem>>, vector<64x256xf32>,
    %90 = vector.extract_strided_slice %88 {offsets = [1, 0], sizes = [1, 256], strides = [1, 1]} : vector<3x256xf32> to vector<1x256xf32>
    %91 = vector.broadcast %90 : vector<1x256xf32> to vector<64x256xf32>
    %92 = arith.mulf %86, %91 : vector<64x256xf32>
    %c8_39 = arith.constant 8 : index
    %c96 = arith.constant 96 : index
    %93 = vector.load %arg8[%c8_39, %c96] : memref<80x512xf32, #tpu.memory_space<vmem>>, vector<64x256xf32>
    %94 = vector.extract_strided_slice %88 {offsets = [0, 0], sizes = [1, 256], strides = [1, 1]} : vector<3x256xf32> to vector<1x256xf32>
    %95 = vector.broadcast %94 : vector<1x256xf32> to vector<64x256xf32>
    %96 = arith.mulf %93, %95 : vector<64x256xf32>
    %97 = arith.addf %92, %96 : vector<64x256xf32>
    %c8_40 = arith.constant 8 : index
    %c160 = arith.constant 160 : index
    %98 = vector.load %arg8[%c8_40, %c160] : memref<80x512xf32, #tpu.memory_space<vmem>>, vector<64x256xf32>
    %99 = vector.extract_strided_slice %88 {offsets = [2, 0], sizes = [1, 256], strides = [1, 1]} : vector<3x256xf32> to vector<1x256xf32>
    %100 = vector.broadcast %99 : vector<1x256xf32> to vector<64x256xf32>
    %101 = arith.mulf %98, %100 : vector<64x256xf32>
    %102 = arith.addf %97, %101 : vector<64x256xf32>
    %c0_41 = arith.constant 0 : index
    %c0_42 = arith.constant 0 : index
    %103 = vector.load %arg3[%c0_41, %c0_42] : memref<2x256xf32, #tpu.memory_space<vmem>>, vector<2x256xf32>
    %cst_43 = arith.constant dense<0.000000e+00> : vector<256xf32>
    %104 = vector.multi_reduction <add>, %102, %cst_43 [0] : vector<64x256xf32> to vector<256xf32>
    %105 = vector.shape_cast %104 : vector<256xf32> to vector<1x256xf32>
    %c16_i32 = arith.constant 16 : i32
    %106 = tpu.dynamic_rotate %105 by %c16_i32 dim 1 : vector<1x256xf32>, i32 -> vector<1x256xf32>
    %107 = arith.addf %105, %106 : vector<1x256xf32>
    %c32_i32 = arith.constant 32 : i32
    %108 = tpu.dynamic_rotate %107 by %c32_i32 dim 1 : vector<1x256xf32>, i32 -> vector<1x256xf32>
    %109 = arith.addf %107, %108 : vector<1x256xf32>
    %c64_i32 = arith.constant 64 : i32
    %110 = tpu.dynamic_rotate %109 by %c64_i32 dim 1 : vector<1x256xf32>, i32 -> vector<1x256xf32>
    %111 = arith.addf %109, %110 : vector<1x256xf32>
    %c128_i32 = arith.constant 128 : i32
    %112 = tpu.dynamic_rotate %111 by %c128_i32 dim 1 : vector<1x256xf32>, i32 -> vector<1x256xf32>
    %113 = arith.addf %111, %112 : vector<1x256xf32>
    %114 = arith.mulf %102, %102 : vector<64x256xf32>
    %cst_44 = arith.constant dense<0.000000e+00> : vector<256xf32>
    %115 = vector.multi_reduction <add>, %114, %cst_44 [0] : vector<64x256xf32> to vector<256xf32>
    %116 = vector.shape_cast %115 : vector<256xf32> to vector<1x256xf32>
    %c16_i32_45 = arith.constant 16 : i32
    %117 = tpu.dynamic_rotate %116 by %c16_i32_45 dim 1 : vector<1x256xf32>, i32 -> vector<1x256xf32>
    %118 = arith.addf %116, %117 : vector<1x256xf32>
    %c32_i32_46 = arith.constant 32 : i32
    %119 = tpu.dynamic_rotate %118 by %c32_i32_46 dim 1 : vector<1x256xf32>, i32 -> vector<1x256xf32>
    %120 = arith.addf %118, %119 : vector<1x256xf32>
    %c64_i32_47 = arith.constant 64 : i32
    %121 = tpu.dynamic_rotate %120 by %c64_i32_47 dim 1 : vector<1x256xf32>, i32 -> vector<1x256xf32>
    %122 = arith.addf %120, %121 : vector<1x256xf32>
    %c128_i32_48 = arith.constant 128 : i32
    %123 = tpu.dynamic_rotate %122 by %c128_i32_48 dim 1 : vector<1x256xf32>, i32 -> vector<1x256xf32>
    %124 = arith.addf %122, %123 : vector<1x256xf32>
    %cst_49 = arith.constant 9.765625E-4 : f32
    %125 = vector.broadcast %cst_49 : f32 to vector<1x256xf32>
    %126 = arith.mulf %113, %125 : vector<1x256xf32>
    %cst_50 = arith.constant 9.765625E-4 : f32
    %127 = vector.broadcast %cst_50 : f32 to vector<1x256xf32>
    %128 = arith.mulf %124, %127 : vector<1x256xf32>
    %129 = arith.mulf %126, %126 : vector<1x256xf32>
    %130 = arith.subf %128, %129 : vector<1x256xf32>
    %cst_51 = arith.constant 0.000000e+00 : f32
    %131 = vector.broadcast %cst_51 : f32 to vector<1x256xf32>
    %132 = arith.maximumf %130, %131 : vector<1x256xf32>
    %133 = vector.extract_strided_slice %103 {offsets = [0, 0], sizes = [1, 256], strides = [1, 1]} : vector<2x256xf32> to vector<1x256xf32>
    %cst_52 = arith.constant 9.99999974E-6 : f32
    %134 = vector.broadcast %cst_52 : f32 to vector<1x256xf32>
    %135 = arith.addf %132, %134 : vector<1x256xf32>
    %136 = math.rsqrt %135 : vector<1x256xf32>
    %137 = arith.mulf %133, %136 : vector<1x256xf32>
    %138 = vector.extract_strided_slice %103 {offsets = [1, 0], sizes = [1, 256], strides = [1, 1]} : vector<2x256xf32> to vector<1x256xf32>
    %139 = arith.mulf %126, %137 : vector<1x256xf32>
    %140 = arith.subf %138, %139 : vector<1x256xf32>
    %141 = vector.broadcast %137 : vector<1x256xf32> to vector<64x256xf32>
    %142 = arith.mulf %102, %141 : vector<64x256xf32>
    %143 = vector.broadcast %140 : vector<1x256xf32> to vector<64x256xf32>
    %144 = arith.addf %142, %143 : vector<64x256xf32>
    %cst_53 = arith.constant 5.000000e-01 : f32
    %145 = vector.broadcast %cst_53 : f32 to vector<64x256xf32>
    %146 = arith.mulf %145, %144 : vector<64x256xf32>
    %cst_54 = arith.constant 0.707106769 : f32
    %147 = vector.broadcast %cst_54 : f32 to vector<64x256xf32>
    %148 = arith.mulf %144, %147 : vector<64x256xf32>
    %149 = math.erf %148 : vector<64x256xf32>
    %cst_55 = arith.constant 1.000000e+00 : f32
    %150 = vector.broadcast %cst_55 : f32 to vector<64x256xf32>
    %151 = arith.addf %150, %149 : vector<64x256xf32>
    %152 = arith.mulf %146, %151 : vector<64x256xf32>
    %c0_56 = arith.constant 0 : index
    %c0_57 = arith.constant 0 : index
    %c0_58 = arith.constant 0 : index
    %153 = vector.load %arg4[%c0_56, %c0_57, %c0_58] : memref<3x3x256xf32, #tpu.memory_space<vmem>>, vector<3x3x256xf32>
    %c0_59 = arith.constant 0 : index
    %c0_60 = arith.constant 0 : index
    %154 = vector.load %arg5[%c0_59, %c0_60] : memref<2x256xf32, #tpu.memory_space<vmem>>, vector<2x256xf32>
    %155 = vector.extract_strided_slice %153 {offsets = [0, 0, 0], sizes = [1, 3, 256], strides = [1, 1, 1]} : vector<3x3x256xf32> to vector<1x3x256xf32>
    %156 = vector.shape_cast %155 : vector<1x3x256xf32> to vector<3x256xf32>
    %157 = vector.extract_strided_slice %154 {offsets = [0, 0], sizes = [1, 256], strides = [1, 1]} : vector<2x256xf32> to vector<1x256xf32>
    %c8_61 = arith.constant 8 : index
    %c128_62 = arith.constant 128 : index
    %158 = vector.load %arg8[%c8_61, %c128_62] : memref<80x512xf32, #tpu.memory_space<vmem>>, vector<64x256xf32>
    tpu.vector_store %arg8[%c8_61, %c128_62], %152 {strides = array<i32>} : memref<80x512xf32, #tpu.memory_space<vmem>>, vector<64x256xf32>,
    %159 = vector.extract_strided_slice %156 {offsets = [1, 0], sizes = [1, 256], strides = [1, 1]} : vector<3x256xf32> to vector<1x256xf32>
    %160 = vector.broadcast %159 : vector<1x256xf32> to vector<64x256xf32>
    %161 = arith.mulf %152, %160 : vector<64x256xf32>
    %c0_63 = arith.constant 0 : index
    %c128_64 = arith.constant 128 : index
    %162 = vector.load %arg8[%c0_63, %c128_64] : memref<80x512xf32, #tpu.memory_space<vmem>>, vector<64x256xf32>
    %163 = vector.extract_strided_slice %156 {offsets = [0, 0], sizes = [1, 256], strides = [1, 1]} : vector<3x256xf32> to vector<1x256xf32>
    %164 = vector.broadcast %163 : vector<1x256xf32> to vector<64x256xf32>
    %165 = arith.mulf %162, %164 : vector<64x256xf32>
    %166 = arith.addf %161, %165 : vector<64x256xf32>
    %c16_65 = arith.constant 16 : index
    %c128_66 = arith.constant 128 : index
    %167 = vector.load %arg8[%c16_65, %c128_66] : memref<80x512xf32, #tpu.memory_space<vmem>>, vector<64x256xf32>
    %168 = vector.extract_strided_slice %156 {offsets = [2, 0], sizes = [1, 256], strides = [1, 1]} : vector<3x256xf32> to vector<1x256xf32>
    %169 = vector.broadcast %168 : vector<1x256xf32> to vector<64x256xf32>
    %170 = arith.mulf %167, %169 : vector<64x256xf32>
    %171 = arith.addf %166, %170 : vector<64x256xf32>
    %172 = vector.broadcast %157 : vector<1x256xf32> to vector<64x256xf32>
    %173 = arith.addf %171, %172 : vector<64x256xf32>
    %174 = vector.extract_strided_slice %153 {offsets = [1, 0, 0], sizes = [1, 3, 256], strides = [1, 1, 1]} : vector<3x3x256xf32> to vector<1x3x256xf32>
    %175 = vector.shape_cast %174 : vector<1x3x256xf32> to vector<3x256xf32>
    %176 = vector.extract_strided_slice %154 {offsets = [1, 0], sizes = [1, 256], strides = [1, 1]} : vector<2x256xf32> to vector<1x256xf32>
    %c8_67 = arith.constant 8 : index
    %c128_68 = arith.constant 128 : index
    %177 = vector.load %arg8[%c8_67, %c128_68] : memref<80x512xf32, #tpu.memory_space<vmem>>, vector<64x256xf32>
    tpu.vector_store %arg8[%c8_67, %c128_68], %173 {strides = array<i32>} : memref<80x512xf32, #tpu.memory_space<vmem>>, vector<64x256xf32>,
    %178 = vector.extract_strided_slice %175 {offsets = [1, 0], sizes = [1, 256], strides = [1, 1]} : vector<3x256xf32> to vector<1x256xf32>
    %179 = vector.broadcast %178 : vector<1x256xf32> to vector<64x256xf32>
    %180 = arith.mulf %173, %179 : vector<64x256xf32>
    %c7_69 = arith.constant 7 : index
    %c128_70 = arith.constant 128 : index
    %181 = vector.load %arg8[%c7_69, %c128_70] : memref<80x512xf32, #tpu.memory_space<vmem>>, vector<64x256xf32>
    %182 = vector.broadcast %29 : vector<64x1xf32> to vector<64x256xf32>
    %183 = arith.mulf %181, %182 : vector<64x256xf32>
    %184 = vector.extract_strided_slice %175 {offsets = [0, 0], sizes = [1, 256], strides = [1, 1]} : vector<3x256xf32> to vector<1x256xf32>
    %185 = vector.broadcast %184 : vector<1x256xf32> to vector<64x256xf32>
    %186 = arith.mulf %183, %185 : vector<64x256xf32>
    %187 = arith.addf %180, %186 : vector<64x256xf32>
    %c9_71 = arith.constant 9 : index
    %c128_72 = arith.constant 128 : index
    %188 = vector.load %arg8[%c9_71, %c128_72] : memref<80x512xf32, #tpu.memory_space<vmem>>, vector<64x256xf32>
    %189 = vector.broadcast %41 : vector<64x1xf32> to vector<64x256xf32>
    %190 = arith.mulf %188, %189 : vector<64x256xf32>
    %191 = vector.extract_strided_slice %175 {offsets = [2, 0], sizes = [1, 256], strides = [1, 1]} : vector<3x256xf32> to vector<1x256xf32>
    %192 = vector.broadcast %191 : vector<1x256xf32> to vector<64x256xf32>
    %193 = arith.mulf %190, %192 : vector<64x256xf32>
    %194 = arith.addf %187, %193 : vector<64x256xf32>
    %195 = vector.broadcast %176 : vector<1x256xf32> to vector<64x256xf32>
    %196 = arith.addf %194, %195 : vector<64x256xf32>
    %197 = vector.extract_strided_slice %153 {offsets = [2, 0, 0], sizes = [1, 3, 256], strides = [1, 1, 1]} : vector<3x3x256xf32> to vector<1x3x256xf32>
    %198 = vector.shape_cast %197 : vector<1x3x256xf32> to vector<3x256xf32>
    %c8_73 = arith.constant 8 : index
    %c128_74 = arith.constant 128 : index
    %199 = vector.load %arg8[%c8_73, %c128_74] : memref<80x512xf32, #tpu.memory_space<vmem>>, vector<64x256xf32>
    tpu.vector_store %arg8[%c8_73, %c128_74], %196 {strides = array<i32>} : memref<80x512xf32, #tpu.memory_space<vmem>>, vector<64x256xf32>,
    %200 = vector.extract_strided_slice %198 {offsets = [1, 0], sizes = [1, 256], strides = [1, 1]} : vector<3x256xf32> to vector<1x256xf32>
    %201 = vector.broadcast %200 : vector<1x256xf32> to vector<64x256xf32>
    %202 = arith.mulf %196, %201 : vector<64x256xf32>
    %c8_75 = arith.constant 8 : index
    %c96_76 = arith.constant 96 : index
    %203 = vector.load %arg8[%c8_75, %c96_76] : memref<80x512xf32, #tpu.memory_space<vmem>>, vector<64x256xf32>
    %204 = vector.extract_strided_slice %198 {offsets = [0, 0], sizes = [1, 256], strides = [1, 1]} : vector<3x256xf32> to vector<1x256xf32>
    %205 = vector.broadcast %204 : vector<1x256xf32> to vector<64x256xf32>
    %206 = arith.mulf %203, %205 : vector<64x256xf32>
    %207 = arith.addf %202, %206 : vector<64x256xf32>
    %c8_77 = arith.constant 8 : index
    %c160_78 = arith.constant 160 : index
    %208 = vector.load %arg8[%c8_77, %c160_78] : memref<80x512xf32, #tpu.memory_space<vmem>>, vector<64x256xf32>
    %209 = vector.extract_strided_slice %198 {offsets = [2, 0], sizes = [1, 256], strides = [1, 1]} : vector<3x256xf32> to vector<1x256xf32>
    %210 = vector.broadcast %209 : vector<1x256xf32> to vector<64x256xf32>
    %211 = arith.mulf %208, %210 : vector<64x256xf32>
    %212 = arith.addf %207, %211 : vector<64x256xf32>
    %c0_79 = arith.constant 0 : index
    %c0_80 = arith.constant 0 : index
    %213 = vector.load %arg6[%c0_79, %c0_80] : memref<2x256xf32, #tpu.memory_space<vmem>>, vector<2x256xf32>
    %cst_81 = arith.constant dense<0.000000e+00> : vector<256xf32>
    %214 = vector.multi_reduction <add>, %212, %cst_81 [0] : vector<64x256xf32> to vector<256xf32>
    %215 = vector.shape_cast %214 : vector<256xf32> to vector<1x256xf32>
    %c16_i32_82 = arith.constant 16 : i32
    %216 = tpu.dynamic_rotate %215 by %c16_i32_82 dim 1 : vector<1x256xf32>, i32 -> vector<1x256xf32>
    %217 = arith.addf %215, %216 : vector<1x256xf32>
    %c32_i32_83 = arith.constant 32 : i32
    %218 = tpu.dynamic_rotate %217 by %c32_i32_83 dim 1 : vector<1x256xf32>, i32 -> vector<1x256xf32>
    %219 = arith.addf %217, %218 : vector<1x256xf32>
    %c64_i32_84 = arith.constant 64 : i32
    %220 = tpu.dynamic_rotate %219 by %c64_i32_84 dim 1 : vector<1x256xf32>, i32 -> vector<1x256xf32>
    %221 = arith.addf %219, %220 : vector<1x256xf32>
    %c128_i32_85 = arith.constant 128 : i32
    %222 = tpu.dynamic_rotate %221 by %c128_i32_85 dim 1 : vector<1x256xf32>, i32 -> vector<1x256xf32>
    %223 = arith.addf %221, %222 : vector<1x256xf32>
    %224 = arith.mulf %212, %212 : vector<64x256xf32>
    %cst_86 = arith.constant dense<0.000000e+00> : vector<256xf32>
    %225 = vector.multi_reduction <add>, %224, %cst_86 [0] : vector<64x256xf32> to vector<256xf32>
    %226 = vector.shape_cast %225 : vector<256xf32> to vector<1x256xf32>
    %c16_i32_87 = arith.constant 16 : i32
    %227 = tpu.dynamic_rotate %226 by %c16_i32_87 dim 1 : vector<1x256xf32>, i32 -> vector<1x256xf32>
    %228 = arith.addf %226, %227 : vector<1x256xf32>
    %c32_i32_88 = arith.constant 32 : i32
    %229 = tpu.dynamic_rotate %228 by %c32_i32_88 dim 1 : vector<1x256xf32>, i32 -> vector<1x256xf32>
    %230 = arith.addf %228, %229 : vector<1x256xf32>
    %c64_i32_89 = arith.constant 64 : i32
    %231 = tpu.dynamic_rotate %230 by %c64_i32_89 dim 1 : vector<1x256xf32>, i32 -> vector<1x256xf32>
    %232 = arith.addf %230, %231 : vector<1x256xf32>
    %c128_i32_90 = arith.constant 128 : i32
    %233 = tpu.dynamic_rotate %232 by %c128_i32_90 dim 1 : vector<1x256xf32>, i32 -> vector<1x256xf32>
    %234 = arith.addf %232, %233 : vector<1x256xf32>
    %cst_91 = arith.constant 9.765625E-4 : f32
    %235 = vector.broadcast %cst_91 : f32 to vector<1x256xf32>
    %236 = arith.mulf %223, %235 : vector<1x256xf32>
    %cst_92 = arith.constant 9.765625E-4 : f32
    %237 = vector.broadcast %cst_92 : f32 to vector<1x256xf32>
    %238 = arith.mulf %234, %237 : vector<1x256xf32>
    %239 = arith.mulf %236, %236 : vector<1x256xf32>
    %240 = arith.subf %238, %239 : vector<1x256xf32>
    %cst_93 = arith.constant 0.000000e+00 : f32
    %241 = vector.broadcast %cst_93 : f32 to vector<1x256xf32>
    %242 = arith.maximumf %240, %241 : vector<1x256xf32>
    %243 = vector.extract_strided_slice %213 {offsets = [0, 0], sizes = [1, 256], strides = [1, 1]} : vector<2x256xf32> to vector<1x256xf32>
    %cst_94 = arith.constant 9.99999974E-6 : f32
    %244 = vector.broadcast %cst_94 : f32 to vector<1x256xf32>
    %245 = arith.addf %242, %244 : vector<1x256xf32>
    %246 = math.rsqrt %245 : vector<1x256xf32>
    %247 = arith.mulf %243, %246 : vector<1x256xf32>
    %248 = vector.extract_strided_slice %213 {offsets = [1, 0], sizes = [1, 256], strides = [1, 1]} : vector<2x256xf32> to vector<1x256xf32>
    %249 = arith.mulf %236, %247 : vector<1x256xf32>
    %250 = arith.subf %248, %249 : vector<1x256xf32>
    %251 = vector.broadcast %247 : vector<1x256xf32> to vector<64x256xf32>
    %252 = arith.mulf %212, %251 : vector<64x256xf32>
    %253 = vector.broadcast %250 : vector<1x256xf32> to vector<64x256xf32>
    %254 = arith.addf %252, %253 : vector<64x256xf32>
    %cst_95 = arith.constant 5.000000e-01 : f32
    %255 = vector.broadcast %cst_95 : f32 to vector<64x256xf32>
    %256 = arith.mulf %255, %254 : vector<64x256xf32>
    %cst_96 = arith.constant 0.707106769 : f32
    %257 = vector.broadcast %cst_96 : f32 to vector<64x256xf32>
    %258 = arith.mulf %254, %257 : vector<64x256xf32>
    %259 = math.erf %258 : vector<64x256xf32>
    %cst_97 = arith.constant 1.000000e+00 : f32
    %260 = vector.broadcast %cst_97 : f32 to vector<64x256xf32>
    %261 = arith.addf %260, %259 : vector<64x256xf32>
    %262 = arith.mulf %256, %261 : vector<64x256xf32>
    %c0_98 = arith.constant 0 : index
    %c0_99 = arith.constant 0 : index
    %263 = vector.load %arg0[%c0_98, %c0_99] : memref<64x256xf32, #tpu.memory_space<vmem>>, vector<64x256xf32>
    %264 = arith.addf %262, %263 : vector<64x256xf32>
    %c0_100 = arith.constant 0 : index
    %c0_101 = arith.constant 0 : index
    %265 = vector.load %arg7[%c0_100, %c0_101] : memref<64x256xf32, #tpu.memory_space<vmem>>, vector<64x256xf32>
    tpu.vector_store %arg7[%c0_100, %c0_101], %264 {strides = array<i32>} : memref<64x256xf32, #tpu.memory_space<vmem>>, vector<64x256xf32>,
    return
  }
}

</mosaic_0001>

<llo_original>
// kernel: tpu_custom_call.1
$region0: #{tpu_custom_call.1}
  #allocation0 [shape = 'u32[]', space=smem, size = 0x4, offset = 0x4, fixed_abs, tag = 'smem constant byte address 0x4 - core index']
  #allocation1 [shape = 'u32[144,128]{1,0:T(1,128)}', space=vmem, size = 0x12000, scoped, tag = 'internal scratch']
  #allocation2 [shape = 'f32[80,512]{1,0:T(8,128)}', space=vmem, size = 0x28000, scoped, tag = 'scratch operand']
  %s0 = inlined_call_operand.hbm [shape: f32[64,256], index: 0, kind: input, shape index: {}]
  %s1 = inlined_call_operand.hbm [shape: f32[3,3,256], index: 1, kind: input, shape index: {}]
  %s2 = inlined_call_operand.hbm [shape: f32[2,256], index: 2, kind: input, shape index: {}]
  %s3 = inlined_call_operand.vmem [shape: f32[2,256], index: 3, kind: input, shape index: {}]
  %s4 = inlined_call_operand.hbm [shape: f32[3,3,256], index: 4, kind: input, shape index: {}]
  %s5 = inlined_call_operand.vmem [shape: f32[2,256], index: 5, kind: input, shape index: {}]
  %s6 = inlined_call_operand.hbm [shape: f32[2,256], index: 6, kind: input, shape index: {}]
  %s7 = inlined_call_operand.hbm [shape: f32[64,256], index: 7, kind: output, shape index: {}]
  %s8 = sld [smem:[#allocation0]]
  $region58: #{tpu_custom_call.1} parent=0
    _
  %s10 = ssub.s32 1, %s8
  %s11 = scalar_select 0, %s10, %s8
  $region1: #{tpu_custom_call.1} parent=0
    #allocation3 [shape = 'u8[65536]{0}', space=vmem, size = 0x10000, scoped, tag = 'input window, operand 0, single buffered']
    #allocation4 [shape = 's32[1]{0}', space=sflag, size = 0x4, scoped, tag = 'scoped memory for tpu_custom_call.1']
    #allocation5 [shape = 's32[1]{0}', space=sflag, size = 0x4, scoped, tag = 'scoped memory for tpu_custom_call.1']
    #allocation6 [shape = 'u8[12288]{0}', space=vmem, size = 0x3000, scoped, tag = 'input window, operand 1, single buffered']
    #allocation7 [shape = 's32[1]{0}', space=sflag, size = 0x4, scoped, tag = 'scoped memory for tpu_custom_call.1']
    #allocation8 [shape = 'u8[2048]{0}', space=vmem, size = 0x800, scoped, tag = 'input window, operand 2, single buffered']
    #allocation9 [shape = 'u8[12288]{0}', space=vmem, size = 0x3000, scoped, tag = 'input window, operand 4, single buffered']
    #allocation10 [shape = 's32[1]{0}', space=sflag, size = 0x4, scoped, tag = 'scoped memory for tpu_custom_call.1']
    #allocation11 [shape = 'u8[2048]{0}', space=vmem, size = 0x800, scoped, tag = 'input window, operand 6, single buffered']
    #allocation12 [shape = 'u8[65536]{0}', space=vmem, size = 0x10000, scoped, tag = 'output window, operand 0, single buffered']
    %12 = vsyncpa [#allocation4], 0
    %13 = vsyncpa [#allocation7], 0
    %14 = vsyncpa [#allocation10], 0
    %15 = vsyncpa [#allocation5], 0
    // Predicated region
    $region2: #{tpu_custom_call.1} parent=1 // pred_check
      _
    $region3: #{tpu_custom_call.1} parent=1 // pred_check_branch
      %17 = sbr.rel (0) target = $region5
    $region4: #{tpu_custom_call.1} parent=1 // pred_region
      %s19 = ssub.s32 2048, 2048
      %20 = vsyncadd [#allocation4], %s19
      %s21 = sshll.u32 [#allocation3], 4
      %s22 = int_to_ptr.vmem [resolvable:$true] %s21
      %27 = dma.hbm_to_vmem [thread:$0]  %s0, 2048, %s22, [#allocation4], 256, 256, 16
    $region5: #{tpu_custom_call.1} parent=1 // pred_fallthru
      _
    // Predicated region
    $region6: #{tpu_custom_call.1} parent=1 // pred_check
      _
    $region7: #{tpu_custom_call.1} parent=1 // pred_check_branch
      %29 = sbr.rel (0) target = $region9
    $region8: #{tpu_custom_call.1} parent=1 // pred_region
      %s31 = ssub.s32 384, 384
      %32 = vsyncadd [#allocation7], %s31
      %s33 = sshll.u32 [#allocation6], 4
      %s34 = int_to_ptr.vmem [resolvable:$true] %s33
      %39 = dma.hbm_to_vmem [thread:$0]  %s1, 384, %s34, [#allocation7], 128, 128, 8
    $region9: #{tpu_custom_call.1} parent=1 // pred_fallthru
      _
    // Predicated region
    $region10: #{tpu_custom_call.1} parent=1 // pred_check
      _
    $region11: #{tpu_custom_call.1} parent=1 // pred_check_branch
      %41 = sbr.rel (0) target = $region13
    $region12: #{tpu_custom_call.1} parent=1 // pred_region
      %s43 = ssub.s32 64, 64
      %44 = vsyncadd [#allocation7], %s43
      %s46 = sshll.u32 [#allocation8], 4
      %s47 = int_to_ptr.vmem [resolvable:$true] %s46
      %49 = dma.hbm_to_vmem [thread:$0]  %s2, 64, %s47, [#allocation7]
    $region13: #{tpu_custom_call.1} parent=1 // pred_fallthru
      _
    // Predicated region
    $region14: #{tpu_custom_call.1} parent=1 // pred_check
      _
    $region15: #{tpu_custom_call.1} parent=1 // pred_check_branch
      %51 = sbr.rel (0) target = $region17
    $region16: #{tpu_custom_call.1} parent=1 // pred_region
      _
    $region17: #{tpu_custom_call.1} parent=1 // pred_fallthru
      _
    // Predicated region
    $region18: #{tpu_custom_call.1} parent=1 // pred_check
      _
    $region19: #{tpu_custom_call.1} parent=1 // pred_check_branch
      %53 = sbr.rel (0) target = $region21
    $region20: #{tpu_custom_call.1} parent=1 // pred_region
      %s55 = ssub.s32 384, 384
      %56 = vsyncadd [#allocation10], %s55
      %s57 = sshll.u32 [#allocation9], 4
      %s58 = int_to_ptr.vmem [resolvable:$true] %s57
      %63 = dma.hbm_to_vmem [thread:$0]  %s4, 384, %s58, [#allocation10], 128, 128, 8
    $region21: #{tpu_custom_call.1} parent=1 // pred_fallthru
      _
    // Predicated region
    $region22: #{tpu_custom_call.1} parent=1 // pred_check
      _
    $region23: #{tpu_custom_call.1} parent=1 // pred_check_branch
      %65 = sbr.rel (0) target = $region25
    $region24: #{tpu_custom_call.1} parent=1 // pred_region
      _
    $region25: #{tpu_custom_call.1} parent=1 // pred_fallthru
      _
    // Predicated region
    $region26: #{tpu_custom_call.1} parent=1 // pred_check
      _
    $region27: #{tpu_custom_call.1} parent=1 // pred_check_branch
      %67 = sbr.rel (0) target = $region29
    $region28: #{tpu_custom_call.1} parent=1 // pred_region
      %s69 = ssub.s32 64, 64
      %70 = vsyncadd [#allocation10], %s69
      %s72 = sshll.u32 [#allocation11], 4
      %s73 = int_to_ptr.vmem [resolvable:$true] %s72
      %75 = dma.hbm_to_vmem [thread:$0]  %s6, 64, %s73, [#allocation10]
    $region29: #{tpu_custom_call.1} parent=1 // pred_fallthru
      _
    // Predicated region
    $region30: #{tpu_custom_call.1} parent=1 // pred_check
      _
    $region31: #{tpu_custom_call.1} parent=1 // pred_check_branch
      %77 = sbr.rel (0) target = $region33
    $region32: #{tpu_custom_call.1} parent=1 // pred_region
      %78 = dma.done [#allocation4], 2048
    $region33: #{tpu_custom_call.1} parent=1 // pred_fallthru
      _
    // Predicated region
    $region34: #{tpu_custom_call.1} parent=1 // pred_check
      _
    $region35: #{tpu_custom_call.1} parent=1 // pred_check_branch
      %80 = sbr.rel (0) target = $region37
    $region36: #{tpu_custom_call.1} parent=1 // pred_region
      %81 = dma.done [#allocation7], 384
    $region37: #{tpu_custom_call.1} parent=1 // pred_fallthru
      _
    // Predicated region
    $region38: #{tpu_custom_call.1} parent=1 // pred_check
      _
    $region39: #{tpu_custom_call.1} parent=1 // pred_check_branch
      %83 = sbr.rel (0) target = $region41
    $region40: #{tpu_custom_call.1} parent=1 // pred_region
      %84 = dma.done [#allocation7], 64
    $region41: #{tpu_custom_call.1} parent=1 // pred_fallthru
      _
    // Predicated region
    $region42: #{tpu_custom_call.1} parent=1 // pred_check
      _
    $region43: #{tpu_custom_call.1} parent=1 // pred_check_branch
      %86 = sbr.rel (0) target = $region45
    $region44: #{tpu_custom_call.1} parent=1 // pred_region
      %87 = dma.done [#allocation10], 384
    $region45: #{tpu_custom_call.1} parent=1 // pred_fallthru
      _
    // Predicated region
    $region46: #{tpu_custom_call.1} parent=1 // pred_check
      _
    $region47: #{tpu_custom_call.1} parent=1 // pred_check_branch
      %89 = sbr.rel (0) target = $region49
    $region48: #{tpu_custom_call.1} parent=1 // pred_region
      %90 = dma.done [#allocation10], 64
    $region49: #{tpu_custom_call.1} parent=1 // pred_fallthru
      _
    %91 = vst [vmem:[#allocation2] sm:$0xff] 0.0
    %92 = vst [vmem:[#allocation2 + $0x8] sm:$0xff] 0.0
    %93 = vst [vmem:[#allocation2 + $0x10] sm:$0xff] 0.0
    %94 = vst [vmem:[#allocation2 + $0x18] sm:$0xff] 0.0
    %95 = vst [vmem:[#allocation2 + $0x120] sm:$0xff] 0.0
    %96 = vst [vmem:[#allocation2 + $0x128] sm:$0xff] 0.0
    %97 = vst [vmem:[#allocation2 + $0x130] sm:$0xff] 0.0
    %98 = vst [vmem:[#allocation2 + $0x138] sm:$0xff] 0.0
    %99 = vst [vmem:[#allocation2 + $0x20] sm:$0xff] 0.0
    %100 = vst [vmem:[#allocation2 + $0x40] sm:$0xff] 0.0
    %101 = vst [vmem:[#allocation2 + $0x60] sm:$0xff] 0.0
    %102 = vst [vmem:[#allocation2 + $0x80] sm:$0xff] 0.0
    %103 = vst [vmem:[#allocation2 + $0xa0] sm:$0xff] 0.0
    %104 = vst [vmem:[#allocation2 + $0xc0] sm:$0xff] 0.0
    %105 = vst [vmem:[#allocation2 + $0xe0] sm:$0xff] 0.0
    %106 = vst [vmem:[#allocation2 + $0x100] sm:$0xff] 0.0
    %107 = vst [vmem:[#allocation2 + $0x38] sm:$0xff] 0.0
    %108 = vst [vmem:[#allocation2 + $0x58] sm:$0xff] 0.0
    %109 = vst [vmem:[#allocation2 + $0x78] sm:$0xff] 0.0
    %110 = vst [vmem:[#allocation2 + $0x98] sm:$0xff] 0.0
    %111 = vst [vmem:[#allocation2 + $0xb8] sm:$0xff] 0.0
    %112 = vst [vmem:[#allocation2 + $0xd8] sm:$0xff] 0.0
    %113 = vst [vmem:[#allocation2 + $0xf8] sm:$0xff] 0.0
    %114 = vst [vmem:[#allocation2 + $0x118] sm:$0xff] 0.0
    %v115 = vlaneseq
    %v116 = vshrl.u32 %v115, 7
    %v117 = vadd.s32 %v116, 8
    %v118 = vadd.s32 %v116, 16
    %v119 = vadd.s32 %v116, 24
    %v120 = vadd.s32 %v116, 32
    %v121 = vadd.s32 %v116, 40
    %v122 = vadd.s32 %v116, 48
    %v123 = vadd.s32 %v116, 56
    %v124 = vcvt.s32.f32 %v116
    %v125 = vcvt.s32.f32 %v117
    %v126 = vcvt.s32.f32 %v118
    %v127 = vcvt.s32.f32 %v119
    %v128 = vcvt.s32.f32 %v120
    %v129 = vcvt.s32.f32 %v121
    %v130 = vcvt.s32.f32 %v122
    %v131 = vcvt.s32.f32 %v123
    %v132 = vadd.f32 %v124, 0.5
    %v133 = vadd.f32 %v125, 0.5
    %v134 = vadd.f32 %v126, 0.5
    %v135 = vadd.f32 %v127, 0.5
    %v136 = vadd.f32 %v128, 0.5
    %v137 = vadd.f32 %v129, 0.5
    %v138 = vadd.f32 %v130, 0.5
    %v139 = vadd.f32 %v131, 0.5
    %v140 = vmul.f32 %v132, 0.125
    %v141 = vmul.f32 %v133, 0.125
    %v142 = vmul.f32 %v134, 0.125
    %v143 = vmul.f32 %v135, 0.125
    %v144 = vmul.f32 %v136, 0.125
    %v145 = vmul.f32 %v137, 0.125
    %v146 = vmul.f32 %v138, 0.125
    %v147 = vmul.f32 %v139, 0.125
    %v148 = vfloor.f32 %v140
    %v149 = vfloor.f32 %v141
    %v150 = vfloor.f32 %v142
    %v151 = vfloor.f32 %v143
    %v152 = vfloor.f32 %v144
    %v153 = vfloor.f32 %v145
    %v154 = vfloor.f32 %v146
    %v155 = vfloor.f32 %v147
    %v156 = vmul.f32 %v148, 8.0
    %v157 = vmul.f32 %v149, 8.0
    %v158 = vmul.f32 %v150, 8.0
    %v159 = vmul.f32 %v151, 8.0
    %v160 = vmul.f32 %v152, 8.0
    %v161 = vmul.f32 %v153, 8.0
    %v162 = vmul.f32 %v154, 8.0
    %v163 = vmul.f32 %v155, 8.0
    %v164 = vsub.f32 %v124, %v156
    %v165 = vsub.f32 %v125, %v157
    %v166 = vsub.f32 %v126, %v158
    %v167 = vsub.f32 %v127, %v159
    %v168 = vsub.f32 %v128, %v160
    %v169 = vsub.f32 %v129, %v161
    %v170 = vsub.f32 %v130, %v162
    %v171 = vsub.f32 %v131, %v163
    %v172 = vadd.f32 %v164, -1.0
    %v173 = vadd.f32 %v165, -1.0
    %v174 = vadd.f32 %v166, -1.0
    %v175 = vadd.f32 %v167, -1.0
    %v176 = vadd.f32 %v168, -1.0
    %v177 = vadd.f32 %v169, -1.0
    %v178 = vadd.f32 %v170, -1.0
    %v179 = vadd.f32 %v171, -1.0
    %vm180 = vcmp.ge.f32.partialorder %v172, 0.0
    %vm181 = vcmp.ge.f32.partialorder %v173, 0.0
    %vm182 = vcmp.ge.f32.partialorder %v174, 0.0
    %vm183 = vcmp.ge.f32.partialorder %v175, 0.0
    %vm184 = vcmp.ge.f32.partialorder %v176, 0.0
    %vm185 = vcmp.ge.f32.partialorder %v177, 0.0
    %vm186 = vcmp.ge.f32.partialorder %v178, 0.0
    %vm187 = vcmp.ge.f32.partialorder %v179, 0.0
    %vm188 = vcmp.le.f32.partialorder %v172, 7.0
    %vm189 = vcmp.le.f32.partialorder %v173, 7.0
    %vm190 = vcmp.le.f32.partialorder %v174, 7.0
    %vm191 = vcmp.le.f32.partialorder %v175, 7.0
    %vm192 = vcmp.le.f32.partialorder %v176, 7.0
    %vm193 = vcmp.le.f32.partialorder %v177, 7.0
    %vm194 = vcmp.le.f32.partialorder %v178, 7.0
    %vm195 = vcmp.le.f32.partialorder %v179, 7.0
    %vm196 = vmand %vm180, %vm188
    %vm197 = vmand %vm181, %vm189
    %vm198 = vmand %vm182, %vm190
    %vm199 = vmand %vm183, %vm191
    %vm200 = vmand %vm184, %vm192
    %vm201 = vmand %vm185, %vm193
    %vm202 = vmand %vm186, %vm194
    %vm203 = vmand %vm187, %vm195
    %v204 = vsel %vm196, 1.0, 0.0
    %v205 = vsel %vm197, 1.0, 0.0
    %v206 = vsel %vm198, 1.0, 0.0
    %v207 = vsel %vm199, 1.0, 0.0
    %v208 = vsel %vm200, 1.0, 0.0
    %v209 = vsel %vm201, 1.0, 0.0
    %v210 = vsel %vm202, 1.0, 0.0
    %v211 = vsel %vm203, 1.0, 0.0
    %v212 = vadd.f32 %v164, 1.0
    %v213 = vadd.f32 %v165, 1.0
    %v214 = vadd.f32 %v166, 1.0
    %v215 = vadd.f32 %v167, 1.0
    %v216 = vadd.f32 %v168, 1.0
    %v217 = vadd.f32 %v169, 1.0
    %v218 = vadd.f32 %v170, 1.0
    %v219 = vadd.f32 %v171, 1.0
    %vm220 = vcmp.ge.f32.partialorder %v212, 0.0
    %vm221 = vcmp.ge.f32.partialorder %v213, 0.0
    %vm222 = vcmp.ge.f32.partialorder %v214, 0.0
    %vm223 = vcmp.ge.f32.partialorder %v215, 0.0
    %vm224 = vcmp.ge.f32.partialorder %v216, 0.0
    %vm225 = vcmp.ge.f32.partialorder %v217, 0.0
    %vm226 = vcmp.ge.f32.partialorder %v218, 0.0
    %vm227 = vcmp.ge.f32.partialorder %v219, 0.0
    %vm228 = vcmp.le.f32.partialorder %v212, 7.0
    %vm229 = vcmp.le.f32.partialorder %v213, 7.0
    %vm230 = vcmp.le.f32.partialorder %v214, 7.0
    %vm231 = vcmp.le.f32.partialorder %v215, 7.0
    %vm232 = vcmp.le.f32.partialorder %v216, 7.0
    %vm233 = vcmp.le.f32.partialorder %v217, 7.0
    %vm234 = vcmp.le.f32.partialorder %v218, 7.0
    %vm235 = vcmp.le.f32.partialorder %v219, 7.0
    %vm236 = vmand %vm220, %vm228
    %vm237 = vmand %vm221, %vm229
    %vm238 = vmand %vm222, %vm230
    %vm239 = vmand %vm223, %vm231
    %vm240 = vmand %vm224, %vm232
    %vm241 = vmand %vm225, %vm233
    %vm242 = vmand %vm226, %vm234
    %vm243 = vmand %vm227, %vm235
    %v244 = vsel %vm236, 1.0, 0.0
    %v245 = vsel %vm237, 1.0, 0.0
    %v246 = vsel %vm238, 1.0, 0.0
    %v247 = vsel %vm239, 1.0, 0.0
    %v248 = vsel %vm240, 1.0, 0.0
    %v249 = vsel %vm241, 1.0, 0.0
    %v250 = vsel %vm242, 1.0, 0.0
    %v251 = vsel %vm243, 1.0, 0.0
    %v252 = vld [vmem:[#allocation3] sm:$0xff]
    %v253 = vld [vmem:[#allocation3 + $0x8] sm:$0xff]
    %v254 = vld [vmem:[#allocation3 + $0x10] sm:$0xff]
    %v255 = vld [vmem:[#allocation3 + $0x18] sm:$0xff]
    %v256 = vld [vmem:[#allocation3 + $0x20] sm:$0xff]
    %v257 = vld [vmem:[#allocation3 + $0x28] sm:$0xff]
    %v258 = vld [vmem:[#allocation3 + $0x30] sm:$0xff]
    %v259 = vld [vmem:[#allocation3 + $0x38] sm:$0xff]
    %v260 = vld [vmem:[#allocation3 + $0x40] sm:$0xff]
    %v261 = vld [vmem:[#allocation3 + $0x48] sm:$0xff]
    %v262 = vld [vmem:[#allocation3 + $0x50] sm:$0xff]
    %v263 = vld [vmem:[#allocation3 + $0x58] sm:$0xff]
    %v264 = vld [vmem:[#allocation3 + $0x60] sm:$0xff]
    %v265 = vld [vmem:[#allocation3 + $0x68] sm:$0xff]
    %v266 = vld [vmem:[#allocation3 + $0x70] sm:$0xff]
    %v267 = vld [vmem:[#allocation3 + $0x78] sm:$0xff]
    %v268 = vld [vmem:[#allocation6] sm:$0x77]
    %v269 = vld [vmem:[#allocation6 + $0x8] sm:$0x77]
    %v270 = vld [vmem:[#allocation6 + $0x10] sm:$0x77]
    %v271 = vld [vmem:[#allocation8] sm:$0xf]
    %272 = vst [vmem:[#allocation2 + $0x28] sm:$0xff] %v252
    %273 = vst [vmem:[#allocation2 + $0x30] sm:$0xff] %v253
    %274 = vst [vmem:[#allocation2 + $0x48] sm:$0xff] %v254
    %275 = vst [vmem:[#allocation2 + $0x50] sm:$0xff] %v255
    %276 = vst [vmem:[#allocation2 + $0x68] sm:$0xff] %v256
    %277 = vst [vmem:[#allocation2 + $0x70] sm:$0xff] %v257
    %278 = vst [vmem:[#allocation2 + $0x88] sm:$0xff] %v258
    %279 = vst [vmem:[#allocation2 + $0x90] sm:$0xff] %v259
    %280 = vst [vmem:[#allocation2 + $0xa8] sm:$0xff] %v260
    %281 = vst [vmem:[#allocation2 + $0xb0] sm:$0xff] %v261
    %282 = vst [vmem:[#allocation2 + $0xc8] sm:$0xff] %v262
    %283 = vst [vmem:[#allocation2 + $0xd0] sm:$0xff] %v263
    %284 = vst [vmem:[#allocation2 + $0xe8] sm:$0xff] %v264
    %285 = vst [vmem:[#allocation2 + $0xf0] sm:$0xff] %v265
    %286 = vst [vmem:[#allocation2 + $0x108] sm:$0xff] %v266
    %287 = vst [vmem:[#allocation2 + $0x110] sm:$0xff] %v267
    %v289 = vlaneseq
    %v290 = vshrl.u32 %v289, 7
    %v291 = vsub.s32 1, %v290
    %v292 = vrot.slane %v268, %v291
    %v293 = vlaneseq
    %v294 = vshrl.u32 %v293, 7
    %v295 = vsub.s32 5, %v294
    %v296 = vrot.slane %v268, %v295
    %v299 = vlaneseq
    %v300 = vshrl.u32 %v299, 7
    %v301 = vsub.s32 1, %v300
    %v302 = vrot.slane %v292, %v301
    %v303 = vlaneseq
    %v304 = vshrl.u32 %v303, 7
    %v305 = vsub.s32 1, %v304
    %v306 = vrot.slane %v296, %v305
    %v307 = vmul.f32 %v252, %v302
    %v308 = vmul.f32 %v253, %v306
    %v309 = vmul.f32 %v254, %v302
    %v310 = vmul.f32 %v255, %v306
    %v311 = vmul.f32 %v256, %v302
    %v312 = vmul.f32 %v257, %v306
    %v313 = vmul.f32 %v258, %v302
    %v314 = vmul.f32 %v259, %v306
    %v315 = vmul.f32 %v260, %v302
    %v316 = vmul.f32 %v261, %v306
    %v317 = vmul.f32 %v262, %v302
    %v318 = vmul.f32 %v263, %v306
    %v319 = vmul.f32 %v264, %v302
    %v320 = vmul.f32 %v265, %v306
    %v321 = vmul.f32 %v266, %v302
    %v322 = vmul.f32 %v267, %v306
    %v323 = vld [vmem:[#allocation2 + $0x8] sm:$0xff]
    %v324 = vld [vmem:[#allocation2 + $0x10] sm:$0xff]
    %v325 = vld [vmem:[#allocation2 + $0x28] sm:$0xff]
    %v326 = vld [vmem:[#allocation2 + $0x30] sm:$0xff]
    %v327 = vld [vmem:[#allocation2 + $0x48] sm:$0xff]
    %v328 = vld [vmem:[#allocation2 + $0x50] sm:$0xff]
    %v329 = vld [vmem:[#allocation2 + $0x68] sm:$0xff]
    %v330 = vld [vmem:[#allocation2 + $0x70] sm:$0xff]
    %v331 = vld [vmem:[#allocation2 + $0x88] sm:$0xff]
    %v332 = vld [vmem:[#allocation2 + $0x90] sm:$0xff]
    %v333 = vld [vmem:[#allocation2 + $0xa8] sm:$0xff]
    %v334 = vld [vmem:[#allocation2 + $0xb0] sm:$0xff]
    %v335 = vld [vmem:[#allocation2 + $0xc8] sm:$0xff]
    %v336 = vld [vmem:[#allocation2 + $0xd0] sm:$0xff]
    %v337 = vld [vmem:[#allocation2 + $0xe8] sm:$0xff]
    %v338 = vld [vmem:[#allocation2 + $0xf0] sm:$0xff]
    %v339 = vlaneseq
    %v340 = vshrl.u32 %v339, 7
    %v341 = vsub.s32 0, %v340
    %v342 = vrot.slane %v268, %v341
    %v343 = vlaneseq
    %v344 = vshrl.u32 %v343, 7
    %v345 = vsub.s32 4, %v344
    %v346 = vrot.slane %v268, %v345
    %v349 = vlaneseq
    %v350 = vshrl.u32 %v349, 7
    %v351 = vsub.s32 0, %v350
    %v352 = vrot.slane %v342, %v351
    %v353 = vlaneseq
    %v354 = vshrl.u32 %v353, 7
    %v355 = vsub.s32 0, %v354
    %v356 = vrot.slane %v346, %v355
    %v357 = vmul.f32 %v323, %v352
    %v358 = vmul.f32 %v324, %v356
    %v359 = vmul.f32 %v325, %v352
    %v360 = vmul.f32 %v326, %v356
    %v361 = vmul.f32 %v327, %v352
    %v362 = vmul.f32 %v328, %v356
    %v363 = vmul.f32 %v329, %v352
    %v364 = vmul.f32 %v330, %v356
    %v365 = vmul.f32 %v331, %v352
    %v366 = vmul.f32 %v332, %v356
    %v367 = vmul.f32 %v333, %v352
    %v368 = vmul.f32 %v334, %v356
    %v369 = vmul.f32 %v335, %v352
    %v370 = vmul.f32 %v336, %v356
    %v371 = vmul.f32 %v337, %v352
    %v372 = vmul.f32 %v338, %v356
    %v373 = vadd.f32 %v307, %v357
    %v374 = vadd.f32 %v308, %v358
    %v375 = vadd.f32 %v309, %v359
    %v376 = vadd.f32 %v310, %v360
    %v377 = vadd.f32 %v311, %v361
    %v378 = vadd.f32 %v312, %v362
    %v379 = vadd.f32 %v313, %v363
    %v380 = vadd.f32 %v314, %v364
    %v381 = vadd.f32 %v315, %v365
    %v382 = vadd.f32 %v316, %v366
    %v383 = vadd.f32 %v317, %v367
    %v384 = vadd.f32 %v318, %v368
    %v385 = vadd.f32 %v319, %v369
    %v386 = vadd.f32 %v320, %v370
    %v387 = vadd.f32 %v321, %v371
    %v388 = vadd.f32 %v322, %v372
    %v389 = vld [vmem:[#allocation2 + $0x108] sm:$0xff]
    %v390 = vld [vmem:[#allocation2 + $0x110] sm:$0xff]
    %v391 = vld [vmem:[#allocation2 + $0x128] sm:$0xff]
    %v392 = vld [vmem:[#allocation2 + $0x130] sm:$0xff]
    %v393 = vlaneseq
    %v394 = vshrl.u32 %v393, 7
    %v395 = vsub.s32 2, %v394
    %v396 = vrot.slane %v268, %v395
    %v397 = vlaneseq
    %v398 = vshrl.u32 %v397, 7
    %v399 = vsub.s32 6, %v398
    %v400 = vrot.slane %v268, %v399
    %v403 = vlaneseq
    %v404 = vshrl.u32 %v403, 7
    %v405 = vsub.s32 2, %v404
    %v406 = vrot.slane %v396, %v405
    %v407 = vlaneseq
    %v408 = vshrl.u32 %v407, 7
    %v409 = vsub.s32 2, %v408
    %v410 = vrot.slane %v400, %v409
    %v411 = vmul.f32 %v327, %v406
    %v412 = vmul.f32 %v328, %v410
    %v413 = vmul.f32 %v329, %v406
    %v414 = vmul.f32 %v330, %v410
    %v415 = vmul.f32 %v331, %v406
    %v416 = vmul.f32 %v332, %v410
    %v417 = vmul.f32 %v333, %v406
    %v418 = vmul.f32 %v334, %v410
    %v419 = vmul.f32 %v335, %v406
    %v420 = vmul.f32 %v336, %v410
    %v421 = vmul.f32 %v337, %v406
    %v422 = vmul.f32 %v338, %v410
    %v423 = vmul.f32 %v389, %v406
    %v424 = vmul.f32 %v390, %v410
    %v425 = vmul.f32 %v391, %v406
    %v426 = vmul.f32 %v392, %v410
    %v427 = vadd.f32 %v373, %v411
    %v428 = vadd.f32 %v374, %v412
    %v429 = vadd.f32 %v375, %v413
    %v430 = vadd.f32 %v376, %v414
    %v431 = vadd.f32 %v377, %v415
    %v432 = vadd.f32 %v378, %v416
    %v433 = vadd.f32 %v379, %v417
    %v434 = vadd.f32 %v380, %v418
    %v435 = vadd.f32 %v381, %v419
    %v436 = vadd.f32 %v382, %v420
    %v437 = vadd.f32 %v383, %v421
    %v438 = vadd.f32 %v384, %v422
    %v439 = vadd.f32 %v385, %v423
    %v440 = vadd.f32 %v386, %v424
    %v441 = vadd.f32 %v387, %v425
    %v442 = vadd.f32 %v388, %v426
    %v444 = vlaneseq
    %v445 = vshrl.u32 %v444, 7
    %v446 = vsub.s32 0, %v445
    %v447 = vrot.slane %v271, %v446
    %v448 = vlaneseq
    %v449 = vshrl.u32 %v448, 7
    %v450 = vsub.s32 2, %v449
    %v451 = vrot.slane %v271, %v450
    %v454 = vlaneseq
    %v455 = vshrl.u32 %v454, 7
    %v456 = vsub.s32 0, %v455
    %v457 = vrot.slane %v447, %v456
    %v458 = vlaneseq
    %v459 = vshrl.u32 %v458, 7
    %v460 = vsub.s32 0, %v459
    %v461 = vrot.slane %v451, %v460
    %v462 = vadd.f32 %v427, %v457
    %v463 = vadd.f32 %v428, %v461
    %v464 = vadd.f32 %v429, %v457
    %v465 = vadd.f32 %v430, %v461
    %v466 = vadd.f32 %v431, %v457
    %v467 = vadd.f32 %v432, %v461
    %v468 = vadd.f32 %v433, %v457
    %v469 = vadd.f32 %v434, %v461
    %v470 = vadd.f32 %v435, %v457
    %v471 = vadd.f32 %v436, %v461
    %v472 = vadd.f32 %v437, %v457
    %v473 = vadd.f32 %v438, %v461
    %v474 = vadd.f32 %v439, %v457
    %v475 = vadd.f32 %v440, %v461
    %v476 = vadd.f32 %v441, %v457
    %v477 = vadd.f32 %v442, %v461
    %478 = vst [vmem:[#allocation2 + $0x28] sm:$0xff] %v462
    %479 = vst [vmem:[#allocation2 + $0x30] sm:$0xff] %v463
    %480 = vst [vmem:[#allocation2 + $0x48] sm:$0xff] %v464
    %481 = vst [vmem:[#allocation2 + $0x50] sm:$0xff] %v465
    %482 = vst [vmem:[#allocation2 + $0x68] sm:$0xff] %v466
    %483 = vst [vmem:[#allocation2 + $0x70] sm:$0xff] %v467
    %484 = vst [vmem:[#allocation2 + $0x88] sm:$0xff] %v468
    %485 = vst [vmem:[#allocation2 + $0x90] sm:$0xff] %v469
    %486 = vst [vmem:[#allocation2 + $0xa8] sm:$0xff] %v470
    %487 = vst [vmem:[#allocation2 + $0xb0] sm:$0xff] %v471
    %488 = vst [vmem:[#allocation2 + $0xc8] sm:$0xff] %v472
    %489 = vst [vmem:[#allocation2 + $0xd0] sm:$0xff] %v473
    %490 = vst [vmem:[#allocation2 + $0xe8] sm:$0xff] %v474
    %491 = vst [vmem:[#allocation2 + $0xf0] sm:$0xff] %v475
    %492 = vst [vmem:[#allocation2 + $0x108] sm:$0xff] %v476
    %493 = vst [vmem:[#allocation2 + $0x110] sm:$0xff] %v477
    %v495 = vlaneseq
    %v496 = vshrl.u32 %v495, 7
    %v497 = vsub.s32 1, %v496
    %v498 = vrot.slane %v269, %v497
    %v499 = vlaneseq
    %v500 = vshrl.u32 %v499, 7
    %v501 = vsub.s32 5, %v500
    %v502 = vrot.slane %v269, %v501
    %v505 = vlaneseq
    %v506 = vshrl.u32 %v505, 7
    %v507 = vsub.s32 1, %v506
    %v508 = vrot.slane %v498, %v507
    %v509 = vlaneseq
    %v510 = vshrl.u32 %v509, 7
    %v511 = vsub.s32 1, %v510
    %v512 = vrot.slane %v502, %v511
    %v513 = vmul.f32 %v462, %v508
    %v514 = vmul.f32 %v463, %v512
    %v515 = vmul.f32 %v464, %v508
    %v516 = vmul.f32 %v465, %v512
    %v517 = vmul.f32 %v466, %v508
    %v518 = vmul.f32 %v467, %v512
    %v519 = vmul.f32 %v468, %v508
    %v520 = vmul.f32 %v469, %v512
    %v521 = vmul.f32 %v470, %v508
    %v522 = vmul.f32 %v471, %v512
    %v523 = vmul.f32 %v472, %v508
    %v524 = vmul.f32 %v473, %v512
    %v525 = vmul.f32 %v474, %v508
    %v526 = vmul.f32 %v475, %v512
    %v527 = vmul.f32 %v476, %v508
    %v528 = vmul.f32 %v477, %v512
    %v529 = vld [vmem:[#allocation2 + $0x8] sm:$0x80]
    %v530 = vld [vmem:[#allocation2 + $0x10] sm:$0x80]
    %v531 = vld [vmem:[#allocation2 + $0x28] sm:$0xff]
    %v532 = vld [vmem:[#allocation2 + $0x30] sm:$0xff]
    %v533 = vld [vmem:[#allocation2 + $0x48] sm:$0xff]
    %v534 = vld [vmem:[#allocation2 + $0x50] sm:$0xff]
    %v535 = vld [vmem:[#allocation2 + $0x68] sm:$0xff]
    %v536 = vld [vmem:[#allocation2 + $0x70] sm:$0xff]
    %v537 = vld [vmem:[#allocation2 + $0x88] sm:$0xff]
    %v538 = vld [vmem:[#allocation2 + $0x90] sm:$0xff]
    %v539 = vld [vmem:[#allocation2 + $0xa8] sm:$0xff]
    %v540 = vld [vmem:[#allocation2 + $0xb0] sm:$0xff]
    %v541 = vld [vmem:[#allocation2 + $0xc8] sm:$0xff]
    %v542 = vld [vmem:[#allocation2 + $0xd0] sm:$0xff]
    %v543 = vld [vmem:[#allocation2 + $0xe8] sm:$0xff]
    %v544 = vld [vmem:[#allocation2 + $0xf0] sm:$0xff]
    %v545 = vld [vmem:[#allocation2 + $0x108] sm:$0x7f]
    %v546 = vld [vmem:[#allocation2 + $0x110] sm:$0x7f]
    %vm555 = vcmask 1046528
    %v556 = vrot.slane %v204, 1
    %v557 = vrot.slane %v205, 1
    %v558 = vsel %vm555, %v556, %v557
    %v559 = vrot.slane %v206, 1
    %v560 = vsel %vm555, %v557, %v559
    %v561 = vrot.slane %v207, 1
    %v562 = vsel %vm555, %v559, %v561
    %v563 = vrot.slane %v208, 1
    %v564 = vsel %vm555, %v561, %v563
    %v565 = vrot.slane %v209, 1
    %v566 = vsel %vm555, %v563, %v565
    %v567 = vrot.slane %v210, 1
    %v568 = vsel %vm555, %v565, %v567
    %v569 = vrot.slane %v211, 1
    %v570 = vsel %vm555, %v567, %v569
    %v580 = vmul.f32 %v529, %v556
    %v581 = vmul.f32 %v530, %v556
    %v582 = vmul.f32 %v531, %v558
    %v583 = vmul.f32 %v532, %v558
    %v584 = vmul.f32 %v533, %v560
    %v585 = vmul.f32 %v534, %v560
    %v586 = vmul.f32 %v535, %v562
    %v587 = vmul.f32 %v536, %v562
    %v588 = vmul.f32 %v537, %v564
    %v589 = vmul.f32 %v538, %v564
    %v590 = vmul.f32 %v539, %v566
    %v591 = vmul.f32 %v540, %v566
    %v592 = vmul.f32 %v541, %v568
    %v593 = vmul.f32 %v542, %v568
    %v594 = vmul.f32 %v543, %v570
    %v595 = vmul.f32 %v544, %v570
    %v596 = vmul.f32 %v545, %v569
    %v597 = vmul.f32 %v546, %v569
    %v598 = vlaneseq
    %v599 = vshrl.u32 %v598, 7
    %v600 = vsub.s32 0, %v599
    %v601 = vrot.slane %v269, %v600
    %v602 = vlaneseq
    %v603 = vshrl.u32 %v602, 7
    %v604 = vsub.s32 4, %v603
    %v605 = vrot.slane %v269, %v604
    %v608 = vlaneseq
    %v609 = vshrl.u32 %v608, 7
    %v610 = vsub.s32 0, %v609
    %v611 = vrot.slane %v601, %v610
    %v612 = vlaneseq
    %v613 = vshrl.u32 %v612, 7
    %v614 = vsub.s32 0, %v613
    %v615 = vrot.slane %v605, %v614
    %v616 = vmul.f32 %v580, %v611
    %v617 = vmul.f32 %v581, %v615
    %v618 = vmul.f32 %v582, %v611
    %v619 = vmul.f32 %v583, %v615
    %v620 = vmul.f32 %v584, %v611
    %v621 = vmul.f32 %v585, %v615
    %v622 = vmul.f32 %v586, %v611
    %v623 = vmul.f32 %v587, %v615
    %v624 = vmul.f32 %v588, %v611
    %v625 = vmul.f32 %v589, %v615
    %v626 = vmul.f32 %v590, %v611
    %v627 = vmul.f32 %v591, %v615
    %v628 = vmul.f32 %v592, %v611
    %v629 = vmul.f32 %v593, %v615
    %v630 = vmul.f32 %v594, %v611
    %v631 = vmul.f32 %v595, %v615
    %v632 = vmul.f32 %v596, %v611
    %v633 = vmul.f32 %v597, %v615
    %vm652 = vcmask 1040384
    %v653 = vrot.slane %v616, 7
    %v654 = vrot.slane %v618, 7
    %v655 = vsel %vm652, %v653, %v654
    %v656 = vrot.slane %v617, 7
    %v657 = vrot.slane %v619, 7
    %v658 = vsel %vm652, %v656, %v657
    %v659 = vrot.slane %v620, 7
    %v660 = vsel %vm652, %v654, %v659
    %v661 = vrot.slane %v621, 7
    %v662 = vsel %vm652, %v657, %v661
    %v663 = vrot.slane %v622, 7
    %v664 = vsel %vm652, %v659, %v663
    %v665 = vrot.slane %v623, 7
    %v666 = vsel %vm652, %v661, %v665
    %v667 = vrot.slane %v624, 7
    %v668 = vsel %vm652, %v663, %v667
    %v669 = vrot.slane %v625, 7
    %v670 = vsel %vm652, %v665, %v669
    %v671 = vrot.slane %v626, 7
    %v672 = vsel %vm652, %v667, %v671
    %v673 = vrot.slane %v627, 7
    %v674 = vsel %vm652, %v669, %v673
    %v675 = vrot.slane %v628, 7
    %v676 = vsel %vm652, %v671, %v675
    %v677 = vrot.slane %v629, 7
    %v678 = vsel %vm652, %v673, %v677
    %v679 = vrot.slane %v630, 7
    %v680 = vsel %vm652, %v675, %v679
    %v681 = vrot.slane %v631, 7
    %v682 = vsel %vm652, %v677, %v681
    %v683 = vrot.slane %v632, 7
    %v684 = vsel %vm652, %v679, %v683
    %v685 = vrot.slane %v633, 7
    %v686 = vsel %vm652, %v681, %v685
    %v703 = vadd.f32 %v513, %v655
    %v704 = vadd.f32 %v514, %v658
    %v705 = vadd.f32 %v515, %v660
    %v706 = vadd.f32 %v516, %v662
    %v707 = vadd.f32 %v517, %v664
    %v708 = vadd.f32 %v518, %v666
    %v709 = vadd.f32 %v519, %v668
    %v710 = vadd.f32 %v520, %v670
    %v711 = vadd.f32 %v521, %v672
    %v712 = vadd.f32 %v522, %v674
    %v713 = vadd.f32 %v523, %v676
    %v714 = vadd.f32 %v524, %v678
    %v715 = vadd.f32 %v525, %v680
    %v716 = vadd.f32 %v526, %v682
    %v717 = vadd.f32 %v527, %v684
    %v718 = vadd.f32 %v528, %v686
    %v719 = vld [vmem:[#allocation2 + $0x28] sm:$0xfe]
    %v720 = vld [vmem:[#allocation2 + $0x30] sm:$0xfe]
    %v721 = vld [vmem:[#allocation2 + $0x108] sm:$0xff]
    %v722 = vld [vmem:[#allocation2 + $0x110] sm:$0xff]
    %v723 = vld [vmem:[#allocation2 + $0x128] sm:$0x1]
    %v724 = vld [vmem:[#allocation2 + $0x130] sm:$0x1]
    %v733 = vrot.slane %v244, 7
    %v734 = vrot.slane %v245, 7
    %v735 = vsel %vm652, %v733, %v734
    %v736 = vrot.slane %v246, 7
    %v737 = vsel %vm652, %v734, %v736
    %v738 = vrot.slane %v247, 7
    %v739 = vsel %vm652, %v736, %v738
    %v740 = vrot.slane %v248, 7
    %v741 = vsel %vm652, %v738, %v740
    %v742 = vrot.slane %v249, 7
    %v743 = vsel %vm652, %v740, %v742
    %v744 = vrot.slane %v250, 7
    %v745 = vsel %vm652, %v742, %v744
    %v746 = vrot.slane %v251, 7
    %v747 = vsel %vm652, %v744, %v746
    %v757 = vmul.f32 %v719, %v733
    %v758 = vmul.f32 %v720, %v733
    %v759 = vmul.f32 %v533, %v735
    %v760 = vmul.f32 %v534, %v735
    %v761 = vmul.f32 %v535, %v737
    %v762 = vmul.f32 %v536, %v737
    %v763 = vmul.f32 %v537, %v739
    %v764 = vmul.f32 %v538, %v739
    %v765 = vmul.f32 %v539, %v741
    %v766 = vmul.f32 %v540, %v741
    %v767 = vmul.f32 %v541, %v743
    %v768 = vmul.f32 %v542, %v743
    %v769 = vmul.f32 %v543, %v745
    %v770 = vmul.f32 %v544, %v745
    %v771 = vmul.f32 %v721, %v747
    %v772 = vmul.f32 %v722, %v747
    %v773 = vmul.f32 %v723, %v746
    %v774 = vmul.f32 %v724, %v746
    %v775 = vlaneseq
    %v776 = vshrl.u32 %v775, 7
    %v777 = vsub.s32 2, %v776
    %v778 = vrot.slane %v269, %v777
    %v779 = vlaneseq
    %v780 = vshrl.u32 %v779, 7
    %v781 = vsub.s32 6, %v780
    %v782 = vrot.slane %v269, %v781
    %v785 = vlaneseq
    %v786 = vshrl.u32 %v785, 7
    %v787 = vsub.s32 2, %v786
    %v788 = vrot.slane %v778, %v787
    %v789 = vlaneseq
    %v790 = vshrl.u32 %v789, 7
    %v791 = vsub.s32 2, %v790
    %v792 = vrot.slane %v782, %v791
    %v793 = vmul.f32 %v757, %v788
    %v794 = vmul.f32 %v758, %v792
    %v795 = vmul.f32 %v759, %v788
    %v796 = vmul.f32 %v760, %v792
    %v797 = vmul.f32 %v761, %v788
    %v798 = vmul.f32 %v762, %v792
    %v799 = vmul.f32 %v763, %v788
    %v800 = vmul.f32 %v764, %v792
    %v801 = vmul.f32 %v765, %v788
    %v802 = vmul.f32 %v766, %v792
    %v803 = vmul.f32 %v767, %v788
    %v804 = vmul.f32 %v768, %v792
    %v805 = vmul.f32 %v769, %v788
    %v806 = vmul.f32 %v770, %v792
    %v807 = vmul.f32 %v771, %v788
    %v808 = vmul.f32 %v772, %v792
    %v809 = vmul.f32 %v773, %v788
    %v810 = vmul.f32 %v774, %v792
    %v829 = vrot.slane %v793, 1
    %v830 = vrot.slane %v795, 1
    %v831 = vsel %vm555, %v829, %v830
    %v832 = vrot.slane %v794, 1
    %v833 = vrot.slane %v796, 1
    %v834 = vsel %vm555, %v832, %v833
    %v835 = vrot.slane %v797, 1
    %v836 = vsel %vm555, %v830, %v835
    %v837 = vrot.slane %v798, 1
    %v838 = vsel %vm555, %v833, %v837
    %v839 = vrot.slane %v799, 1
    %v840 = vsel %vm555, %v835, %v839
    %v841 = vrot.slane %v800, 1
    %v842 = vsel %vm555, %v837, %v841
    %v843 = vrot.slane %v801, 1
    %v844 = vsel %vm555, %v839, %v843
    %v845 = vrot.slane %v802, 1
    %v846 = vsel %vm555, %v841, %v845
    %v847 = vrot.slane %v803, 1
    %v848 = vsel %vm555, %v843, %v847
    %v849 = vrot.slane %v804, 1
    %v850 = vsel %vm555, %v845, %v849
    %v851 = vrot.slane %v805, 1
    %v852 = vsel %vm555, %v847, %v851
    %v853 = vrot.slane %v806, 1
    %v854 = vsel %vm555, %v849, %v853
    %v855 = vrot.slane %v807, 1
    %v856 = vsel %vm555, %v851, %v855
    %v857 = vrot.slane %v808, 1
    %v858 = vsel %vm555, %v853, %v857
    %v859 = vrot.slane %v809, 1
    %v860 = vsel %vm555, %v855, %v859
    %v861 = vrot.slane %v810, 1
    %v862 = vsel %vm555, %v857, %v861
    %v879 = vadd.f32 %v703, %v831
    %v880 = vadd.f32 %v704, %v834
    %v881 = vadd.f32 %v705, %v836
    %v882 = vadd.f32 %v706, %v838
    %v883 = vadd.f32 %v707, %v840
    %v884 = vadd.f32 %v708, %v842
    %v885 = vadd.f32 %v709, %v844
    %v886 = vadd.f32 %v710, %v846
    %v887 = vadd.f32 %v711, %v848
    %v888 = vadd.f32 %v712, %v850
    %v889 = vadd.f32 %v713, %v852
    %v890 = vadd.f32 %v714, %v854
    %v891 = vadd.f32 %v715, %v856
    %v892 = vadd.f32 %v716, %v858
    %v893 = vadd.f32 %v717, %v860
    %v894 = vadd.f32 %v718, %v862
    %v895 = vlaneseq
    %v896 = vshrl.u32 %v895, 7
    %v897 = vsub.s32 1, %v896
    %v898 = vrot.slane %v271, %v897
    %v899 = vlaneseq
    %v900 = vshrl.u32 %v899, 7
    %v901 = vsub.s32 3, %v900
    %v902 = vrot.slane %v271, %v901
    %v905 = vlaneseq
    %v906 = vshrl.u32 %v905, 7
    %v907 = vsub.s32 1, %v906
    %v908 = vrot.slane %v898, %v907
    %v909 = vlaneseq
    %v910 = vshrl.u32 %v909, 7
    %v911 = vsub.s32 1, %v910
    %v912 = vrot.slane %v902, %v911
    %v913 = vadd.f32 %v879, %v908
    %v914 = vadd.f32 %v880, %v912
    %v915 = vadd.f32 %v881, %v908
    %v916 = vadd.f32 %v882, %v912
    %v917 = vadd.f32 %v883, %v908
    %v918 = vadd.f32 %v884, %v912
    %v919 = vadd.f32 %v885, %v908
    %v920 = vadd.f32 %v886, %v912
    %v921 = vadd.f32 %v887, %v908
    %v922 = vadd.f32 %v888, %v912
    %v923 = vadd.f32 %v889, %v908
    %v924 = vadd.f32 %v890, %v912
    %v925 = vadd.f32 %v891, %v908
    %v926 = vadd.f32 %v892, %v912
    %v927 = vadd.f32 %v893, %v908
    %v928 = vadd.f32 %v894, %v912
    %929 = vst [vmem:[#allocation2 + $0x28] sm:$0xff] %v913
    %930 = vst [vmem:[#allocation2 + $0x30] sm:$0xff] %v914
    %931 = vst [vmem:[#allocation2 + $0x48] sm:$0xff] %v915
    %932 = vst [vmem:[#allocation2 + $0x50] sm:$0xff] %v916
    %933 = vst [vmem:[#allocation2 + $0x68] sm:$0xff] %v917
    %934 = vst [vmem:[#allocation2 + $0x70] sm:$0xff] %v918
    %935 = vst [vmem:[#allocation2 + $0x88] sm:$0xff] %v919
    %936 = vst [vmem:[#allocation2 + $0x90] sm:$0xff] %v920
    %937 = vst [vmem:[#allocation2 + $0xa8] sm:$0xff] %v921
    %938 = vst [vmem:[#allocation2 + $0xb0] sm:$0xff] %v922
    %939 = vst [vmem:[#allocation2 + $0xc8] sm:$0xff] %v923
    %940 = vst [vmem:[#allocation2 + $0xd0] sm:$0xff] %v924
    %941 = vst [vmem:[#allocation2 + $0xe8] sm:$0xff] %v925
    %942 = vst [vmem:[#allocation2 + $0xf0] sm:$0xff] %v926
    %943 = vst [vmem:[#allocation2 + $0x108] sm:$0xff] %v927
    %944 = vst [vmem:[#allocation2 + $0x110] sm:$0xff] %v928
    %v946 = vlaneseq
    %v947 = vshrl.u32 %v946, 7
    %v948 = vsub.s32 1, %v947
    %v949 = vrot.slane %v270, %v948
    %v950 = vlaneseq
    %v951 = vshrl.u32 %v950, 7
    %v952 = vsub.s32 5, %v951
    %v953 = vrot.slane %v270, %v952
    %v956 = vlaneseq
    %v957 = vshrl.u32 %v956, 7
    %v958 = vsub.s32 1, %v957
    %v959 = vrot.slane %v949, %v958
    %v960 = vlaneseq
    %v961 = vshrl.u32 %v960, 7
    %v962 = vsub.s32 1, %v961
    %v963 = vrot.slane %v953, %v962
    %v964 = vmul.f32 %v913, %v959
    %v965 = vmul.f32 %v914, %v963
    %v966 = vmul.f32 %v915, %v959
    %v967 = vmul.f32 %v916, %v963
    %v968 = vmul.f32 %v917, %v959
    %v969 = vmul.f32 %v918, %v963
    %v970 = vmul.f32 %v919, %v959
    %v971 = vmul.f32 %v920, %v963
    %v972 = vmul.f32 %v921, %v959
    %v973 = vmul.f32 %v922, %v963
    %v974 = vmul.f32 %v923, %v959
    %v975 = vmul.f32 %v924, %v963
    %v976 = vmul.f32 %v925, %v959
    %v977 = vmul.f32 %v926, %v963
    %v978 = vmul.f32 %v927, %v959
    %v979 = vmul.f32 %v928, %v963
    %v980 = vld [vmem:[#allocation2 + $0x20] sm:$0xff]
    %v981 = vld [vmem:[#allocation2 + $0x28] sm:$0xff]
    %v982 = vld [vmem:[#allocation2 + $0x30] sm:$0xff]
    %v983 = vld [vmem:[#allocation2 + $0x40] sm:$0xff]
    %v984 = vld [vmem:[#allocation2 + $0x48] sm:$0xff]
    %v985 = vld [vmem:[#allocation2 + $0x50] sm:$0xff]
    %v986 = vld [vmem:[#allocation2 + $0x60] sm:$0xff]
    %v987 = vld [vmem:[#allocation2 + $0x68] sm:$0xff]
    %v988 = vld [vmem:[#allocation2 + $0x70] sm:$0xff]
    %v989 = vld [vmem:[#allocation2 + $0x80] sm:$0xff]
    %v990 = vld [vmem:[#allocation2 + $0x88] sm:$0xff]
    %v991 = vld [vmem:[#allocation2 + $0x90] sm:$0xff]
    %v992 = vld [vmem:[#allocation2 + $0xa0] sm:$0xff]
    %v993 = vld [vmem:[#allocation2 + $0xa8] sm:$0xff]
    %v994 = vld [vmem:[#allocation2 + $0xb0] sm:$0xff]
    %v995 = vld [vmem:[#allocation2 + $0xc0] sm:$0xff]
    %v996 = vld [vmem:[#allocation2 + $0xc8] sm:$0xff]
    %v997 = vld [vmem:[#allocation2 + $0xd0] sm:$0xff]
    %v998 = vld [vmem:[#allocation2 + $0xe0] sm:$0xff]
    %v999 = vld [vmem:[#allocation2 + $0xe8] sm:$0xff]
    %v1000 = vld [vmem:[#allocation2 + $0xf0] sm:$0xff]
    %v1001 = vld [vmem:[#allocation2 + $0x100] sm:$0xff]
    %v1002 = vld [vmem:[#allocation2 + $0x108] sm:$0xff]
    %v1003 = vld [vmem:[#allocation2 + $0x110] sm:$0xff]
    %v1004 = vlaneseq
    %v1005 = vshrl.u32 %v1004, 7
    %v1006 = vsub.s32 0, %v1005
    %v1007 = vrot.slane %v270, %v1006
    %v1008 = vlaneseq
    %v1009 = vshrl.u32 %v1008, 7
    %v1010 = vsub.s32 4, %v1009
    %v1011 = vrot.slane %v270, %v1010
    %v1014 = vlaneseq
    %v1015 = vshrl.u32 %v1014, 7
    %v1016 = vsub.s32 0, %v1015
    %v1017 = vrot.slane %v1007, %v1016
    %v1018 = vlaneseq
    %v1019 = vshrl.u32 %v1018, 7
    %v1020 = vsub.s32 0, %v1019
    %v1021 = vrot.slane %v1011, %v1020
    %1024 = vrot.lane.b32.xlu0 %v1017, 96
    %v1025 = vpop.permute.xlu0 %1024
    %1026 = vrot.lane.b32.xlu0 %v1021, 96
    %v1027 = vpop.permute.xlu0 %1026
    %vm1028 = vcmask 785408
    %v1029 = vsel %vm1028, %v1025, %v1027
    %v1033 = vmul.f32 %v980, %v1025
    %v1034 = vmul.f32 %v981, %v1029
    %v1035 = vmul.f32 %v982, %v1027
    %v1036 = vmul.f32 %v983, %v1025
    %v1037 = vmul.f32 %v984, %v1029
    %v1038 = vmul.f32 %v985, %v1027
    %v1039 = vmul.f32 %v986, %v1025
    %v1040 = vmul.f32 %v987, %v1029
    %v1041 = vmul.f32 %v988, %v1027
    %v1042 = vmul.f32 %v989, %v1025
    %v1043 = vmul.f32 %v990, %v1029
    %v1044 = vmul.f32 %v991, %v1027
    %v1045 = vmul.f32 %v992, %v1025
    %v1046 = vmul.f32 %v993, %v1029
    %v1047 = vmul.f32 %v994, %v1027
    %v1048 = vmul.f32 %v995, %v1025
    %v1049 = vmul.f32 %v996, %v1029
    %v1050 = vmul.f32 %v997, %v1027
    %v1051 = vmul.f32 %v998, %v1025
    %v1052 = vmul.f32 %v999, %v1029
    %v1053 = vmul.f32 %v1000, %v1027
    %v1054 = vmul.f32 %v1001, %v1025
    %v1055 = vmul.f32 %v1002, %v1029
    %v1056 = vmul.f32 %v1003, %v1027
    %1081 = vrot.lane.b32.xlu0 %v1033, 32
    %v1082 = vpop.permute.xlu0 %1081
    %1083 = vrot.lane.b32.xlu0 %v1034, 32
    %v1084 = vpop.permute.xlu0 %1083
    %1085 = vrot.lane.b32.xlu0 %v1035, 32
    %v1086 = vpop.permute.xlu0 %1085
    %1087 = vrot.lane.b32.xlu0 %v1036, 32
    %v1088 = vpop.permute.xlu0 %1087
    %1089 = vrot.lane.b32.xlu0 %v1037, 32
    %v1090 = vpop.permute.xlu0 %1089
    %1091 = vrot.lane.b32.xlu0 %v1038, 32
    %v1092 = vpop.permute.xlu0 %1091
    %1093 = vrot.lane.b32.xlu0 %v1039, 32
    %v1094 = vpop.permute.xlu0 %1093
    %1095 = vrot.lane.b32.xlu0 %v1040, 32
    %v1096 = vpop.permute.xlu0 %1095
    %1097 = vrot.lane.b32.xlu0 %v1041, 32
    %v1098 = vpop.permute.xlu0 %1097
    %1099 = vrot.lane.b32.xlu0 %v1042, 32
    %v1100 = vpop.permute.xlu0 %1099
    %1101 = vrot.lane.b32.xlu0 %v1043, 32
    %v1102 = vpop.permute.xlu0 %1101
    %1103 = vrot.lane.b32.xlu0 %v1044, 32
    %v1104 = vpop.permute.xlu0 %1103
    %1105 = vrot.lane.b32.xlu0 %v1045, 32
    %v1106 = vpop.permute.xlu0 %1105
    %1107 = vrot.lane.b32.xlu0 %v1046, 32
    %v1108 = vpop.permute.xlu0 %1107
    %1109 = vrot.lane.b32.xlu0 %v1047, 32
    %v1110 = vpop.permute.xlu0 %1109
    %1111 = vrot.lane.b32.xlu0 %v1048, 32
    %v1112 = vpop.permute.xlu0 %1111
    %1113 = vrot.lane.b32.xlu0 %v1049, 32
    %v1114 = vpop.permute.xlu0 %1113
    %1115 = vrot.lane.b32.xlu0 %v1050, 32
    %v1116 = vpop.permute.xlu0 %1115
    %1117 = vrot.lane.b32.xlu0 %v1051, 32
    %v1118 = vpop.permute.xlu0 %1117
    %1119 = vrot.lane.b32.xlu0 %v1052, 32
    %v1120 = vpop.permute.xlu0 %1119
    %1121 = vrot.lane.b32.xlu0 %v1053, 32
    %v1122 = vpop.permute.xlu0 %1121
    %1123 = vrot.lane.b32.xlu0 %v1054, 32
    %v1124 = vpop.permute.xlu0 %1123
    %1125 = vrot.lane.b32.xlu0 %v1055, 32
    %v1126 = vpop.permute.xlu0 %1125
    %1127 = vrot.lane.b32.xlu0 %v1056, 32
    %v1128 = vpop.permute.xlu0 %1127
    %vm1129 = vcmask 261120
    %v1130 = vsel %vm1129, %v1082, %v1084
    %v1131 = vsel %vm1129, %v1084, %v1086
    %v1132 = vsel %vm1129, %v1088, %v1090
    %v1133 = vsel %vm1129, %v1090, %v1092
    %v1134 = vsel %vm1129, %v1094, %v1096
    %v1135 = vsel %vm1129, %v1096, %v1098
    %v1136 = vsel %vm1129, %v1100, %v1102
    %v1137 = vsel %vm1129, %v1102, %v1104
    %v1138 = vsel %vm1129, %v1106, %v1108
    %v1139 = vsel %vm1129, %v1108, %v1110
    %v1140 = vsel %vm1129, %v1112, %v1114
    %v1141 = vsel %vm1129, %v1114, %v1116
    %v1142 = vsel %vm1129, %v1118, %v1120
    %v1143 = vsel %vm1129, %v1120, %v1122
    %v1144 = vsel %vm1129, %v1124, %v1126
    %v1145 = vsel %vm1129, %v1126, %v1128
    %v1162 = vadd.f32 %v964, %v1130
    %v1163 = vadd.f32 %v965, %v1131
    %v1164 = vadd.f32 %v966, %v1132
    %v1165 = vadd.f32 %v967, %v1133
    %v1166 = vadd.f32 %v968, %v1134
    %v1167 = vadd.f32 %v969, %v1135
    %v1168 = vadd.f32 %v970, %v1136
    %v1169 = vadd.f32 %v971, %v1137
    %v1170 = vadd.f32 %v972, %v1138
    %v1171 = vadd.f32 %v973, %v1139
    %v1172 = vadd.f32 %v974, %v1140
    %v1173 = vadd.f32 %v975, %v1141
    %v1174 = vadd.f32 %v976, %v1142
    %v1175 = vadd.f32 %v977, %v1143
    %v1176 = vadd.f32 %v978, %v1144
    %v1177 = vadd.f32 %v979, %v1145
    %v1178 = vld [vmem:[#allocation2 + $0x38] sm:$0xff]
    %v1179 = vld [vmem:[#allocation2 + $0x58] sm:$0xff]
    %v1180 = vld [vmem:[#allocation2 + $0x78] sm:$0xff]
    %v1181 = vld [vmem:[#allocation2 + $0x98] sm:$0xff]
    %v1182 = vld [vmem:[#allocation2 + $0xb8] sm:$0xff]
    %v1183 = vld [vmem:[#allocation2 + $0xd8] sm:$0xff]
    %v1184 = vld [vmem:[#allocation2 + $0xf8] sm:$0xff]
    %v1185 = vld [vmem:[#allocation2 + $0x118] sm:$0xff]
    %v1186 = vlaneseq
    %v1187 = vshrl.u32 %v1186, 7
    %v1188 = vsub.s32 2, %v1187
    %v1189 = vrot.slane %v270, %v1188
    %v1190 = vlaneseq
    %v1191 = vshrl.u32 %v1190, 7
    %v1192 = vsub.s32 6, %v1191
    %v1193 = vrot.slane %v270, %v1192
    %v1196 = vlaneseq
    %v1197 = vshrl.u32 %v1196, 7
    %v1198 = vsub.s32 2, %v1197
    %v1199 = vrot.slane %v1189, %v1198
    %v1200 = vlaneseq
    %v1201 = vshrl.u32 %v1200, 7
    %v1202 = vsub.s32 2, %v1201
    %v1203 = vrot.slane %v1193, %v1202
    %1206 = vrot.lane.b32.xlu0 %v1199, 32
    %v1207 = vpop.permute.xlu0 %1206
    %1208 = vrot.lane.b32.xlu0 %v1203, 32
    %v1209 = vpop.permute.xlu0 %1208
    %v1210 = vsel %vm1129, %v1207, %v1209
    %v1214 = vmul.f32 %v981, %v1207
    %v1215 = vmul.f32 %v982, %v1210
    %v1216 = vmul.f32 %v1178, %v1209
    %v1217 = vmul.f32 %v984, %v1207
    %v1218 = vmul.f32 %v985, %v1210
    %v1219 = vmul.f32 %v1179, %v1209
    %v1220 = vmul.f32 %v987, %v1207
    %v1221 = vmul.f32 %v988, %v1210
    %v1222 = vmul.f32 %v1180, %v1209
    %v1223 = vmul.f32 %v990, %v1207
    %v1224 = vmul.f32 %v991, %v1210
    %v1225 = vmul.f32 %v1181, %v1209
    %v1226 = vmul.f32 %v993, %v1207
    %v1227 = vmul.f32 %v994, %v1210
    %v1228 = vmul.f32 %v1182, %v1209
    %v1229 = vmul.f32 %v996, %v1207
    %v1230 = vmul.f32 %v997, %v1210
    %v1231 = vmul.f32 %v1183, %v1209
    %v1232 = vmul.f32 %v999, %v1207
    %v1233 = vmul.f32 %v1000, %v1210
    %v1234 = vmul.f32 %v1184, %v1209
    %v1235 = vmul.f32 %v1002, %v1207
    %v1236 = vmul.f32 %v1003, %v1210
    %v1237 = vmul.f32 %v1185, %v1209
    %1262 = vrot.lane.b32.xlu0 %v1214, 96
    %v1263 = vpop.permute.xlu0 %1262
    %1264 = vrot.lane.b32.xlu0 %v1215, 96
    %v1265 = vpop.permute.xlu0 %1264
    %1266 = vrot.lane.b32.xlu0 %v1216, 96
    %v1267 = vpop.permute.xlu0 %1266
    %1268 = vrot.lane.b32.xlu0 %v1217, 96
    %v1269 = vpop.permute.xlu0 %1268
    %1270 = vrot.lane.b32.xlu0 %v1218, 96
    %v1271 = vpop.permute.xlu0 %1270
    %1272 = vrot.lane.b32.xlu0 %v1219, 96
    %v1273 = vpop.permute.xlu0 %1272
    %1274 = vrot.lane.b32.xlu0 %v1220, 96
    %v1275 = vpop.permute.xlu0 %1274
    %1276 = vrot.lane.b32.xlu0 %v1221, 96
    %v1277 = vpop.permute.xlu0 %1276
    %1278 = vrot.lane.b32.xlu0 %v1222, 96
    %v1279 = vpop.permute.xlu0 %1278
    %1280 = vrot.lane.b32.xlu0 %v1223, 96
    %v1281 = vpop.permute.xlu0 %1280
    %1282 = vrot.lane.b32.xlu0 %v1224, 96
    %v1283 = vpop.permute.xlu0 %1282
    %1284 = vrot.lane.b32.xlu0 %v1225, 96
    %v1285 = vpop.permute.xlu0 %1284
    %1286 = vrot.lane.b32.xlu0 %v1226, 96
    %v1287 = vpop.permute.xlu0 %1286
    %1288 = vrot.lane.b32.xlu0 %v1227, 96
    %v1289 = vpop.permute.xlu0 %1288
    %1290 = vrot.lane.b32.xlu0 %v1228, 96
    %v1291 = vpop.permute.xlu0 %1290
    %1292 = vrot.lane.b32.xlu0 %v1229, 96
    %v1293 = vpop.permute.xlu0 %1292
    %1294 = vrot.lane.b32.xlu0 %v1230, 96
    %v1295 = vpop.permute.xlu0 %1294
    %1296 = vrot.lane.b32.xlu0 %v1231, 96
    %v1297 = vpop.permute.xlu0 %1296
    %1298 = vrot.lane.b32.xlu0 %v1232, 96
    %v1299 = vpop.permute.xlu0 %1298
    %1300 = vrot.lane.b32.xlu0 %v1233, 96
    %v1301 = vpop.permute.xlu0 %1300
    %1302 = vrot.lane.b32.xlu0 %v1234, 96
    %v1303 = vpop.permute.xlu0 %1302
    %1304 = vrot.lane.b32.xlu0 %v1235, 96
    %v1305 = vpop.permute.xlu0 %1304
    %1306 = vrot.lane.b32.xlu0 %v1236, 96
    %v1307 = vpop.permute.xlu0 %1306
    %1308 = vrot.lane.b32.xlu0 %v1237, 96
    %v1309 = vpop.permute.xlu0 %1308
    %v1310 = vsel %vm1028, %v1263, %v1265
    %v1311 = vsel %vm1028, %v1265, %v1267
    %v1312 = vsel %vm1028, %v1269, %v1271
    %v1313 = vsel %vm1028, %v1271, %v1273
    %v1314 = vsel %vm1028, %v1275, %v1277
    %v1315 = vsel %vm1028, %v1277, %v1279
    %v1316 = vsel %vm1028, %v1281, %v1283
    %v1317 = vsel %vm1028, %v1283, %v1285
    %v1318 = vsel %vm1028, %v1287, %v1289
    %v1319 = vsel %vm1028, %v1289, %v1291
    %v1320 = vsel %vm1028, %v1293, %v1295
    %v1321 = vsel %vm1028, %v1295, %v1297
    %v1322 = vsel %vm1028, %v1299, %v1301
    %v1323 = vsel %vm1028, %v1301, %v1303
    %v1324 = vsel %vm1028, %v1305, %v1307
    %v1325 = vsel %vm1028, %v1307, %v1309
    %v1342 = vadd.f32 %v1162, %v1310
    %v1343 = vadd.f32 %v1163, %v1311
    %v1344 = vadd.f32 %v1164, %v1312
    %v1345 = vadd.f32 %v1165, %v1313
    %v1346 = vadd.f32 %v1166, %v1314
    %v1347 = vadd.f32 %v1167, %v1315
    %v1348 = vadd.f32 %v1168, %v1316
    %v1349 = vadd.f32 %v1169, %v1317
    %v1350 = vadd.f32 %v1170, %v1318
    %v1351 = vadd.f32 %v1171, %v1319
    %v1352 = vadd.f32 %v1172, %v1320
    %v1353 = vadd.f32 %v1173, %v1321
    %v1354 = vadd.f32 %v1174, %v1322
    %v1355 = vadd.f32 %v1175, %v1323
    %v1356 = vadd.f32 %v1176, %v1324
    %v1357 = vadd.f32 %v1177, %v1325
    %v1358 = vld [vmem:[%s3] sm:$0xf]
    %v1359 = vadd.f32 %v1342, %v1344
    %v1360 = vadd.f32 %v1359, %v1346
    %v1361 = vadd.f32 %v1360, %v1348
    %v1362 = vadd.f32 %v1361, %v1350
    %v1363 = vadd.f32 %v1362, %v1352
    %v1364 = vadd.f32 %v1363, %v1354
    %v1365 = vadd.f32 %v1364, %v1356
    %v1366 = vrot.slane %v1365, 4
    %v1367 = vadd.f32 %v1365, %v1366
    %v1368 = vrot.slane %v1367, 2
    %v1369 = vadd.f32 %v1367, %v1368
    %v1370 = vrot.slane %v1369, 1
    %v1371 = vadd.f32 %v1369, %v1370
    %v1372 = vadd.f32 %v1343, %v1345
    %v1373 = vadd.f32 %v1372, %v1347
    %v1374 = vadd.f32 %v1373, %v1349
    %v1375 = vadd.f32 %v1374, %v1351
    %v1376 = vadd.f32 %v1375, %v1353
    %v1377 = vadd.f32 %v1376, %v1355
    %v1378 = vadd.f32 %v1377, %v1357
    %v1379 = vrot.slane %v1378, 4
    %v1380 = vadd.f32 %v1378, %v1379
    %v1381 = vrot.slane %v1380, 2
    %v1382 = vadd.f32 %v1380, %v1381
    %v1383 = vrot.slane %v1382, 1
    %v1384 = vadd.f32 %v1382, %v1383
    %1385 = vrot.lane.b32.xlu0 %v1371, 16
    %v1386 = vpop.permute.xlu0 %1385
    %1387 = vrot.lane.b32.xlu0 %v1384, 16
    %v1388 = vpop.permute.xlu0 %1387
    %v1389 = vlaneseq
    %v1390 = vand.u32 %v1389, 127
    %vm1391 = vcmp.lt.s32.totalorder %v1390, 16
    %v1392 = vsel %vm1391, %v1386, %v1388
    %v1393 = vsel %vm1391, %v1388, %v1386
    %v1394 = vadd.f32 %v1371, %v1393
    %v1395 = vadd.f32 %v1384, %v1392
    %1396 = vrot.lane.b32.xlu0 %v1394, 32
    %v1397 = vpop.permute.xlu0 %1396
    %1398 = vrot.lane.b32.xlu0 %v1395, 32
    %v1399 = vpop.permute.xlu0 %1398
    %vm1400 = vcmp.lt.s32.totalorder %v1390, 32
    %v1401 = vsel %vm1400, %v1397, %v1399
    %v1402 = vsel %vm1400, %v1399, %v1397
    %v1403 = vadd.f32 %v1394, %v1402
    %v1404 = vadd.f32 %v1395, %v1401
    %1405 = vrot.lane.b32.xlu0 %v1403, 64
    %v1406 = vpop.permute.xlu0 %1405
    %1407 = vrot.lane.b32.xlu0 %v1404, 64
    %v1408 = vpop.permute.xlu0 %1407
    %vm1409 = vcmp.lt.s32.totalorder %v1390, 64
    %v1410 = vsel %vm1409, %v1406, %v1408
    %v1411 = vsel %vm1409, %v1408, %v1406
    %v1412 = vadd.f32 %v1403, %v1411
    %v1413 = vadd.f32 %v1404, %v1410
    %v1414 = vadd.f32 %v1412, %v1413
    %v1415 = vmul.f32 %v1342, %v1342
    %v1416 = vmul.f32 %v1343, %v1343
    %v1417 = vmul.f32 %v1344, %v1344
    %v1418 = vmul.f32 %v1345, %v1345
    %v1419 = vmul.f32 %v1346, %v1346
    %v1420 = vmul.f32 %v1347, %v1347
    %v1421 = vmul.f32 %v1348, %v1348
    %v1422 = vmul.f32 %v1349, %v1349
    %v1423 = vmul.f32 %v1350, %v1350
    %v1424 = vmul.f32 %v1351, %v1351
    %v1425 = vmul.f32 %v1352, %v1352
    %v1426 = vmul.f32 %v1353, %v1353
    %v1427 = vmul.f32 %v1354, %v1354
    %v1428 = vmul.f32 %v1355, %v1355
    %v1429 = vmul.f32 %v1356, %v1356
    %v1430 = vmul.f32 %v1357, %v1357
    %v1431 = vadd.f32 %v1415, %v1417
    %v1432 = vadd.f32 %v1431, %v1419
    %v1433 = vadd.f32 %v1432, %v1421
    %v1434 = vadd.f32 %v1433, %v1423
    %v1435 = vadd.f32 %v1434, %v1425
    %v1436 = vadd.f32 %v1435, %v1427
    %v1437 = vadd.f32 %v1436, %v1429
    %v1438 = vrot.slane %v1437, 4
    %v1439 = vadd.f32 %v1437, %v1438
    %v1440 = vrot.slane %v1439, 2
    %v1441 = vadd.f32 %v1439, %v1440
    %v1442 = vrot.slane %v1441, 1
    %v1443 = vadd.f32 %v1441, %v1442
    %v1444 = vadd.f32 %v1416, %v1418
    %v1445 = vadd.f32 %v1444, %v1420
    %v1446 = vadd.f32 %v1445, %v1422
    %v1447 = vadd.f32 %v1446, %v1424
    %v1448 = vadd.f32 %v1447, %v1426
    %v1449 = vadd.f32 %v1448, %v1428
    %v1450 = vadd.f32 %v1449, %v1430
    %v1451 = vrot.slane %v1450, 4
    %v1452 = vadd.f32 %v1450, %v1451
    %v1453 = vrot.slane %v1452, 2
    %v1454 = vadd.f32 %v1452, %v1453
    %v1455 = vrot.slane %v1454, 1
    %v1456 = vadd.f32 %v1454, %v1455
    %1457 = vrot.lane.b32.xlu0 %v1443, 16
    %v1458 = vpop.permute.xlu0 %1457
    %1459 = vrot.lane.b32.xlu0 %v1456, 16
    %v1460 = vpop.permute.xlu0 %1459
    %v1461 = vsel %vm1391, %v1458, %v1460
    %v1462 = vsel %vm1391, %v1460, %v1458
    %v1463 = vadd.f32 %v1443, %v1462
    %v1464 = vadd.f32 %v1456, %v1461
    %1465 = vrot.lane.b32.xlu0 %v1463, 32
    %v1466 = vpop.permute.xlu0 %1465
    %1467 = vrot.lane.b32.xlu0 %v1464, 32
    %v1468 = vpop.permute.xlu0 %1467
    %v1469 = vsel %vm1400, %v1466, %v1468
    %v1470 = vsel %vm1400, %v1468, %v1466
    %v1471 = vadd.f32 %v1463, %v1470
    %v1472 = vadd.f32 %v1464, %v1469
    %1473 = vrot.lane.b32.xlu0 %v1471, 64
    %v1474 = vpop.permute.xlu0 %1473
    %1475 = vrot.lane.b32.xlu0 %v1472, 64
    %v1476 = vpop.permute.xlu0 %1475
    %v1477 = vsel %vm1409, %v1474, %v1476
    %v1478 = vsel %vm1409, %v1476, %v1474
    %v1479 = vadd.f32 %v1471, %v1478
    %v1480 = vadd.f32 %v1472, %v1477
    %v1481 = vadd.f32 %v1479, %v1480
    %v1482 = vmul.f32 %v1414, 0.0009765625
    %v1483 = vmul.f32 %v1481, 0.0009765625
    %v1484 = vmul.f32 %v1482, %v1482
    %v1485 = vsub.f32 %v1483, %v1484
    %v1486 = vmax.f32 %v1485, 0.0
    %v1487 = vadd.f32 %v1486, 1e-05
    %v1488 = vrsqrt.pop %v1487
    %v1490 = vcombine.low %v1488, %v1488
    %v1492 = vunpack.c.l.s4 1983009808
    %v1493 = vunpack.c.0.s8 %v1492
    %v1494 = vlaneseq
    %v1495 = vshrl.u32 %v1494, 7
    %v1496 = vsub.s32 %v1493, %v1495
    %v1497 = vrot.slane %v1490, %v1496
    %v1499 = vmul.f32 %v1358, %v1497
    %v1501 = vlaneseq
    %v1502 = vshrl.u32 %v1501, 7
    %v1503 = vsub.s32 0, %v1502
    %v1504 = vrot.slane %v1499, %v1503
    %v1505 = vlaneseq
    %v1506 = vshrl.u32 %v1505, 7
    %v1507 = vsub.s32 2, %v1506
    %v1508 = vrot.slane %v1499, %v1507
    %v1511 = vmul.f32 %v1482, %v1504
    %v1512 = vmul.f32 %v1482, %v1508
    %v1515 = vcombine.low %v1511, %v1512
    %v1517 = vunpack.c.l.s4 1983009808
    %v1518 = vunpack.c.0.s8 %v1517
    %v1519 = vlaneseq
    %v1520 = vshrl.u32 %v1519, 7
    %v1521 = vsub.s32 %v1518, %v1520
    %v1522 = vrot.slane %v1515, %v1521
    %v1523 = vrot.slane %v1522, 7
    %v1525 = vsub.f32 %v1358, %v1523
    %v1526 = vlaneseq
    %v1527 = vshrl.u32 %v1526, 7
    %v1528 = vsub.s32 0, %v1527
    %v1529 = vrot.slane %v1504, %v1528
    %v1530 = vlaneseq
    %v1531 = vshrl.u32 %v1530, 7
    %v1532 = vsub.s32 0, %v1531
    %v1533 = vrot.slane %v1508, %v1532
    %v1534 = vmul.f32 %v1342, %v1529
    %v1535 = vmul.f32 %v1343, %v1533
    %v1536 = vmul.f32 %v1344, %v1529
    %v1537 = vmul.f32 %v1345, %v1533
    %v1538 = vmul.f32 %v1346, %v1529
    %v1539 = vmul.f32 %v1347, %v1533
    %v1540 = vmul.f32 %v1348, %v1529
    %v1541 = vmul.f32 %v1349, %v1533
    %v1542 = vmul.f32 %v1350, %v1529
    %v1543 = vmul.f32 %v1351, %v1533
    %v1544 = vmul.f32 %v1352, %v1529
    %v1545 = vmul.f32 %v1353, %v1533
    %v1546 = vmul.f32 %v1354, %v1529
    %v1547 = vmul.f32 %v1355, %v1533
    %v1548 = vmul.f32 %v1356, %v1529
    %v1549 = vmul.f32 %v1357, %v1533
    %v1551 = vlaneseq
    %v1552 = vshrl.u32 %v1551, 7
    %v1553 = vsub.s32 1, %v1552
    %v1554 = vrot.slane %v1525, %v1553
    %v1555 = vlaneseq
    %v1556 = vshrl.u32 %v1555, 7
    %v1557 = vsub.s32 3, %v1556
    %v1558 = vrot.slane %v1525, %v1557
    %v1561 = vlaneseq
    %v1562 = vshrl.u32 %v1561, 7
    %v1563 = vsub.s32 1, %v1562
    %v1564 = vrot.slane %v1554, %v1563
    %v1565 = vlaneseq
    %v1566 = vshrl.u32 %v1565, 7
    %v1567 = vsub.s32 1, %v1566
    %v1568 = vrot.slane %v1558, %v1567
    %v1569 = vadd.f32 %v1534, %v1564
    %v1570 = vadd.f32 %v1535, %v1568
    %v1571 = vadd.f32 %v1536, %v1564
    %v1572 = vadd.f32 %v1537, %v1568
    %v1573 = vadd.f32 %v1538, %v1564
    %v1574 = vadd.f32 %v1539, %v1568
    %v1575 = vadd.f32 %v1540, %v1564
    %v1576 = vadd.f32 %v1541, %v1568
    %v1577 = vadd.f32 %v1542, %v1564
    %v1578 = vadd.f32 %v1543, %v1568
    %v1579 = vadd.f32 %v1544, %v1564
    %v1580 = vadd.f32 %v1545, %v1568
    %v1581 = vadd.f32 %v1546, %v1564
    %v1582 = vadd.f32 %v1547, %v1568
    %v1583 = vadd.f32 %v1548, %v1564
    %v1584 = vadd.f32 %v1549, %v1568
    %v1585 = vmul.f32 %v1569, 0.5
    %v1586 = vmul.f32 %v1570, 0.5
    %v1587 = vmul.f32 %v1571, 0.5
    %v1588 = vmul.f32 %v1572, 0.5
    %v1589 = vmul.f32 %v1573, 0.5
    %v1590 = vmul.f32 %v1574, 0.5
    %v1591 = vmul.f32 %v1575, 0.5
    %v1592 = vmul.f32 %v1576, 0.5
    %v1593 = vmul.f32 %v1577, 0.5
    %v1594 = vmul.f32 %v1578, 0.5
    %v1595 = vmul.f32 %v1579, 0.5
    %v1596 = vmul.f32 %v1580, 0.5
    %v1597 = vmul.f32 %v1581, 0.5
    %v1598 = vmul.f32 %v1582, 0.5
    %v1599 = vmul.f32 %v1583, 0.5
    %v1600 = vmul.f32 %v1584, 0.5
    %v1601 = vmul.f32 %v1569, 0.70710677
    %v1602 = vmul.f32 %v1570, 0.70710677
    %v1603 = vmul.f32 %v1571, 0.70710677
    %v1604 = vmul.f32 %v1572, 0.70710677
    %v1605 = vmul.f32 %v1573, 0.70710677
    %v1606 = vmul.f32 %v1574, 0.70710677
    %v1607 = vmul.f32 %v1575, 0.70710677
    %v1608 = vmul.f32 %v1576, 0.70710677
    %v1609 = vmul.f32 %v1577, 0.70710677
    %v1610 = vmul.f32 %v1578, 0.70710677
    %v1611 = vmul.f32 %v1579, 0.70710677
    %v1612 = vmul.f32 %v1580, 0.70710677
    %v1613 = vmul.f32 %v1581, 0.70710677
    %v1614 = vmul.f32 %v1582, 0.70710677
    %v1615 = vmul.f32 %v1583, 0.70710677
    %v1616 = vmul.f32 %v1584, 0.70710677
    %v1617 = verf.f32.pop %v1601
    %v1618 = verf.f32.pop %v1602
    %v1619 = verf.f32.pop %v1603
    %v1620 = verf.f32.pop %v1604
    %v1621 = verf.f32.pop %v1605
    %v1622 = verf.f32.pop %v1606
    %v1623 = verf.f32.pop %v1607
    %v1624 = verf.f32.pop %v1608
    %v1625 = verf.f32.pop %v1609
    %v1626 = verf.f32.pop %v1610
    %v1627 = verf.f32.pop %v1611
    %v1628 = verf.f32.pop %v1612
    %v1629 = verf.f32.pop %v1613
    %v1630 = verf.f32.pop %v1614
    %v1631 = verf.f32.pop %v1615
    %v1632 = verf.f32.pop %v1616
    %v1633 = vadd.f32 %v1617, 1.0
    %v1634 = vadd.f32 %v1618, 1.0
    %v1635 = vadd.f32 %v1619, 1.0
    %v1636 = vadd.f32 %v1620, 1.0
    %v1637 = vadd.f32 %v1621, 1.0
    %v1638 = vadd.f32 %v1622, 1.0
    %v1639 = vadd.f32 %v1623, 1.0
    %v1640 = vadd.f32 %v1624, 1.0
    %v1641 = vadd.f32 %v1625, 1.0
    %v1642 = vadd.f32 %v1626, 1.0
    %v1643 = vadd.f32 %v1627, 1.0
    %v1644 = vadd.f32 %v1628, 1.0
    %v1645 = vadd.f32 %v1629, 1.0
    %v1646 = vadd.f32 %v1630, 1.0
    %v1647 = vadd.f32 %v1631, 1.0
    %v1648 = vadd.f32 %v1632, 1.0
    %v1649 = vmul.f32 %v1585, %v1633
    %v1650 = vmul.f32 %v1586, %v1634
    %v1651 = vmul.f32 %v1587, %v1635
    %v1652 = vmul.f32 %v1588, %v1636
    %v1653 = vmul.f32 %v1589, %v1637
    %v1654 = vmul.f32 %v1590, %v1638
    %v1655 = vmul.f32 %v1591, %v1639
    %v1656 = vmul.f32 %v1592, %v1640
    %v1657 = vmul.f32 %v1593, %v1641
    %v1658 = vmul.f32 %v1594, %v1642
    %v1659 = vmul.f32 %v1595, %v1643
    %v1660 = vmul.f32 %v1596, %v1644
    %v1661 = vmul.f32 %v1597, %v1645
    %v1662 = vmul.f32 %v1598, %v1646
    %v1663 = vmul.f32 %v1599, %v1647
    %v1664 = vmul.f32 %v1600, %v1648
    %v1665 = vld [vmem:[#allocation9] sm:$0x77]
    %v1666 = vld [vmem:[#allocation9 + $0x8] sm:$0x77]
    %v1667 = vld [vmem:[#allocation9 + $0x10] sm:$0x77]
    %v1668 = vld [vmem:[%s5] sm:$0xf]
    %1669 = vst [vmem:[#allocation2 + $0x28] sm:$0xff] %v1649
    %1670 = vst [vmem:[#allocation2 + $0x30] sm:$0xff] %v1650
    %1671 = vst [vmem:[#allocation2 + $0x48] sm:$0xff] %v1651
    %1672 = vst [vmem:[#allocation2 + $0x50] sm:$0xff] %v1652
    %1673 = vst [vmem:[#allocation2 + $0x68] sm:$0xff] %v1653
    %1674 = vst [vmem:[#allocation2 + $0x70] sm:$0xff] %v1654
    %1675 = vst [vmem:[#allocation2 + $0x88] sm:$0xff] %v1655
    %1676 = vst [vmem:[#allocation2 + $0x90] sm:$0xff] %v1656
    %1677 = vst [vmem:[#allocation2 + $0xa8] sm:$0xff] %v1657
    %1678 = vst [vmem:[#allocation2 + $0xb0] sm:$0xff] %v1658
    %1679 = vst [vmem:[#allocation2 + $0xc8] sm:$0xff] %v1659
    %1680 = vst [vmem:[#allocation2 + $0xd0] sm:$0xff] %v1660
    %1681 = vst [vmem:[#allocation2 + $0xe8] sm:$0xff] %v1661
    %1682 = vst [vmem:[#allocation2 + $0xf0] sm:$0xff] %v1662
    %1683 = vst [vmem:[#allocation2 + $0x108] sm:$0xff] %v1663
    %1684 = vst [vmem:[#allocation2 + $0x110] sm:$0xff] %v1664
    %v1686 = vlaneseq
    %v1687 = vshrl.u32 %v1686, 7
    %v1688 = vsub.s32 1, %v1687
    %v1689 = vrot.slane %v1665, %v1688
    %v1690 = vlaneseq
    %v1691 = vshrl.u32 %v1690, 7
    %v1692 = vsub.s32 5, %v1691
    %v1693 = vrot.slane %v1665, %v1692
    %v1696 = vlaneseq
    %v1697 = vshrl.u32 %v1696, 7
    %v1698 = vsub.s32 1, %v1697
    %v1699 = vrot.slane %v1689, %v1698
    %v1700 = vlaneseq
    %v1701 = vshrl.u32 %v1700, 7
    %v1702 = vsub.s32 1, %v1701
    %v1703 = vrot.slane %v1693, %v1702
    %v1704 = vmul.f32 %v1649, %v1699
    %v1705 = vmul.f32 %v1650, %v1703
    %v1706 = vmul.f32 %v1651, %v1699
    %v1707 = vmul.f32 %v1652, %v1703
    %v1708 = vmul.f32 %v1653, %v1699
    %v1709 = vmul.f32 %v1654, %v1703
    %v1710 = vmul.f32 %v1655, %v1699
    %v1711 = vmul.f32 %v1656, %v1703
    %v1712 = vmul.f32 %v1657, %v1699
    %v1713 = vmul.f32 %v1658, %v1703
    %v1714 = vmul.f32 %v1659, %v1699
    %v1715 = vmul.f32 %v1660, %v1703
    %v1716 = vmul.f32 %v1661, %v1699
    %v1717 = vmul.f32 %v1662, %v1703
    %v1718 = vmul.f32 %v1663, %v1699
    %v1719 = vmul.f32 %v1664, %v1703
    %v1720 = vld [vmem:[#allocation2 + $0x8] sm:$0xff]
    %v1721 = vld [vmem:[#allocation2 + $0x10] sm:$0xff]
    %v1722 = vld [vmem:[#allocation2 + $0x28] sm:$0xff]
    %v1723 = vld [vmem:[#allocation2 + $0x30] sm:$0xff]
    %v1724 = vld [vmem:[#allocation2 + $0x48] sm:$0xff]
    %v1725 = vld [vmem:[#allocation2 + $0x50] sm:$0xff]
    %v1726 = vld [vmem:[#allocation2 + $0x68] sm:$0xff]
    %v1727 = vld [vmem:[#allocation2 + $0x70] sm:$0xff]
    %v1728 = vld [vmem:[#allocation2 + $0x88] sm:$0xff]
    %v1729 = vld [vmem:[#allocation2 + $0x90] sm:$0xff]
    %v1730 = vld [vmem:[#allocation2 + $0xa8] sm:$0xff]
    %v1731 = vld [vmem:[#allocation2 + $0xb0] sm:$0xff]
    %v1732 = vld [vmem:[#allocation2 + $0xc8] sm:$0xff]
    %v1733 = vld [vmem:[#allocation2 + $0xd0] sm:$0xff]
    %v1734 = vld [vmem:[#allocation2 + $0xe8] sm:$0xff]
    %v1735 = vld [vmem:[#allocation2 + $0xf0] sm:$0xff]
    %v1736 = vlaneseq
    %v1737 = vshrl.u32 %v1736, 7
    %v1738 = vsub.s32 0, %v1737
    %v1739 = vrot.slane %v1665, %v1738
    %v1740 = vlaneseq
    %v1741 = vshrl.u32 %v1740, 7
    %v1742 = vsub.s32 4, %v1741
    %v1743 = vrot.slane %v1665, %v1742
    %v1746 = vlaneseq
    %v1747 = vshrl.u32 %v1746, 7
    %v1748 = vsub.s32 0, %v1747
    %v1749 = vrot.slane %v1739, %v1748
    %v1750 = vlaneseq
    %v1751 = vshrl.u32 %v1750, 7
    %v1752 = vsub.s32 0, %v1751
    %v1753 = vrot.slane %v1743, %v1752
    %v1754 = vmul.f32 %v1720, %v1749
    %v1755 = vmul.f32 %v1721, %v1753
    %v1756 = vmul.f32 %v1722, %v1749
    %v1757 = vmul.f32 %v1723, %v1753
    %v1758 = vmul.f32 %v1724, %v1749
    %v1759 = vmul.f32 %v1725, %v1753
    %v1760 = vmul.f32 %v1726, %v1749
    %v1761 = vmul.f32 %v1727, %v1753
    %v1762 = vmul.f32 %v1728, %v1749
    %v1763 = vmul.f32 %v1729, %v1753
    %v1764 = vmul.f32 %v1730, %v1749
    %v1765 = vmul.f32 %v1731, %v1753
    %v1766 = vmul.f32 %v1732, %v1749
    %v1767 = vmul.f32 %v1733, %v1753
    %v1768 = vmul.f32 %v1734, %v1749
    %v1769 = vmul.f32 %v1735, %v1753
    %v1770 = vadd.f32 %v1704, %v1754
    %v1771 = vadd.f32 %v1705, %v1755
    %v1772 = vadd.f32 %v1706, %v1756
    %v1773 = vadd.f32 %v1707, %v1757
    %v1774 = vadd.f32 %v1708, %v1758
    %v1775 = vadd.f32 %v1709, %v1759
    %v1776 = vadd.f32 %v1710, %v1760
    %v1777 = vadd.f32 %v1711, %v1761
    %v1778 = vadd.f32 %v1712, %v1762
    %v1779 = vadd.f32 %v1713, %v1763
    %v1780 = vadd.f32 %v1714, %v1764
    %v1781 = vadd.f32 %v1715, %v1765
    %v1782 = vadd.f32 %v1716, %v1766
    %v1783 = vadd.f32 %v1717, %v1767
    %v1784 = vadd.f32 %v1718, %v1768
    %v1785 = vadd.f32 %v1719, %v1769
    %v1786 = vld [vmem:[#allocation2 + $0x108] sm:$0xff]
    %v1787 = vld [vmem:[#allocation2 + $0x110] sm:$0xff]
    %v1788 = vld [vmem:[#allocation2 + $0x128] sm:$0xff]
    %v1789 = vld [vmem:[#allocation2 + $0x130] sm:$0xff]
    %v1790 = vlaneseq
    %v1791 = vshrl.u32 %v1790, 7
    %v1792 = vsub.s32 2, %v1791
    %v1793 = vrot.slane %v1665, %v1792
    %v1794 = vlaneseq
    %v1795 = vshrl.u32 %v1794, 7
    %v1796 = vsub.s32 6, %v1795
    %v1797 = vrot.slane %v1665, %v1796
    %v1800 = vlaneseq
    %v1801 = vshrl.u32 %v1800, 7
    %v1802 = vsub.s32 2, %v1801
    %v1803 = vrot.slane %v1793, %v1802
    %v1804 = vlaneseq
    %v1805 = vshrl.u32 %v1804, 7
    %v1806 = vsub.s32 2, %v1805
    %v1807 = vrot.slane %v1797, %v1806
    %v1808 = vmul.f32 %v1724, %v1803
    %v1809 = vmul.f32 %v1725, %v1807
    %v1810 = vmul.f32 %v1726, %v1803
    %v1811 = vmul.f32 %v1727, %v1807
    %v1812 = vmul.f32 %v1728, %v1803
    %v1813 = vmul.f32 %v1729, %v1807
    %v1814 = vmul.f32 %v1730, %v1803
    %v1815 = vmul.f32 %v1731, %v1807
    %v1816 = vmul.f32 %v1732, %v1803
    %v1817 = vmul.f32 %v1733, %v1807
    %v1818 = vmul.f32 %v1734, %v1803
    %v1819 = vmul.f32 %v1735, %v1807
    %v1820 = vmul.f32 %v1786, %v1803
    %v1821 = vmul.f32 %v1787, %v1807
    %v1822 = vmul.f32 %v1788, %v1803
    %v1823 = vmul.f32 %v1789, %v1807
    %v1824 = vadd.f32 %v1770, %v1808
    %v1825 = vadd.f32 %v1771, %v1809
    %v1826 = vadd.f32 %v1772, %v1810
    %v1827 = vadd.f32 %v1773, %v1811
    %v1828 = vadd.f32 %v1774, %v1812
    %v1829 = vadd.f32 %v1775, %v1813
    %v1830 = vadd.f32 %v1776, %v1814
    %v1831 = vadd.f32 %v1777, %v1815
    %v1832 = vadd.f32 %v1778, %v1816
    %v1833 = vadd.f32 %v1779, %v1817
    %v1834 = vadd.f32 %v1780, %v1818
    %v1835 = vadd.f32 %v1781, %v1819
    %v1836 = vadd.f32 %v1782, %v1820
    %v1837 = vadd.f32 %v1783, %v1821
    %v1838 = vadd.f32 %v1784, %v1822
    %v1839 = vadd.f32 %v1785, %v1823
    %v1841 = vlaneseq
    %v1842 = vshrl.u32 %v1841, 7
    %v1843 = vsub.s32 0, %v1842
    %v1844 = vrot.slane %v1668, %v1843
    %v1845 = vlaneseq
    %v1846 = vshrl.u32 %v1845, 7
    %v1847 = vsub.s32 2, %v1846
    %v1848 = vrot.slane %v1668, %v1847
    %v1851 = vlaneseq
    %v1852 = vshrl.u32 %v1851, 7
    %v1853 = vsub.s32 0, %v1852
    %v1854 = vrot.slane %v1844, %v1853
    %v1855 = vlaneseq
    %v1856 = vshrl.u32 %v1855, 7
    %v1857 = vsub.s32 0, %v1856
    %v1858 = vrot.slane %v1848, %v1857
    %v1859 = vadd.f32 %v1824, %v1854
    %v1860 = vadd.f32 %v1825, %v1858
    %v1861 = vadd.f32 %v1826, %v1854
    %v1862 = vadd.f32 %v1827, %v1858
    %v1863 = vadd.f32 %v1828, %v1854
    %v1864 = vadd.f32 %v1829, %v1858
    %v1865 = vadd.f32 %v1830, %v1854
    %v1866 = vadd.f32 %v1831, %v1858
    %v1867 = vadd.f32 %v1832, %v1854
    %v1868 = vadd.f32 %v1833, %v1858
    %v1869 = vadd.f32 %v1834, %v1854
    %v1870 = vadd.f32 %v1835, %v1858
    %v1871 = vadd.f32 %v1836, %v1854
    %v1872 = vadd.f32 %v1837, %v1858
    %v1873 = vadd.f32 %v1838, %v1854
    %v1874 = vadd.f32 %v1839, %v1858
    %1875 = vst [vmem:[#allocation2 + $0x28] sm:$0xff] %v1859
    %1876 = vst [vmem:[#allocation2 + $0x30] sm:$0xff] %v1860
    %1877 = vst [vmem:[#allocation2 + $0x48] sm:$0xff] %v1861
    %1878 = vst [vmem:[#allocation2 + $0x50] sm:$0xff] %v1862
    %1879 = vst [vmem:[#allocation2 + $0x68] sm:$0xff] %v1863
    %1880 = vst [vmem:[#allocation2 + $0x70] sm:$0xff] %v1864
    %1881 = vst [vmem:[#allocation2 + $0x88] sm:$0xff] %v1865
    %1882 = vst [vmem:[#allocation2 + $0x90] sm:$0xff] %v1866
    %1883 = vst [vmem:[#allocation2 + $0xa8] sm:$0xff] %v1867
    %1884 = vst [vmem:[#allocation2 + $0xb0] sm:$0xff] %v1868
    %1885 = vst [vmem:[#allocation2 + $0xc8] sm:$0xff] %v1869
    %1886 = vst [vmem:[#allocation2 + $0xd0] sm:$0xff] %v1870
    %1887 = vst [vmem:[#allocation2 + $0xe8] sm:$0xff] %v1871
    %1888 = vst [vmem:[#allocation2 + $0xf0] sm:$0xff] %v1872
    %1889 = vst [vmem:[#allocation2 + $0x108] sm:$0xff] %v1873
    %1890 = vst [vmem:[#allocation2 + $0x110] sm:$0xff] %v1874
    %v1892 = vlaneseq
    %v1893 = vshrl.u32 %v1892, 7
    %v1894 = vsub.s32 1, %v1893
    %v1895 = vrot.slane %v1666, %v1894
    %v1896 = vlaneseq
    %v1897 = vshrl.u32 %v1896, 7
    %v1898 = vsub.s32 5, %v1897
    %v1899 = vrot.slane %v1666, %v1898
    %v1902 = vlaneseq
    %v1903 = vshrl.u32 %v1902, 7
    %v1904 = vsub.s32 1, %v1903
    %v1905 = vrot.slane %v1895, %v1904
    %v1906 = vlaneseq
    %v1907 = vshrl.u32 %v1906, 7
    %v1908 = vsub.s32 1, %v1907
    %v1909 = vrot.slane %v1899, %v1908
    %v1910 = vmul.f32 %v1859, %v1905
    %v1911 = vmul.f32 %v1860, %v1909
    %v1912 = vmul.f32 %v1861, %v1905
    %v1913 = vmul.f32 %v1862, %v1909
    %v1914 = vmul.f32 %v1863, %v1905
    %v1915 = vmul.f32 %v1864, %v1909
    %v1916 = vmul.f32 %v1865, %v1905
    %v1917 = vmul.f32 %v1866, %v1909
    %v1918 = vmul.f32 %v1867, %v1905
    %v1919 = vmul.f32 %v1868, %v1909
    %v1920 = vmul.f32 %v1869, %v1905
    %v1921 = vmul.f32 %v1870, %v1909
    %v1922 = vmul.f32 %v1871, %v1905
    %v1923 = vmul.f32 %v1872, %v1909
    %v1924 = vmul.f32 %v1873, %v1905
    %v1925 = vmul.f32 %v1874, %v1909
    %v1926 = vld [vmem:[#allocation2 + $0x8] sm:$0x80]
    %v1927 = vld [vmem:[#allocation2 + $0x10] sm:$0x80]
    %v1928 = vld [vmem:[#allocation2 + $0x28] sm:$0xff]
    %v1929 = vld [vmem:[#allocation2 + $0x30] sm:$0xff]
    %v1930 = vld [vmem:[#allocation2 + $0x48] sm:$0xff]
    %v1931 = vld [vmem:[#allocation2 + $0x50] sm:$0xff]
    %v1932 = vld [vmem:[#allocation2 + $0x68] sm:$0xff]
    %v1933 = vld [vmem:[#allocation2 + $0x70] sm:$0xff]
    %v1934 = vld [vmem:[#allocation2 + $0x88] sm:$0xff]
    %v1935 = vld [vmem:[#allocation2 + $0x90] sm:$0xff]
    %v1936 = vld [vmem:[#allocation2 + $0xa8] sm:$0xff]
    %v1937 = vld [vmem:[#allocation2 + $0xb0] sm:$0xff]
    %v1938 = vld [vmem:[#allocation2 + $0xc8] sm:$0xff]
    %v1939 = vld [vmem:[#allocation2 + $0xd0] sm:$0xff]
    %v1940 = vld [vmem:[#allocation2 + $0xe8] sm:$0xff]
    %v1941 = vld [vmem:[#allocation2 + $0xf0] sm:$0xff]
    %v1942 = vld [vmem:[#allocation2 + $0x108] sm:$0x7f]
    %v1943 = vld [vmem:[#allocation2 + $0x110] sm:$0x7f]
    %v1944 = vmul.f32 %v1926, %v556
    %v1945 = vmul.f32 %v1927, %v556
    %v1946 = vmul.f32 %v1928, %v558
    %v1947 = vmul.f32 %v1929, %v558
    %v1948 = vmul.f32 %v1930, %v560
    %v1949 = vmul.f32 %v1931, %v560
    %v1950 = vmul.f32 %v1932, %v562
    %v1951 = vmul.f32 %v1933, %v562
    %v1952 = vmul.f32 %v1934, %v564
    %v1953 = vmul.f32 %v1935, %v564
    %v1954 = vmul.f32 %v1936, %v566
    %v1955 = vmul.f32 %v1937, %v566
    %v1956 = vmul.f32 %v1938, %v568
    %v1957 = vmul.f32 %v1939, %v568
    %v1958 = vmul.f32 %v1940, %v570
    %v1959 = vmul.f32 %v1941, %v570
    %v1960 = vmul.f32 %v1942, %v569
    %v1961 = vmul.f32 %v1943, %v569
    %v1962 = vlaneseq
    %v1963 = vshrl.u32 %v1962, 7
    %v1964 = vsub.s32 0, %v1963
    %v1965 = vrot.slane %v1666, %v1964
    %v1966 = vlaneseq
    %v1967 = vshrl.u32 %v1966, 7
    %v1968 = vsub.s32 4, %v1967
    %v1969 = vrot.slane %v1666, %v1968
    %v1972 = vlaneseq
    %v1973 = vshrl.u32 %v1972, 7
    %v1974 = vsub.s32 0, %v1973
    %v1975 = vrot.slane %v1965, %v1974
    %v1976 = vlaneseq
    %v1977 = vshrl.u32 %v1976, 7
    %v1978 = vsub.s32 0, %v1977
    %v1979 = vrot.slane %v1969, %v1978
    %v1980 = vmul.f32 %v1944, %v1975
    %v1981 = vmul.f32 %v1945, %v1979
    %v1982 = vmul.f32 %v1946, %v1975
    %v1983 = vmul.f32 %v1947, %v1979
    %v1984 = vmul.f32 %v1948, %v1975
    %v1985 = vmul.f32 %v1949, %v1979
    %v1986 = vmul.f32 %v1950, %v1975
    %v1987 = vmul.f32 %v1951, %v1979
    %v1988 = vmul.f32 %v1952, %v1975
    %v1989 = vmul.f32 %v1953, %v1979
    %v1990 = vmul.f32 %v1954, %v1975
    %v1991 = vmul.f32 %v1955, %v1979
    %v1992 = vmul.f32 %v1956, %v1975
    %v1993 = vmul.f32 %v1957, %v1979
    %v1994 = vmul.f32 %v1958, %v1975
    %v1995 = vmul.f32 %v1959, %v1979
    %v1996 = vmul.f32 %v1960, %v1975
    %v1997 = vmul.f32 %v1961, %v1979
    %v2016 = vrot.slane %v1980, 7
    %v2017 = vrot.slane %v1982, 7
    %v2018 = vsel %vm652, %v2016, %v2017
    %v2019 = vrot.slane %v1981, 7
    %v2020 = vrot.slane %v1983, 7
    %v2021 = vsel %vm652, %v2019, %v2020
    %v2022 = vrot.slane %v1984, 7
    %v2023 = vsel %vm652, %v2017, %v2022
    %v2024 = vrot.slane %v1985, 7
    %v2025 = vsel %vm652, %v2020, %v2024
    %v2026 = vrot.slane %v1986, 7
    %v2027 = vsel %vm652, %v2022, %v2026
    %v2028 = vrot.slane %v1987, 7
    %v2029 = vsel %vm652, %v2024, %v2028
    %v2030 = vrot.slane %v1988, 7
    %v2031 = vsel %vm652, %v2026, %v2030
    %v2032 = vrot.slane %v1989, 7
    %v2033 = vsel %vm652, %v2028, %v2032
    %v2034 = vrot.slane %v1990, 7
    %v2035 = vsel %vm652, %v2030, %v2034
    %v2036 = vrot.slane %v1991, 7
    %v2037 = vsel %vm652, %v2032, %v2036
    %v2038 = vrot.slane %v1992, 7
    %v2039 = vsel %vm652, %v2034, %v2038
    %v2040 = vrot.slane %v1993, 7
    %v2041 = vsel %vm652, %v2036, %v2040
    %v2042 = vrot.slane %v1994, 7
    %v2043 = vsel %vm652, %v2038, %v2042
    %v2044 = vrot.slane %v1995, 7
    %v2045 = vsel %vm652, %v2040, %v2044
    %v2046 = vrot.slane %v1996, 7
    %v2047 = vsel %vm652, %v2042, %v2046
    %v2048 = vrot.slane %v1997, 7
    %v2049 = vsel %vm652, %v2044, %v2048
    %v2066 = vadd.f32 %v1910, %v2018
    %v2067 = vadd.f32 %v1911, %v2021
    %v2068 = vadd.f32 %v1912, %v2023
    %v2069 = vadd.f32 %v1913, %v2025
    %v2070 = vadd.f32 %v1914, %v2027
    %v2071 = vadd.f32 %v1915, %v2029
    %v2072 = vadd.f32 %v1916, %v2031
    %v2073 = vadd.f32 %v1917, %v2033
    %v2074 = vadd.f32 %v1918, %v2035
    %v2075 = vadd.f32 %v1919, %v2037
    %v2076 = vadd.f32 %v1920, %v2039
    %v2077 = vadd.f32 %v1921, %v2041
    %v2078 = vadd.f32 %v1922, %v2043
    %v2079 = vadd.f32 %v1923, %v2045
    %v2080 = vadd.f32 %v1924, %v2047
    %v2081 = vadd.f32 %v1925, %v2049
    %v2082 = vld [vmem:[#allocation2 + $0x28] sm:$0xfe]
    %v2083 = vld [vmem:[#allocation2 + $0x30] sm:$0xfe]
    %v2084 = vld [vmem:[#allocation2 + $0x108] sm:$0xff]
    %v2085 = vld [vmem:[#allocation2 + $0x110] sm:$0xff]
    %v2086 = vld [vmem:[#allocation2 + $0x128] sm:$0x1]
    %v2087 = vld [vmem:[#allocation2 + $0x130] sm:$0x1]
    %v2088 = vmul.f32 %v2082, %v733
    %v2089 = vmul.f32 %v2083, %v733
    %v2090 = vmul.f32 %v1930, %v735
    %v2091 = vmul.f32 %v1931, %v735
    %v2092 = vmul.f32 %v1932, %v737
    %v2093 = vmul.f32 %v1933, %v737
    %v2094 = vmul.f32 %v1934, %v739
    %v2095 = vmul.f32 %v1935, %v739
    %v2096 = vmul.f32 %v1936, %v741
    %v2097 = vmul.f32 %v1937, %v741
    %v2098 = vmul.f32 %v1938, %v743
    %v2099 = vmul.f32 %v1939, %v743
    %v2100 = vmul.f32 %v1940, %v745
    %v2101 = vmul.f32 %v1941, %v745
    %v2102 = vmul.f32 %v2084, %v747
    %v2103 = vmul.f32 %v2085, %v747
    %v2104 = vmul.f32 %v2086, %v746
    %v2105 = vmul.f32 %v2087, %v746
    %v2106 = vlaneseq
    %v2107 = vshrl.u32 %v2106, 7
    %v2108 = vsub.s32 2, %v2107
    %v2109 = vrot.slane %v1666, %v2108
    %v2110 = vlaneseq
    %v2111 = vshrl.u32 %v2110, 7
    %v2112 = vsub.s32 6, %v2111
    %v2113 = vrot.slane %v1666, %v2112
    %v2116 = vlaneseq
    %v2117 = vshrl.u32 %v2116, 7
    %v2118 = vsub.s32 2, %v2117
    %v2119 = vrot.slane %v2109, %v2118
    %v2120 = vlaneseq
    %v2121 = vshrl.u32 %v2120, 7
    %v2122 = vsub.s32 2, %v2121
    %v2123 = vrot.slane %v2113, %v2122
    %v2124 = vmul.f32 %v2088, %v2119
    %v2125 = vmul.f32 %v2089, %v2123
    %v2126 = vmul.f32 %v2090, %v2119
    %v2127 = vmul.f32 %v2091, %v2123
    %v2128 = vmul.f32 %v2092, %v2119
    %v2129 = vmul.f32 %v2093, %v2123
    %v2130 = vmul.f32 %v2094, %v2119
    %v2131 = vmul.f32 %v2095, %v2123
    %v2132 = vmul.f32 %v2096, %v2119
    %v2133 = vmul.f32 %v2097, %v2123
    %v2134 = vmul.f32 %v2098, %v2119
    %v2135 = vmul.f32 %v2099, %v2123
    %v2136 = vmul.f32 %v2100, %v2119
    %v2137 = vmul.f32 %v2101, %v2123
    %v2138 = vmul.f32 %v2102, %v2119
    %v2139 = vmul.f32 %v2103, %v2123
    %v2140 = vmul.f32 %v2104, %v2119
    %v2141 = vmul.f32 %v2105, %v2123
    %v2160 = vrot.slane %v2124, 1
    %v2161 = vrot.slane %v2126, 1
    %v2162 = vsel %vm555, %v2160, %v2161
    %v2163 = vrot.slane %v2125, 1
    %v2164 = vrot.slane %v2127, 1
    %v2165 = vsel %vm555, %v2163, %v2164
    %v2166 = vrot.slane %v2128, 1
    %v2167 = vsel %vm555, %v2161, %v2166
    %v2168 = vrot.slane %v2129, 1
    %v2169 = vsel %vm555, %v2164, %v2168
    %v2170 = vrot.slane %v2130, 1
    %v2171 = vsel %vm555, %v2166, %v2170
    %v2172 = vrot.slane %v2131, 1
    %v2173 = vsel %vm555, %v2168, %v2172
    %v2174 = vrot.slane %v2132, 1
    %v2175 = vsel %vm555, %v2170, %v2174
    %v2176 = vrot.slane %v2133, 1
    %v2177 = vsel %vm555, %v2172, %v2176
    %v2178 = vrot.slane %v2134, 1
    %v2179 = vsel %vm555, %v2174, %v2178
    %v2180 = vrot.slane %v2135, 1
    %v2181 = vsel %vm555, %v2176, %v2180
    %v2182 = vrot.slane %v2136, 1
    %v2183 = vsel %vm555, %v2178, %v2182
    %v2184 = vrot.slane %v2137, 1
    %v2185 = vsel %vm555, %v2180, %v2184
    %v2186 = vrot.slane %v2138, 1
    %v2187 = vsel %vm555, %v2182, %v2186
    %v2188 = vrot.slane %v2139, 1
    %v2189 = vsel %vm555, %v2184, %v2188
    %v2190 = vrot.slane %v2140, 1
    %v2191 = vsel %vm555, %v2186, %v2190
    %v2192 = vrot.slane %v2141, 1
    %v2193 = vsel %vm555, %v2188, %v2192
    %v2210 = vadd.f32 %v2066, %v2162
    %v2211 = vadd.f32 %v2067, %v2165
    %v2212 = vadd.f32 %v2068, %v2167
    %v2213 = vadd.f32 %v2069, %v2169
    %v2214 = vadd.f32 %v2070, %v2171
    %v2215 = vadd.f32 %v2071, %v2173
    %v2216 = vadd.f32 %v2072, %v2175
    %v2217 = vadd.f32 %v2073, %v2177
    %v2218 = vadd.f32 %v2074, %v2179
    %v2219 = vadd.f32 %v2075, %v2181
    %v2220 = vadd.f32 %v2076, %v2183
    %v2221 = vadd.f32 %v2077, %v2185
    %v2222 = vadd.f32 %v2078, %v2187
    %v2223 = vadd.f32 %v2079, %v2189
    %v2224 = vadd.f32 %v2080, %v2191
    %v2225 = vadd.f32 %v2081, %v2193
    %v2226 = vlaneseq
    %v2227 = vshrl.u32 %v2226, 7
    %v2228 = vsub.s32 1, %v2227
    %v2229 = vrot.slane %v1668, %v2228
    %v2230 = vlaneseq
    %v2231 = vshrl.u32 %v2230, 7
    %v2232 = vsub.s32 3, %v2231
    %v2233 = vrot.slane %v1668, %v2232
    %v2236 = vlaneseq
    %v2237 = vshrl.u32 %v2236, 7
    %v2238 = vsub.s32 1, %v2237
    %v2239 = vrot.slane %v2229, %v2238
    %v2240 = vlaneseq
    %v2241 = vshrl.u32 %v2240, 7
    %v2242 = vsub.s32 1, %v2241
    %v2243 = vrot.slane %v2233, %v2242
    %v2244 = vadd.f32 %v2210, %v2239
    %v2245 = vadd.f32 %v2211, %v2243
    %v2246 = vadd.f32 %v2212, %v2239
    %v2247 = vadd.f32 %v2213, %v2243
    %v2248 = vadd.f32 %v2214, %v2239
    %v2249 = vadd.f32 %v2215, %v2243
    %v2250 = vadd.f32 %v2216, %v2239
    %v2251 = vadd.f32 %v2217, %v2243
    %v2252 = vadd.f32 %v2218, %v2239
    %v2253 = vadd.f32 %v2219, %v2243
    %v2254 = vadd.f32 %v2220, %v2239
    %v2255 = vadd.f32 %v2221, %v2243
    %v2256 = vadd.f32 %v2222, %v2239
    %v2257 = vadd.f32 %v2223, %v2243
    %v2258 = vadd.f32 %v2224, %v2239
    %v2259 = vadd.f32 %v2225, %v2243
    %2260 = vst [vmem:[#allocation2 + $0x28] sm:$0xff] %v2244
    %2261 = vst [vmem:[#allocation2 + $0x30] sm:$0xff] %v2245
    %2262 = vst [vmem:[#allocation2 + $0x48] sm:$0xff] %v2246
    %2263 = vst [vmem:[#allocation2 + $0x50] sm:$0xff] %v2247
    %2264 = vst [vmem:[#allocation2 + $0x68] sm:$0xff] %v2248
    %2265 = vst [vmem:[#allocation2 + $0x70] sm:$0xff] %v2249
    %2266 = vst [vmem:[#allocation2 + $0x88] sm:$0xff] %v2250
    %2267 = vst [vmem:[#allocation2 + $0x90] sm:$0xff] %v2251
    %2268 = vst [vmem:[#allocation2 + $0xa8] sm:$0xff] %v2252
    %2269 = vst [vmem:[#allocation2 + $0xb0] sm:$0xff] %v2253
    %2270 = vst [vmem:[#allocation2 + $0xc8] sm:$0xff] %v2254
    %2271 = vst [vmem:[#allocation2 + $0xd0] sm:$0xff] %v2255
    %2272 = vst [vmem:[#allocation2 + $0xe8] sm:$0xff] %v2256
    %2273 = vst [vmem:[#allocation2 + $0xf0] sm:$0xff] %v2257
    %2274 = vst [vmem:[#allocation2 + $0x108] sm:$0xff] %v2258
    %2275 = vst [vmem:[#allocation2 + $0x110] sm:$0xff] %v2259
    %v2277 = vlaneseq
    %v2278 = vshrl.u32 %v2277, 7
    %v2279 = vsub.s32 1, %v2278
    %v2280 = vrot.slane %v1667, %v2279
    %v2281 = vlaneseq
    %v2282 = vshrl.u32 %v2281, 7
    %v2283 = vsub.s32 5, %v2282
    %v2284 = vrot.slane %v1667, %v2283
    %v2287 = vlaneseq
    %v2288 = vshrl.u32 %v2287, 7
    %v2289 = vsub.s32 1, %v2288
    %v2290 = vrot.slane %v2280, %v2289
    %v2291 = vlaneseq
    %v2292 = vshrl.u32 %v2291, 7
    %v2293 = vsub.s32 1, %v2292
    %v2294 = vrot.slane %v2284, %v2293
    %v2295 = vmul.f32 %v2244, %v2290
    %v2296 = vmul.f32 %v2245, %v2294
    %v2297 = vmul.f32 %v2246, %v2290
    %v2298 = vmul.f32 %v2247, %v2294
    %v2299 = vmul.f32 %v2248, %v2290
    %v2300 = vmul.f32 %v2249, %v2294
    %v2301 = vmul.f32 %v2250, %v2290
    %v2302 = vmul.f32 %v2251, %v2294
    %v2303 = vmul.f32 %v2252, %v2290
    %v2304 = vmul.f32 %v2253, %v2294
    %v2305 = vmul.f32 %v2254, %v2290
    %v2306 = vmul.f32 %v2255, %v2294
    %v2307 = vmul.f32 %v2256, %v2290
    %v2308 = vmul.f32 %v2257, %v2294
    %v2309 = vmul.f32 %v2258, %v2290
    %v2310 = vmul.f32 %v2259, %v2294
    %v2311 = vld [vmem:[#allocation2 + $0x20] sm:$0xff]
    %v2312 = vld [vmem:[#allocation2 + $0x28] sm:$0xff]
    %v2313 = vld [vmem:[#allocation2 + $0x30] sm:$0xff]
    %v2314 = vld [vmem:[#allocation2 + $0x40] sm:$0xff]
    %v2315 = vld [vmem:[#allocation2 + $0x48] sm:$0xff]
    %v2316 = vld [vmem:[#allocation2 + $0x50] sm:$0xff]
    %v2317 = vld [vmem:[#allocation2 + $0x60] sm:$0xff]
    %v2318 = vld [vmem:[#allocation2 + $0x68] sm:$0xff]
    %v2319 = vld [vmem:[#allocation2 + $0x70] sm:$0xff]
    %v2320 = vld [vmem:[#allocation2 + $0x80] sm:$0xff]
    %v2321 = vld [vmem:[#allocation2 + $0x88] sm:$0xff]
    %v2322 = vld [vmem:[#allocation2 + $0x90] sm:$0xff]
    %v2323 = vld [vmem:[#allocation2 + $0xa0] sm:$0xff]
    %v2324 = vld [vmem:[#allocation2 + $0xa8] sm:$0xff]
    %v2325 = vld [vmem:[#allocation2 + $0xb0] sm:$0xff]
    %v2326 = vld [vmem:[#allocation2 + $0xc0] sm:$0xff]
    %v2327 = vld [vmem:[#allocation2 + $0xc8] sm:$0xff]
    %v2328 = vld [vmem:[#allocation2 + $0xd0] sm:$0xff]
    %v2329 = vld [vmem:[#allocation2 + $0xe0] sm:$0xff]
    %v2330 = vld [vmem:[#allocation2 + $0xe8] sm:$0xff]
    %v2331 = vld [vmem:[#allocation2 + $0xf0] sm:$0xff]
    %v2332 = vld [vmem:[#allocation2 + $0x100] sm:$0xff]
    %v2333 = vld [vmem:[#allocation2 + $0x108] sm:$0xff]
    %v2334 = vld [vmem:[#allocation2 + $0x110] sm:$0xff]
    %v2335 = vlaneseq
    %v2336 = vshrl.u32 %v2335, 7
    %v2337 = vsub.s32 0, %v2336
    %v2338 = vrot.slane %v1667, %v2337
    %v2339 = vlaneseq
    %v2340 = vshrl.u32 %v2339, 7
    %v2341 = vsub.s32 4, %v2340
    %v2342 = vrot.slane %v1667, %v2341
    %v2345 = vlaneseq
    %v2346 = vshrl.u32 %v2345, 7
    %v2347 = vsub.s32 0, %v2346
    %v2348 = vrot.slane %v2338, %v2347
    %v2349 = vlaneseq
    %v2350 = vshrl.u32 %v2349, 7
    %v2351 = vsub.s32 0, %v2350
    %v2352 = vrot.slane %v2342, %v2351
    %2355 = vrot.lane.b32.xlu0 %v2348, 96
    %v2356 = vpop.permute.xlu0 %2355
    %2357 = vrot.lane.b32.xlu0 %v2352, 96
    %v2358 = vpop.permute.xlu0 %2357
    %v2359 = vsel %vm1028, %v2356, %v2358
    %v2363 = vmul.f32 %v2311, %v2356
    %v2364 = vmul.f32 %v2312, %v2359
    %v2365 = vmul.f32 %v2313, %v2358
    %v2366 = vmul.f32 %v2314, %v2356
    %v2367 = vmul.f32 %v2315, %v2359
    %v2368 = vmul.f32 %v2316, %v2358
    %v2369 = vmul.f32 %v2317, %v2356
    %v2370 = vmul.f32 %v2318, %v2359
    %v2371 = vmul.f32 %v2319, %v2358
    %v2372 = vmul.f32 %v2320, %v2356
    %v2373 = vmul.f32 %v2321, %v2359
    %v2374 = vmul.f32 %v2322, %v2358
    %v2375 = vmul.f32 %v2323, %v2356
    %v2376 = vmul.f32 %v2324, %v2359
    %v2377 = vmul.f32 %v2325, %v2358
    %v2378 = vmul.f32 %v2326, %v2356
    %v2379 = vmul.f32 %v2327, %v2359
    %v2380 = vmul.f32 %v2328, %v2358
    %v2381 = vmul.f32 %v2329, %v2356
    %v2382 = vmul.f32 %v2330, %v2359
    %v2383 = vmul.f32 %v2331, %v2358
    %v2384 = vmul.f32 %v2332, %v2356
    %v2385 = vmul.f32 %v2333, %v2359
    %v2386 = vmul.f32 %v2334, %v2358
    %2411 = vrot.lane.b32.xlu0 %v2363, 32
    %v2412 = vpop.permute.xlu0 %2411
    %2413 = vrot.lane.b32.xlu0 %v2364, 32
    %v2414 = vpop.permute.xlu0 %2413
    %2415 = vrot.lane.b32.xlu0 %v2365, 32
    %v2416 = vpop.permute.xlu0 %2415
    %2417 = vrot.lane.b32.xlu0 %v2366, 32
    %v2418 = vpop.permute.xlu0 %2417
    %2419 = vrot.lane.b32.xlu0 %v2367, 32
    %v2420 = vpop.permute.xlu0 %2419
    %2421 = vrot.lane.b32.xlu0 %v2368, 32
    %v2422 = vpop.permute.xlu0 %2421
    %2423 = vrot.lane.b32.xlu0 %v2369, 32
    %v2424 = vpop.permute.xlu0 %2423
    %2425 = vrot.lane.b32.xlu0 %v2370, 32
    %v2426 = vpop.permute.xlu0 %2425
    %2427 = vrot.lane.b32.xlu0 %v2371, 32
    %v2428 = vpop.permute.xlu0 %2427
    %2429 = vrot.lane.b32.xlu0 %v2372, 32
    %v2430 = vpop.permute.xlu0 %2429
    %2431 = vrot.lane.b32.xlu0 %v2373, 32
    %v2432 = vpop.permute.xlu0 %2431
    %2433 = vrot.lane.b32.xlu0 %v2374, 32
    %v2434 = vpop.permute.xlu0 %2433
    %2435 = vrot.lane.b32.xlu0 %v2375, 32
    %v2436 = vpop.permute.xlu0 %2435
    %2437 = vrot.lane.b32.xlu0 %v2376, 32
    %v2438 = vpop.permute.xlu0 %2437
    %2439 = vrot.lane.b32.xlu0 %v2377, 32
    %v2440 = vpop.permute.xlu0 %2439
    %2441 = vrot.lane.b32.xlu0 %v2378, 32
    %v2442 = vpop.permute.xlu0 %2441
    %2443 = vrot.lane.b32.xlu0 %v2379, 32
    %v2444 = vpop.permute.xlu0 %2443
    %2445 = vrot.lane.b32.xlu0 %v2380, 32
    %v2446 = vpop.permute.xlu0 %2445
    %2447 = vrot.lane.b32.xlu0 %v2381, 32
    %v2448 = vpop.permute.xlu0 %2447
    %2449 = vrot.lane.b32.xlu0 %v2382, 32
    %v2450 = vpop.permute.xlu0 %2449
    %2451 = vrot.lane.b32.xlu0 %v2383, 32
    %v2452 = vpop.permute.xlu0 %2451
    %2453 = vrot.lane.b32.xlu0 %v2384, 32
    %v2454 = vpop.permute.xlu0 %2453
    %2455 = vrot.lane.b32.xlu0 %v2385, 32
    %v2456 = vpop.permute.xlu0 %2455
    %2457 = vrot.lane.b32.xlu0 %v2386, 32
    %v2458 = vpop.permute.xlu0 %2457
    %v2459 = vsel %vm1129, %v2412, %v2414
    %v2460 = vsel %vm1129, %v2414, %v2416
    %v2461 = vsel %vm1129, %v2418, %v2420
    %v2462 = vsel %vm1129, %v2420, %v2422
    %v2463 = vsel %vm1129, %v2424, %v2426
    %v2464 = vsel %vm1129, %v2426, %v2428
    %v2465 = vsel %vm1129, %v2430, %v2432
    %v2466 = vsel %vm1129, %v2432, %v2434
    %v2467 = vsel %vm1129, %v2436, %v2438
    %v2468 = vsel %vm1129, %v2438, %v2440
    %v2469 = vsel %vm1129, %v2442, %v2444
    %v2470 = vsel %vm1129, %v2444, %v2446
    %v2471 = vsel %vm1129, %v2448, %v2450
    %v2472 = vsel %vm1129, %v2450, %v2452
    %v2473 = vsel %vm1129, %v2454, %v2456
    %v2474 = vsel %vm1129, %v2456, %v2458
    %v2491 = vadd.f32 %v2295, %v2459
    %v2492 = vadd.f32 %v2296, %v2460
    %v2493 = vadd.f32 %v2297, %v2461
    %v2494 = vadd.f32 %v2298, %v2462
    %v2495 = vadd.f32 %v2299, %v2463
    %v2496 = vadd.f32 %v2300, %v2464
    %v2497 = vadd.f32 %v2301, %v2465
    %v2498 = vadd.f32 %v2302, %v2466
    %v2499 = vadd.f32 %v2303, %v2467
    %v2500 = vadd.f32 %v2304, %v2468
    %v2501 = vadd.f32 %v2305, %v2469
    %v2502 = vadd.f32 %v2306, %v2470
    %v2503 = vadd.f32 %v2307, %v2471
    %v2504 = vadd.f32 %v2308, %v2472
    %v2505 = vadd.f32 %v2309, %v2473
    %v2506 = vadd.f32 %v2310, %v2474
    %v2507 = vld [vmem:[#allocation2 + $0x38] sm:$0xff]
    %v2508 = vld [vmem:[#allocation2 + $0x58] sm:$0xff]
    %v2509 = vld [vmem:[#allocation2 + $0x78] sm:$0xff]
    %v2510 = vld [vmem:[#allocation2 + $0x98] sm:$0xff]
    %v2511 = vld [vmem:[#allocation2 + $0xb8] sm:$0xff]
    %v2512 = vld [vmem:[#allocation2 + $0xd8] sm:$0xff]
    %v2513 = vld [vmem:[#allocation2 + $0xf8] sm:$0xff]
    %v2514 = vld [vmem:[#allocation2 + $0x118] sm:$0xff]
    %v2515 = vlaneseq
    %v2516 = vshrl.u32 %v2515, 7
    %v2517 = vsub.s32 2, %v2516
    %v2518 = vrot.slane %v1667, %v2517
    %v2519 = vlaneseq
    %v2520 = vshrl.u32 %v2519, 7
    %v2521 = vsub.s32 6, %v2520
    %v2522 = vrot.slane %v1667, %v2521
    %v2525 = vlaneseq
    %v2526 = vshrl.u32 %v2525, 7
    %v2527 = vsub.s32 2, %v2526
    %v2528 = vrot.slane %v2518, %v2527
    %v2529 = vlaneseq
    %v2530 = vshrl.u32 %v2529, 7
    %v2531 = vsub.s32 2, %v2530
    %v2532 = vrot.slane %v2522, %v2531
    %2535 = vrot.lane.b32.xlu0 %v2528, 32
    %v2536 = vpop.permute.xlu0 %2535
    %2537 = vrot.lane.b32.xlu0 %v2532, 32
    %v2538 = vpop.permute.xlu0 %2537
    %v2539 = vsel %vm1129, %v2536, %v2538
    %v2543 = vmul.f32 %v2312, %v2536
    %v2544 = vmul.f32 %v2313, %v2539
    %v2545 = vmul.f32 %v2507, %v2538
    %v2546 = vmul.f32 %v2315, %v2536
    %v2547 = vmul.f32 %v2316, %v2539
    %v2548 = vmul.f32 %v2508, %v2538
    %v2549 = vmul.f32 %v2318, %v2536
    %v2550 = vmul.f32 %v2319, %v2539
    %v2551 = vmul.f32 %v2509, %v2538
    %v2552 = vmul.f32 %v2321, %v2536
    %v2553 = vmul.f32 %v2322, %v2539
    %v2554 = vmul.f32 %v2510, %v2538
    %v2555 = vmul.f32 %v2324, %v2536
    %v2556 = vmul.f32 %v2325, %v2539
    %v2557 = vmul.f32 %v2511, %v2538
    %v2558 = vmul.f32 %v2327, %v2536
    %v2559 = vmul.f32 %v2328, %v2539
    %v2560 = vmul.f32 %v2512, %v2538
    %v2561 = vmul.f32 %v2330, %v2536
    %v2562 = vmul.f32 %v2331, %v2539
    %v2563 = vmul.f32 %v2513, %v2538
    %v2564 = vmul.f32 %v2333, %v2536
    %v2565 = vmul.f32 %v2334, %v2539
    %v2566 = vmul.f32 %v2514, %v2538
    %2591 = vrot.lane.b32.xlu0 %v2543, 96
    %v2592 = vpop.permute.xlu0 %2591
    %2593 = vrot.lane.b32.xlu0 %v2544, 96
    %v2594 = vpop.permute.xlu0 %2593
    %2595 = vrot.lane.b32.xlu0 %v2545, 96
    %v2596 = vpop.permute.xlu0 %2595
    %2597 = vrot.lane.b32.xlu0 %v2546, 96
    %v2598 = vpop.permute.xlu0 %2597
    %2599 = vrot.lane.b32.xlu0 %v2547, 96
    %v2600 = vpop.permute.xlu0 %2599
    %2601 = vrot.lane.b32.xlu0 %v2548, 96
    %v2602 = vpop.permute.xlu0 %2601
    %2603 = vrot.lane.b32.xlu0 %v2549, 96
    %v2604 = vpop.permute.xlu0 %2603
    %2605 = vrot.lane.b32.xlu0 %v2550, 96
    %v2606 = vpop.permute.xlu0 %2605
    %2607 = vrot.lane.b32.xlu0 %v2551, 96
    %v2608 = vpop.permute.xlu0 %2607
    %2609 = vrot.lane.b32.xlu0 %v2552, 96
    %v2610 = vpop.permute.xlu0 %2609
    %2611 = vrot.lane.b32.xlu0 %v2553, 96
    %v2612 = vpop.permute.xlu0 %2611
    %2613 = vrot.lane.b32.xlu0 %v2554, 96
    %v2614 = vpop.permute.xlu0 %2613
    %2615 = vrot.lane.b32.xlu0 %v2555, 96
    %v2616 = vpop.permute.xlu0 %2615
    %2617 = vrot.lane.b32.xlu0 %v2556, 96
    %v2618 = vpop.permute.xlu0 %2617
    %2619 = vrot.lane.b32.xlu0 %v2557, 96
    %v2620 = vpop.permute.xlu0 %2619
    %2621 = vrot.lane.b32.xlu0 %v2558, 96
    %v2622 = vpop.permute.xlu0 %2621
    %2623 = vrot.lane.b32.xlu0 %v2559, 96
    %v2624 = vpop.permute.xlu0 %2623
    %2625 = vrot.lane.b32.xlu0 %v2560, 96
    %v2626 = vpop.permute.xlu0 %2625
    %2627 = vrot.lane.b32.xlu0 %v2561, 96
    %v2628 = vpop.permute.xlu0 %2627
    %2629 = vrot.lane.b32.xlu0 %v2562, 96
    %v2630 = vpop.permute.xlu0 %2629
    %2631 = vrot.lane.b32.xlu0 %v2563, 96
    %v2632 = vpop.permute.xlu0 %2631
    %2633 = vrot.lane.b32.xlu0 %v2564, 96
    %v2634 = vpop.permute.xlu0 %2633
    %2635 = vrot.lane.b32.xlu0 %v2565, 96
    %v2636 = vpop.permute.xlu0 %2635
    %2637 = vrot.lane.b32.xlu0 %v2566, 96
    %v2638 = vpop.permute.xlu0 %2637
    %v2639 = vsel %vm1028, %v2592, %v2594
    %v2640 = vsel %vm1028, %v2594, %v2596
    %v2641 = vsel %vm1028, %v2598, %v2600
    %v2642 = vsel %vm1028, %v2600, %v2602
    %v2643 = vsel %vm1028, %v2604, %v2606
    %v2644 = vsel %vm1028, %v2606, %v2608
    %v2645 = vsel %vm1028, %v2610, %v2612
    %v2646 = vsel %vm1028, %v2612, %v2614
    %v2647 = vsel %vm1028, %v2616, %v2618
    %v2648 = vsel %vm1028, %v2618, %v2620
    %v2649 = vsel %vm1028, %v2622, %v2624
    %v2650 = vsel %vm1028, %v2624, %v2626
    %v2651 = vsel %vm1028, %v2628, %v2630
    %v2652 = vsel %vm1028, %v2630, %v2632
    %v2653 = vsel %vm1028, %v2634, %v2636
    %v2654 = vsel %vm1028, %v2636, %v2638
    %v2671 = vadd.f32 %v2491, %v2639
    %v2672 = vadd.f32 %v2492, %v2640
    %v2673 = vadd.f32 %v2493, %v2641
    %v2674 = vadd.f32 %v2494, %v2642
    %v2675 = vadd.f32 %v2495, %v2643
    %v2676 = vadd.f32 %v2496, %v2644
    %v2677 = vadd.f32 %v2497, %v2645
    %v2678 = vadd.f32 %v2498, %v2646
    %v2679 = vadd.f32 %v2499, %v2647
    %v2680 = vadd.f32 %v2500, %v2648
    %v2681 = vadd.f32 %v2501, %v2649
    %v2682 = vadd.f32 %v2502, %v2650
    %v2683 = vadd.f32 %v2503, %v2651
    %v2684 = vadd.f32 %v2504, %v2652
    %v2685 = vadd.f32 %v2505, %v2653
    %v2686 = vadd.f32 %v2506, %v2654
    %v2687 = vld [vmem:[#allocation11] sm:$0xf]
    %v2688 = vadd.f32 %v2671, %v2673
    %v2689 = vadd.f32 %v2688, %v2675
    %v2690 = vadd.f32 %v2689, %v2677
    %v2691 = vadd.f32 %v2690, %v2679
    %v2692 = vadd.f32 %v2691, %v2681
    %v2693 = vadd.f32 %v2692, %v2683
    %v2694 = vadd.f32 %v2693, %v2685
    %v2695 = vrot.slane %v2694, 4
    %v2696 = vadd.f32 %v2694, %v2695
    %v2697 = vrot.slane %v2696, 2
    %v2698 = vadd.f32 %v2696, %v2697
    %v2699 = vrot.slane %v2698, 1
    %v2700 = vadd.f32 %v2698, %v2699
    %v2701 = vadd.f32 %v2672, %v2674
    %v2702 = vadd.f32 %v2701, %v2676
    %v2703 = vadd.f32 %v2702, %v2678
    %v2704 = vadd.f32 %v2703, %v2680
    %v2705 = vadd.f32 %v2704, %v2682
    %v2706 = vadd.f32 %v2705, %v2684
    %v2707 = vadd.f32 %v2706, %v2686
    %v2708 = vrot.slane %v2707, 4
    %v2709 = vadd.f32 %v2707, %v2708
    %v2710 = vrot.slane %v2709, 2
    %v2711 = vadd.f32 %v2709, %v2710
    %v2712 = vrot.slane %v2711, 1
    %v2713 = vadd.f32 %v2711, %v2712
    %2714 = vrot.lane.b32.xlu0 %v2700, 16
    %v2715 = vpop.permute.xlu0 %2714
    %2716 = vrot.lane.b32.xlu0 %v2713, 16
    %v2717 = vpop.permute.xlu0 %2716
    %v2718 = vsel %vm1391, %v2715, %v2717
    %v2719 = vsel %vm1391, %v2717, %v2715
    %v2720 = vadd.f32 %v2700, %v2719
    %v2721 = vadd.f32 %v2713, %v2718
    %2722 = vrot.lane.b32.xlu0 %v2720, 32
    %v2723 = vpop.permute.xlu0 %2722
    %2724 = vrot.lane.b32.xlu0 %v2721, 32
    %v2725 = vpop.permute.xlu0 %2724
    %v2726 = vsel %vm1400, %v2723, %v2725
    %v2727 = vsel %vm1400, %v2725, %v2723
    %v2728 = vadd.f32 %v2720, %v2727
    %v2729 = vadd.f32 %v2721, %v2726
    %2730 = vrot.lane.b32.xlu0 %v2728, 64
    %v2731 = vpop.permute.xlu0 %2730
    %2732 = vrot.lane.b32.xlu0 %v2729, 64
    %v2733 = vpop.permute.xlu0 %2732
    %v2734 = vsel %vm1409, %v2731, %v2733
    %v2735 = vsel %vm1409, %v2733, %v2731
    %v2736 = vadd.f32 %v2728, %v2735
    %v2737 = vadd.f32 %v2729, %v2734
    %v2738 = vadd.f32 %v2736, %v2737
    %v2739 = vmul.f32 %v2671, %v2671
    %v2740 = vmul.f32 %v2672, %v2672
    %v2741 = vmul.f32 %v2673, %v2673
    %v2742 = vmul.f32 %v2674, %v2674
    %v2743 = vmul.f32 %v2675, %v2675
    %v2744 = vmul.f32 %v2676, %v2676
    %v2745 = vmul.f32 %v2677, %v2677
    %v2746 = vmul.f32 %v2678, %v2678
    %v2747 = vmul.f32 %v2679, %v2679
    %v2748 = vmul.f32 %v2680, %v2680
    %v2749 = vmul.f32 %v2681, %v2681
    %v2750 = vmul.f32 %v2682, %v2682
    %v2751 = vmul.f32 %v2683, %v2683
    %v2752 = vmul.f32 %v2684, %v2684
    %v2753 = vmul.f32 %v2685, %v2685
    %v2754 = vmul.f32 %v2686, %v2686
    %v2755 = vadd.f32 %v2739, %v2741
    %v2756 = vadd.f32 %v2755, %v2743
    %v2757 = vadd.f32 %v2756, %v2745
    %v2758 = vadd.f32 %v2757, %v2747
    %v2759 = vadd.f32 %v2758, %v2749
    %v2760 = vadd.f32 %v2759, %v2751
    %v2761 = vadd.f32 %v2760, %v2753
    %v2762 = vrot.slane %v2761, 4
    %v2763 = vadd.f32 %v2761, %v2762
    %v2764 = vrot.slane %v2763, 2
    %v2765 = vadd.f32 %v2763, %v2764
    %v2766 = vrot.slane %v2765, 1
    %v2767 = vadd.f32 %v2765, %v2766
    %v2768 = vadd.f32 %v2740, %v2742
    %v2769 = vadd.f32 %v2768, %v2744
    %v2770 = vadd.f32 %v2769, %v2746
    %v2771 = vadd.f32 %v2770, %v2748
    %v2772 = vadd.f32 %v2771, %v2750
    %v2773 = vadd.f32 %v2772, %v2752
    %v2774 = vadd.f32 %v2773, %v2754
    %v2775 = vrot.slane %v2774, 4
    %v2776 = vadd.f32 %v2774, %v2775
    %v2777 = vrot.slane %v2776, 2
    %v2778 = vadd.f32 %v2776, %v2777
    %v2779 = vrot.slane %v2778, 1
    %v2780 = vadd.f32 %v2778, %v2779
    %2781 = vrot.lane.b32.xlu0 %v2767, 16
    %v2782 = vpop.permute.xlu0 %2781
    %2783 = vrot.lane.b32.xlu0 %v2780, 16
    %v2784 = vpop.permute.xlu0 %2783
    %v2785 = vsel %vm1391, %v2782, %v2784
    %v2786 = vsel %vm1391, %v2784, %v2782
    %v2787 = vadd.f32 %v2767, %v2786
    %v2788 = vadd.f32 %v2780, %v2785
    %2789 = vrot.lane.b32.xlu0 %v2787, 32
    %v2790 = vpop.permute.xlu0 %2789
    %2791 = vrot.lane.b32.xlu0 %v2788, 32
    %v2792 = vpop.permute.xlu0 %2791
    %v2793 = vsel %vm1400, %v2790, %v2792
    %v2794 = vsel %vm1400, %v2792, %v2790
    %v2795 = vadd.f32 %v2787, %v2794
    %v2796 = vadd.f32 %v2788, %v2793
    %2797 = vrot.lane.b32.xlu0 %v2795, 64
    %v2798 = vpop.permute.xlu0 %2797
    %2799 = vrot.lane.b32.xlu0 %v2796, 64
    %v2800 = vpop.permute.xlu0 %2799
    %v2801 = vsel %vm1409, %v2798, %v2800
    %v2802 = vsel %vm1409, %v2800, %v2798
    %v2803 = vadd.f32 %v2795, %v2802
    %v2804 = vadd.f32 %v2796, %v2801
    %v2805 = vadd.f32 %v2803, %v2804
    %v2806 = vmul.f32 %v2738, 0.0009765625
    %v2807 = vmul.f32 %v2805, 0.0009765625
    %v2808 = vmul.f32 %v2806, %v2806
    %v2809 = vsub.f32 %v2807, %v2808
    %v2810 = vmax.f32 %v2809, 0.0
    %v2811 = vadd.f32 %v2810, 1e-05
    %v2812 = vrsqrt.pop %v2811
    %v2814 = vcombine.low %v2812, %v2812
    %v2816 = vunpack.c.l.s4 1983009808
    %v2817 = vunpack.c.0.s8 %v2816
    %v2818 = vlaneseq
    %v2819 = vshrl.u32 %v2818, 7
    %v2820 = vsub.s32 %v2817, %v2819
    %v2821 = vrot.slane %v2814, %v2820
    %v2823 = vmul.f32 %v2687, %v2821
    %v2825 = vlaneseq
    %v2826 = vshrl.u32 %v2825, 7
    %v2827 = vsub.s32 0, %v2826
    %v2828 = vrot.slane %v2823, %v2827
    %v2829 = vlaneseq
    %v2830 = vshrl.u32 %v2829, 7
    %v2831 = vsub.s32 2, %v2830
    %v2832 = vrot.slane %v2823, %v2831
    %v2835 = vmul.f32 %v2806, %v2828
    %v2836 = vmul.f32 %v2806, %v2832
    %v2839 = vcombine.low %v2835, %v2836
    %v2841 = vunpack.c.l.s4 1983009808
    %v2842 = vunpack.c.0.s8 %v2841
    %v2843 = vlaneseq
    %v2844 = vshrl.u32 %v2843, 7
    %v2845 = vsub.s32 %v2842, %v2844
    %v2846 = vrot.slane %v2839, %v2845
    %v2847 = vrot.slane %v2846, 7
    %v2849 = vsub.f32 %v2687, %v2847
    %v2850 = vlaneseq
    %v2851 = vshrl.u32 %v2850, 7
    %v2852 = vsub.s32 0, %v2851
    %v2853 = vrot.slane %v2828, %v2852
    %v2854 = vlaneseq
    %v2855 = vshrl.u32 %v2854, 7
    %v2856 = vsub.s32 0, %v2855
    %v2857 = vrot.slane %v2832, %v2856
    %v2858 = vmul.f32 %v2671, %v2853
    %v2859 = vmul.f32 %v2672, %v2857
    %v2860 = vmul.f32 %v2673, %v2853
    %v2861 = vmul.f32 %v2674, %v2857
    %v2862 = vmul.f32 %v2675, %v2853
    %v2863 = vmul.f32 %v2676, %v2857
    %v2864 = vmul.f32 %v2677, %v2853
    %v2865 = vmul.f32 %v2678, %v2857
    %v2866 = vmul.f32 %v2679, %v2853
    %v2867 = vmul.f32 %v2680, %v2857
    %v2868 = vmul.f32 %v2681, %v2853
    %v2869 = vmul.f32 %v2682, %v2857
    %v2870 = vmul.f32 %v2683, %v2853
    %v2871 = vmul.f32 %v2684, %v2857
    %v2872 = vmul.f32 %v2685, %v2853
    %v2873 = vmul.f32 %v2686, %v2857
    %v2875 = vlaneseq
    %v2876 = vshrl.u32 %v2875, 7
    %v2877 = vsub.s32 1, %v2876
    %v2878 = vrot.slane %v2849, %v2877
    %v2879 = vlaneseq
    %v2880 = vshrl.u32 %v2879, 7
    %v2881 = vsub.s32 3, %v2880
    %v2882 = vrot.slane %v2849, %v2881
    %v2885 = vlaneseq
    %v2886 = vshrl.u32 %v2885, 7
    %v2887 = vsub.s32 1, %v2886
    %v2888 = vrot.slane %v2878, %v2887
    %v2889 = vlaneseq
    %v2890 = vshrl.u32 %v2889, 7
    %v2891 = vsub.s32 1, %v2890
    %v2892 = vrot.slane %v2882, %v2891
    %v2893 = vadd.f32 %v2858, %v2888
    %v2894 = vadd.f32 %v2859, %v2892
    %v2895 = vadd.f32 %v2860, %v2888
    %v2896 = vadd.f32 %v2861, %v2892
    %v2897 = vadd.f32 %v2862, %v2888
    %v2898 = vadd.f32 %v2863, %v2892
    %v2899 = vadd.f32 %v2864, %v2888
    %v2900 = vadd.f32 %v2865, %v2892
    %v2901 = vadd.f32 %v2866, %v2888
    %v2902 = vadd.f32 %v2867, %v2892
    %v2903 = vadd.f32 %v2868, %v2888
    %v2904 = vadd.f32 %v2869, %v2892
    %v2905 = vadd.f32 %v2870, %v2888
    %v2906 = vadd.f32 %v2871, %v2892
    %v2907 = vadd.f32 %v2872, %v2888
    %v2908 = vadd.f32 %v2873, %v2892
    %v2909 = vmul.f32 %v2893, 0.5
    %v2910 = vmul.f32 %v2894, 0.5
    %v2911 = vmul.f32 %v2895, 0.5
    %v2912 = vmul.f32 %v2896, 0.5
    %v2913 = vmul.f32 %v2897, 0.5
    %v2914 = vmul.f32 %v2898, 0.5
    %v2915 = vmul.f32 %v2899, 0.5
    %v2916 = vmul.f32 %v2900, 0.5
    %v2917 = vmul.f32 %v2901, 0.5
    %v2918 = vmul.f32 %v2902, 0.5
    %v2919 = vmul.f32 %v2903, 0.5
    %v2920 = vmul.f32 %v2904, 0.5
    %v2921 = vmul.f32 %v2905, 0.5
    %v2922 = vmul.f32 %v2906, 0.5
    %v2923 = vmul.f32 %v2907, 0.5
    %v2924 = vmul.f32 %v2908, 0.5
    %v2925 = vmul.f32 %v2893, 0.70710677
    %v2926 = vmul.f32 %v2894, 0.70710677
    %v2927 = vmul.f32 %v2895, 0.70710677
    %v2928 = vmul.f32 %v2896, 0.70710677
    %v2929 = vmul.f32 %v2897, 0.70710677
    %v2930 = vmul.f32 %v2898, 0.70710677
    %v2931 = vmul.f32 %v2899, 0.70710677
    %v2932 = vmul.f32 %v2900, 0.70710677
    %v2933 = vmul.f32 %v2901, 0.70710677
    %v2934 = vmul.f32 %v2902, 0.70710677
    %v2935 = vmul.f32 %v2903, 0.70710677
    %v2936 = vmul.f32 %v2904, 0.70710677
    %v2937 = vmul.f32 %v2905, 0.70710677
    %v2938 = vmul.f32 %v2906, 0.70710677
    %v2939 = vmul.f32 %v2907, 0.70710677
    %v2940 = vmul.f32 %v2908, 0.70710677
    %v2941 = verf.f32.pop %v2925
    %v2942 = verf.f32.pop %v2926
    %v2943 = verf.f32.pop %v2927
    %v2944 = verf.f32.pop %v2928
    %v2945 = verf.f32.pop %v2929
    %v2946 = verf.f32.pop %v2930
    %v2947 = verf.f32.pop %v2931
    %v2948 = verf.f32.pop %v2932
    %v2949 = verf.f32.pop %v2933
    %v2950 = verf.f32.pop %v2934
    %v2951 = verf.f32.pop %v2935
    %v2952 = verf.f32.pop %v2936
    %v2953 = verf.f32.pop %v2937
    %v2954 = verf.f32.pop %v2938
    %v2955 = verf.f32.pop %v2939
    %v2956 = verf.f32.pop %v2940
    %v2957 = vadd.f32 %v2941, 1.0
    %v2958 = vadd.f32 %v2942, 1.0
    %v2959 = vadd.f32 %v2943, 1.0
    %v2960 = vadd.f32 %v2944, 1.0
    %v2961 = vadd.f32 %v2945, 1.0
    %v2962 = vadd.f32 %v2946, 1.0
    %v2963 = vadd.f32 %v2947, 1.0
    %v2964 = vadd.f32 %v2948, 1.0
    %v2965 = vadd.f32 %v2949, 1.0
    %v2966 = vadd.f32 %v2950, 1.0
    %v2967 = vadd.f32 %v2951, 1.0
    %v2968 = vadd.f32 %v2952, 1.0
    %v2969 = vadd.f32 %v2953, 1.0
    %v2970 = vadd.f32 %v2954, 1.0
    %v2971 = vadd.f32 %v2955, 1.0
    %v2972 = vadd.f32 %v2956, 1.0
    %v2973 = vmul.f32 %v2909, %v2957
    %v2974 = vmul.f32 %v2910, %v2958
    %v2975 = vmul.f32 %v2911, %v2959
    %v2976 = vmul.f32 %v2912, %v2960
    %v2977 = vmul.f32 %v2913, %v2961
    %v2978 = vmul.f32 %v2914, %v2962
    %v2979 = vmul.f32 %v2915, %v2963
    %v2980 = vmul.f32 %v2916, %v2964
    %v2981 = vmul.f32 %v2917, %v2965
    %v2982 = vmul.f32 %v2918, %v2966
    %v2983 = vmul.f32 %v2919, %v2967
    %v2984 = vmul.f32 %v2920, %v2968
    %v2985 = vmul.f32 %v2921, %v2969
    %v2986 = vmul.f32 %v2922, %v2970
    %v2987 = vmul.f32 %v2923, %v2971
    %v2988 = vmul.f32 %v2924, %v2972
    %v2989 = vld [vmem:[#allocation3] sm:$0xff]
    %v2990 = vld [vmem:[#allocation3 + $0x8] sm:$0xff]
    %v2991 = vld [vmem:[#allocation3 + $0x10] sm:$0xff]
    %v2992 = vld [vmem:[#allocation3 + $0x18] sm:$0xff]
    %v2993 = vld [vmem:[#allocation3 + $0x20] sm:$0xff]
    %v2994 = vld [vmem:[#allocation3 + $0x28] sm:$0xff]
    %v2995 = vld [vmem:[#allocation3 + $0x30] sm:$0xff]
    %v2996 = vld [vmem:[#allocation3 + $0x38] sm:$0xff]
    %v2997 = vld [vmem:[#allocation3 + $0x40] sm:$0xff]
    %v2998 = vld [vmem:[#allocation3 + $0x48] sm:$0xff]
    %v2999 = vld [vmem:[#allocation3 + $0x50] sm:$0xff]
    %v3000 = vld [vmem:[#allocation3 + $0x58] sm:$0xff]
    %v3001 = vld [vmem:[#allocation3 + $0x60] sm:$0xff]
    %v3002 = vld [vmem:[#allocation3 + $0x68] sm:$0xff]
    %v3003 = vld [vmem:[#allocation3 + $0x70] sm:$0xff]
    %v3004 = vld [vmem:[#allocation3 + $0x78] sm:$0xff]
    %v3005 = vadd.f32 %v2973, %v2989
    %v3006 = vadd.f32 %v2974, %v2990
    %v3007 = vadd.f32 %v2975, %v2991
    %v3008 = vadd.f32 %v2976, %v2992
    %v3009 = vadd.f32 %v2977, %v2993
    %v3010 = vadd.f32 %v2978, %v2994
    %v3011 = vadd.f32 %v2979, %v2995
    %v3012 = vadd.f32 %v2980, %v2996
    %v3013 = vadd.f32 %v2981, %v2997
    %v3014 = vadd.f32 %v2982, %v2998
    %v3015 = vadd.f32 %v2983, %v2999
    %v3016 = vadd.f32 %v2984, %v3000
    %v3017 = vadd.f32 %v2985, %v3001
    %v3018 = vadd.f32 %v2986, %v3002
    %v3019 = vadd.f32 %v2987, %v3003
    %v3020 = vadd.f32 %v2988, %v3004
    %3021 = vst [vmem:[#allocation12] sm:$0xff] %v3005
    %3022 = vst [vmem:[#allocation12 + $0x8] sm:$0xff] %v3006
    %3023 = vst [vmem:[#allocation12 + $0x10] sm:$0xff] %v3007
    %3024 = vst [vmem:[#allocation12 + $0x18] sm:$0xff] %v3008
    %3025 = vst [vmem:[#allocation12 + $0x20] sm:$0xff] %v3009
    %3026 = vst [vmem:[#allocation12 + $0x28] sm:$0xff] %v3010
    %3027 = vst [vmem:[#allocation12 + $0x30] sm:$0xff] %v3011
    %3028 = vst [vmem:[#allocation12 + $0x38] sm:$0xff] %v3012
    %3029 = vst [vmem:[#allocation12 + $0x40] sm:$0xff] %v3013
    %3030 = vst [vmem:[#allocation12 + $0x48] sm:$0xff] %v3014
    %3031 = vst [vmem:[#allocation12 + $0x50] sm:$0xff] %v3015
    %3032 = vst [vmem:[#allocation12 + $0x58] sm:$0xff] %v3016
    %3033 = vst [vmem:[#allocation12 + $0x60] sm:$0xff] %v3017
    %3034 = vst [vmem:[#allocation12 + $0x68] sm:$0xff] %v3018
    %3035 = vst [vmem:[#allocation12 + $0x70] sm:$0xff] %v3019
    %3036 = vst [vmem:[#allocation12 + $0x78] sm:$0xff] %v3020
    // Predicated region
    $region50: #{tpu_custom_call.1} parent=1 // pred_check
      _
    $region51: #{tpu_custom_call.1} parent=1 // pred_check_branch
      %3038 = sbr.rel (0) target = $region53
    $region52: #{tpu_custom_call.1} parent=1 // pred_region
      %s3040 = ssub.s32 2048, 2048
      %3041 = vsyncadd [#allocation5], %s3040
      %s3042 = sshll.u32 [#allocation12], 4
      %s3043 = int_to_ptr.vmem [resolvable:$true] %s3042
      %3048 = dma.vmem_to_hbm [thread:$0]  %s3043, 2048, %s7, [#allocation5], 256, 256, 16
    $region53: #{tpu_custom_call.1} parent=1 // pred_fallthru
      _
    // Predicated region
    $region54: #{tpu_custom_call.1} parent=1 // pred_check
      _
    $region55: #{tpu_custom_call.1} parent=1 // pred_check_branch
      %3050 = sbr.rel (0) target = $region57
    $region56: #{tpu_custom_call.1} parent=1 // pred_region
      %3051 = dma.done [#allocation5], 2048
    $region57: #{tpu_custom_call.1} parent=1 // pred_fallthru
      _
    %3052 = vsyncpa [#allocation4], 1
    %3053 = vsyncpa [#allocation7], 1
    %3054 = vsyncpa [#allocation10], 1
    %3055 = vsyncpa [#allocation5], 1

</llo_original>
